<compile_context>
chip_gen: v7x
topology: tpu7x:2x2x1
jax: 0.10.0
libtpu: 0.0.40
codegen_flags: <defaults>
</compile_context>

<pallas_src>
import functools

import jax
import jax.numpy as jnp
from jax import lax
from jax.experimental import pallas as pl
from jax.experimental.pallas import tpu as pltpu


# ----------------------------------------------------------------------------
# Fused kernel: one program per batch block (b_blk batch elements, unrolled).
# ----------------------------------------------------------------------------
def _sagfb_kernel(x_ref, wq_ref, wk_ref, wv_ref, sup_ref, nemb_ref, wpool_ref,
                  bn_ref, fm_ref, o_ref, x1_ref,
                  *, n_heads, t_len, cheb_k, emb_dim, b_blk):
    T, H, E, K = t_len, n_heads, emb_dim, cheb_k
    bf16 = jnp.bfloat16

    for bi in range(b_blk):                                # static batch block
        x_bf = x_ref[bi].astype(bf16)                      # (S, T)

        # ---- Stage 1: multi-head spatial attention over vertices -----------
        # Per-head context written directly to (S, D) VMEM scratch (no concat).
        for h in range(H):                                 # static head loop
            q = jnp.dot(x_bf, wq_ref[h], preferred_element_type=jnp.float32)
            k = jnp.dot(x_bf, wk_ref[h], preferred_element_type=jnp.float32)
            v = jnp.dot(x_bf, wv_ref[h], preferred_element_type=jnp.float32)
            s = lax.dot_general(q.astype(bf16), k.astype(bf16),
                                (((1,), (1,)), ((), ())),
                                preferred_element_type=jnp.float32)   # (S, S)
            s = s - jnp.max(s, axis=-1, keepdims=True)     # f32 softmax math
            p = jnp.exp(s)
            inv = pl.reciprocal(jnp.sum(p, axis=-1, keepdims=True), approx=True)
            ctx = jnp.dot(p.astype(bf16), v.astype(bf16),
                          preferred_element_type=jnp.float32) * inv   # (S, T)
            x1_ref[:, h * T:(h + 1) * T] = ctx

        x1 = x1_ref[...]                                   # (S, D) f32
        x1_bf = x1.astype(bf16)

        # ---- Stage 2: AdpGCN factored through (node_emb, w_pool) + residual -
        # out[n,o] = b[n,o] + sum_k sum_e node_emb[n,e] * (T_k @ x1 @ W[k,e])[n,o]
        gcn = bn_ref[...]                                  # (S, D) f32 bias
        for k_ord in range(K):                             # static Chebyshev loop
            if k_ord == 0:
                xg_bf = x1_bf                              # T_0 = identity support
            else:
                xg = jnp.dot(sup_ref[k_ord - 1], x1_bf,
                             preferred_element_type=jnp.float32)      # (S, D)
                xg_bf = xg.astype(bf16)
            for e in range(E):                             # static embed loop
                t_e = jnp.dot(xg_bf, wpool_ref[k_ord, e],
                              preferred_element_type=jnp.float32)     # (S, D)
                gcn = gcn + nemb_ref[e] * t_e              # (S,1) * (S,D), f32
        x2 = gcn + x1                                      # adgcn(x) + x

        # ---- Stage 3: F_Block folded to a single (D, D) matmul + residual ---
        y = jnp.dot(x2.astype(bf16), fm_ref[...],
                    preferred_element_type=jnp.float32) + x2
        o_ref[bi] = y


def sagfb_fused(x_bst, params, *, b_blk=1):
    B, S, T = x_bst.shape
    H = params["wq"].shape[0]
    D = H * T
    K = params["supports"].shape[0] + 1          # identity support handled in-kernel
    E = params["node_emb"].shape[0]
    assert B % b_blk == 0, (B, b_blk)

    return pl.pallas_call(
        functools.partial(_sagfb_kernel, n_heads=H, t_len=T, cheb_k=K,
                          emb_dim=E, b_blk=b_blk),
        out_shape=jax.ShapeDtypeStruct((B, S, D), jnp.float32),
        grid=(B // b_blk,),
        in_specs=[
            pl.BlockSpec((b_blk, S, T), lambda b: (b, 0, 0)),       # x
            pl.BlockSpec((H, T, T), lambda b: (0, 0, 0)),           # wq (scaled)
            pl.BlockSpec((H, T, T), lambda b: (0, 0, 0)),           # wk
            pl.BlockSpec((H, T, T), lambda b: (0, 0, 0)),           # wv
            pl.BlockSpec((K - 1, S, S), lambda b: (0, 0, 0)),       # cheb supports (no I)
            pl.BlockSpec((E, S, 1), lambda b: (0, 0, 0)),           # node embeddings
            pl.BlockSpec((K, E, D, D), lambda b: (0, 0, 0, 0)),     # weight pool
            pl.BlockSpec((S, D), lambda b: (0, 0)),                 # node bias
            pl.BlockSpec((D, D), lambda b: (0, 0)),                 # folded F_Block
        ],
        out_specs=pl.BlockSpec((b_blk, S, D), lambda b: (b, 0, 0)),
        scratch_shapes=[pltpu.VMEM((S, D), jnp.float32)],           # x1 (attention out)
        compiler_params=pltpu.CompilerParams(
            dimension_semantics=("parallel",),
            vmem_limit_bytes=48 * 1024 * 1024),
    )(x_bst, params["wq"], params["wk"], params["wv"], params["supports"],
      params["node_emb"], params["w_pool"], params["b_node"], params["f_mat"])


# ----------------------------------------------------------------------------
# Glue: parameter setup (plain JAX, runs once at init).
# ----------------------------------------------------------------------------
def _dft_fold_matrix(key_r, key_i, D):
    # Fold rDFT -> per-mode complex weights -> irDFT into one exact (D, D) mat.
    eye = jnp.eye(D, dtype=jnp.float32)
    M = jnp.fft.rfft(eye, axis=1)                                     # (D, F)
    F = M.shape[1]
    eye_f = jnp.eye(F, dtype=jnp.complex64)
    icr = jnp.fft.irfft(eye_f, n=D, axis=1).real.astype(jnp.float32)        # (F, D)
    ici = jnp.fft.irfft(1j * eye_f, n=D, axis=1).real.astype(jnp.float32)   # (F, D)
    cr = M.real.astype(jnp.float32)
    ci = M.imag.astype(jnp.float32)
    fwr = 1.0 + 0.1 * jax.random.normal(key_r, (1, F), jnp.float32)
    fwi = 0.1 * jax.random.normal(key_i, (1, F), jnp.float32)
    return (cr * fwr - ci * fwi) @ icr + (cr * fwi + ci * fwr) @ ici  # (D, D)


def init_params(key, *, n_his, n_vertex, n_heads, emb_dim, cheb_k):
    T, S, H, E, K = n_his, n_vertex, n_heads, emb_dim, cheb_k
    D = T * H
    ks = jax.random.split(key, 8)

    scale = 1.0 / float(T) ** 0.5                      # 1/sqrt(T) folded into wq
    wq = (0.3 * scale) * jax.random.normal(ks[0], (H, T, T), jnp.float32)
    wk = 0.3 * jax.random.normal(ks[1], (H, T, T), jnp.float32)
    wv = 0.3 * jax.random.normal(ks[2], (H, T, T), jnp.float32)

    node_emb = jax.random.normal(ks[3], (S, E), jnp.float32)
    w_pool = 0.05 * jax.random.normal(ks[4], (E, K, D, D), jnp.float32)
    b_pool = 0.05 * jax.random.normal(ks[5], (E, D), jnp.float32)

    # adaptive adjacency + Chebyshev support set; T_0 = I is applied in-kernel.
    adj = jax.nn.softmax(jax.nn.relu(node_emb @ node_emb.T), axis=-1)
    eye_s = jnp.eye(S, dtype=jnp.float32)
    cheb = [eye_s, adj]
    for _ in range(2, K):
        cheb.append(2.0 * adj @ cheb[-1] - cheb[-2])
    supports = jnp.stack(cheb[1:], axis=0)                            # (K-1, S, S)

    w_pool_k = jnp.transpose(w_pool, (1, 0, 2, 3))                    # (K, E, D, D)
    b_node = node_emb @ b_pool                                        # (S, D)
    node_emb_b = jnp.transpose(node_emb)[:, :, None]                  # (E, S, 1)

    f_mat = _dft_fold_matrix(ks[6], ks[7], D)                         # (D, D)

    return dict(
        wq=wq.astype(jnp.bfloat16),
        wk=wk.astype(jnp.bfloat16),
        wv=wv.astype(jnp.bfloat16),
        supports=supports.astype(jnp.bfloat16),
        node_emb=node_emb_b,                       # f32 (VPU elementwise scale)
        w_pool=w_pool_k.astype(jnp.bfloat16),
        b_node=b_node,                             # f32 additive bias
        f_mat=f_mat.astype(jnp.bfloat16),
    )


def sagfb_forward(x, params, *, b_blk=1):
    # x: (B, 1, T, S)  (NCHW-like).  Dropout is an eval-mode no-op.
    x = jnp.squeeze(x, axis=1)                 # (B, T, S)
    x = jnp.transpose(x, (0, 2, 1))            # (B, S, T): vertices on sublanes
    y = sagfb_fused(x, params, b_blk=b_blk)    # (B, S, D), D = n_his * n_heads
    # TODO(synk): OutputBlock (and the permute/to_4d feeding it) omitted — no source.
    return y[:, None, :, :]                    # (B, 1, S, D)


if __name__ == "__main__":
    B, T, S, H, E, K = 2, 8, 8, 4, 8, 3        # n_his=8, n_vertex=8, n_heads=4
    key = jax.random.PRNGKey(0)
    kx, kp = jax.random.split(key)
    x = jax.random.normal(kx, (B, 1, T, S), dtype=jnp.float32)
    params = init_params(kp, n_his=T, n_vertex=S, n_heads=H,
                         emb_dim=E, cheb_k=K)

    out = sagfb_forward(x, params, b_blk=1)    # grid=(2,): both v7x TCs busy
    out = jax.block_until_ready(out)

    assert out.shape == (B, 1, S, T * H), out.shape
    assert bool(jnp.all(jnp.isfinite(out)))
    print("KERNEL_OK")
</pallas_src>

<mosaic_0001>
module attributes {stable_mosaic.version = 11 : i64} {
  func.func @_sagfb_kernel(%arg0: i32, %arg1: memref<1x8x8xf32, #tpu.memory_space<vmem>>, %arg2: memref<4x8x8xbf16, #tpu.memory_space<vmem>>, %arg3: memref<4x8x8xbf16, #tpu.memory_space<vmem>>, %arg4: memref<4x8x8xbf16, #tpu.memory_space<vmem>>, %arg5: memref<2x8x8xbf16, #tpu.memory_space<vmem>>, %arg6: memref<8x8x1xf32, #tpu.memory_space<vmem>>, %arg7: memref<3x8x32x32xbf16, #tpu.memory_space<vmem>>, %arg8: memref<8x32xf32, #tpu.memory_space<vmem>>, %arg9: memref<32x32xbf16, #tpu.memory_space<vmem>>, %arg10: memref<1x8x32xf32, #tpu.memory_space<vmem>>, %arg11: memref<8x32xf32, #tpu.memory_space<vmem>>) attributes {dimension_semantics = [#tpu.dimension_semantics<parallel>], iteration_bounds = array<i64: 2>, scalar_prefetch = 0 : i64, scratch_operands = 1 : i64, tpu.core_type = #tpu.core_type<tc>, window_params = [{transform_indices = @transform_0, window_bounds = array<i64: 1, 8, 8>}, {pipeline_mode = #tpu.pipeline_mode<synchronous>, transform_indices = @transform_1, window_bounds = array<i64: 4, 8, 8>}, {pipeline_mode = #tpu.pipeline_mode<synchronous>, transform_indices = @transform_2, window_bounds = array<i64: 4, 8, 8>}, {pipeline_mode = #tpu.pipeline_mode<synchronous>, transform_indices = @transform_3, window_bounds = array<i64: 4, 8, 8>}, {pipeline_mode = #tpu.pipeline_mode<synchronous>, transform_indices = @transform_4, window_bounds = array<i64: 2, 8, 8>}, {pipeline_mode = #tpu.pipeline_mode<synchronous>, transform_indices = @transform_5, window_bounds = array<i64: 8, 8, 1>}, {pipeline_mode = #tpu.pipeline_mode<synchronous>, transform_indices = @transform_6, window_bounds = array<i64: 3, 8, 32, 32>}, {pipeline_mode = #tpu.pipeline_mode<synchronous>, transform_indices = @transform_7, window_bounds = array<i64: 8, 32>}, {pipeline_mode = #tpu.pipeline_mode<synchronous>, transform_indices = @transform_8, window_bounds = array<i64: 32, 32>}, {transform_indices = @transform_9, window_bounds = array<i64: 1, 8, 32>}]} {
    %c0 = arith.constant 0 : index
    %c0_0 = arith.constant 0 : index
    %c0_1 = arith.constant 0 : index
    %0 = vector.load %arg1[%c0, %c0_0, %c0_1] : memref<1x8x8xf32, #tpu.memory_space<vmem>>, vector<1x8x8xf32>
    %1 = vector.shape_cast %0 : vector<1x8x8xf32> to vector<8x8xf32>
    %2 = arith.truncf %1 : vector<8x8xf32> to vector<8x8xbf16>
    %c0_2 = arith.constant 0 : index
    %c0_3 = arith.constant 0 : index
    %c0_4 = arith.constant 0 : index
    %3 = vector.load %arg2[%c0_2, %c0_3, %c0_4] : memref<4x8x8xbf16, #tpu.memory_space<vmem>>, vector<1x8x8xbf16>
    %4 = vector.shape_cast %3 : vector<1x8x8xbf16> to vector<8x8xbf16>
    %cst = arith.constant dense<0.000000e+00> : vector<8x8xf32>
    %5 = tpu.matmul %2, %4, %cst {dimension_numbers = #tpu.dot_dimension_numbers<[1], [0], [0], [1], [0, 0, 1, 1], [], []>} : vector<8x8xbf16>, vector<8x8xbf16>, vector<8x8xf32> -> vector<8x8xf32>
    %c0_5 = arith.constant 0 : index
    %c0_6 = arith.constant 0 : index
    %c0_7 = arith.constant 0 : index
    %6 = vector.load %arg3[%c0_5, %c0_6, %c0_7] : memref<4x8x8xbf16, #tpu.memory_space<vmem>>, vector<1x8x8xbf16>
    %7 = vector.shape_cast %6 : vector<1x8x8xbf16> to vector<8x8xbf16>
    %cst_8 = arith.constant dense<0.000000e+00> : vector<8x8xf32>
    %8 = tpu.matmul %2, %7, %cst_8 {dimension_numbers = #tpu.dot_dimension_numbers<[1], [0], [0], [1], [0, 0, 1, 1], [], []>} : vector<8x8xbf16>, vector<8x8xbf16>, vector<8x8xf32> -> vector<8x8xf32>
    %c0_9 = arith.constant 0 : index
    %c0_10 = arith.constant 0 : index
    %c0_11 = arith.constant 0 : index
    %9 = vector.load %arg4[%c0_9, %c0_10, %c0_11] : memref<4x8x8xbf16, #tpu.memory_space<vmem>>, vector<1x8x8xbf16>
    %10 = vector.shape_cast %9 : vector<1x8x8xbf16> to vector<8x8xbf16>
    %cst_12 = arith.constant dense<0.000000e+00> : vector<8x8xf32>
    %11 = tpu.matmul %2, %10, %cst_12 {dimension_numbers = #tpu.dot_dimension_numbers<[1], [0], [0], [1], [0, 0, 1, 1], [], []>} : vector<8x8xbf16>, vector<8x8xbf16>, vector<8x8xf32> -> vector<8x8xf32>
    %12 = arith.truncf %5 : vector<8x8xf32> to vector<8x8xbf16>
    %13 = arith.truncf %8 : vector<8x8xf32> to vector<8x8xbf16>
    %cst_13 = arith.constant dense<0.000000e+00> : vector<8x8xf32>
    %14 = tpu.matmul %12, %13, %cst_13 {dimension_numbers = #tpu.dot_dimension_numbers<[1], [1], [0], [0], [0, 0, 1, 0], [], []>} : vector<8x8xbf16>, vector<8x8xbf16>, vector<8x8xf32> -> vector<8x8xf32>
    %cst_14 = arith.constant dense<0xFF800000> : vector<8xf32>
    %15 = vector.multi_reduction <maximumf>, %14, %cst_14 [1] : vector<8x8xf32> to vector<8xf32>
    %16 = vector.shape_cast %15 : vector<8xf32> to vector<8x1xf32>
    %17 = vector.broadcast %16 : vector<8x1xf32> to vector<8x8xf32>
    %18 = arith.subf %14, %17 : vector<8x8xf32>
    %19 = math.exp %18 : vector<8x8xf32>
    %cst_15 = arith.constant dense<0.000000e+00> : vector<8xf32>
    %20 = vector.multi_reduction <add>, %19, %cst_15 [1] : vector<8x8xf32> to vector<8xf32>
    %21 = vector.shape_cast %20 : vector<8xf32> to vector<8x1xf32>
    %22 = tpu.reciprocal %21 {approx = true} : vector<8x1xf32> -> vector<8x1xf32>
    %23 = arith.truncf %19 : vector<8x8xf32> to vector<8x8xbf16>
    %24 = arith.truncf %11 : vector<8x8xf32> to vector<8x8xbf16>
    %cst_16 = arith.constant dense<0.000000e+00> : vector<8x8xf32>
    %25 = tpu.matmul %23, %24, %cst_16 {dimension_numbers = #tpu.dot_dimension_numbers<[1], [0], [0], [1], [0, 0, 1, 1], [], []>} : vector<8x8xbf16>, vector<8x8xbf16>, vector<8x8xf32> -> vector<8x8xf32>
    %26 = vector.broadcast %22 : vector<8x1xf32> to vector<8x8xf32>
    %27 = arith.mulf %25, %26 : vector<8x8xf32>
    %c0_17 = arith.constant 0 : index
    %c0_18 = arith.constant 0 : index
    %28 = vector.load %arg11[%c0_17, %c0_18] : memref<8x32xf32, #tpu.memory_space<vmem>>, vector<8x8xf32>
    tpu.vector_store %arg11[%c0_17, %c0_18], %27 {strides = array<i32>} : memref<8x32xf32, #tpu.memory_space<vmem>>, vector<8x8xf32>,
    %c1 = arith.constant 1 : index
    %c0_19 = arith.constant 0 : index
    %c0_20 = arith.constant 0 : index
    %29 = vector.load %arg2[%c1, %c0_19, %c0_20] : memref<4x8x8xbf16, #tpu.memory_space<vmem>>, vector<1x8x8xbf16>
    %30 = vector.shape_cast %29 : vector<1x8x8xbf16> to vector<8x8xbf16>
    %cst_21 = arith.constant dense<0.000000e+00> : vector<8x8xf32>
    %31 = tpu.matmul %2, %30, %cst_21 {dimension_numbers = #tpu.dot_dimension_numbers<[1], [0], [0], [1], [0, 0, 1, 1], [], []>} : vector<8x8xbf16>, vector<8x8xbf16>, vector<8x8xf32> -> vector<8x8xf32>
    %c1_22 = arith.constant 1 : index
    %c0_23 = arith.constant 0 : index
    %c0_24 = arith.constant 0 : index
    %32 = vector.load %arg3[%c1_22, %c0_23, %c0_24] : memref<4x8x8xbf16, #tpu.memory_space<vmem>>, vector<1x8x8xbf16>
    %33 = vector.shape_cast %32 : vector<1x8x8xbf16> to vector<8x8xbf16>
    %cst_25 = arith.constant dense<0.000000e+00> : vector<8x8xf32>
    %34 = tpu.matmul %2, %33, %cst_25 {dimension_numbers = #tpu.dot_dimension_numbers<[1], [0], [0], [1], [0, 0, 1, 1], [], []>} : vector<8x8xbf16>, vector<8x8xbf16>, vector<8x8xf32> -> vector<8x8xf32>
    %c1_26 = arith.constant 1 : index
    %c0_27 = arith.constant 0 : index
    %c0_28 = arith.constant 0 : index
    %35 = vector.load %arg4[%c1_26, %c0_27, %c0_28] : memref<4x8x8xbf16, #tpu.memory_space<vmem>>, vector<1x8x8xbf16>
    %36 = vector.shape_cast %35 : vector<1x8x8xbf16> to vector<8x8xbf16>
    %cst_29 = arith.constant dense<0.000000e+00> : vector<8x8xf32>
    %37 = tpu.matmul %2, %36, %cst_29 {dimension_numbers = #tpu.dot_dimension_numbers<[1], [0], [0], [1], [0, 0, 1, 1], [], []>} : vector<8x8xbf16>, vector<8x8xbf16>, vector<8x8xf32> -> vector<8x8xf32>
    %38 = arith.truncf %31 : vector<8x8xf32> to vector<8x8xbf16>
    %39 = arith.truncf %34 : vector<8x8xf32> to vector<8x8xbf16>
    %cst_30 = arith.constant dense<0.000000e+00> : vector<8x8xf32>
    %40 = tpu.matmul %38, %39, %cst_30 {dimension_numbers = #tpu.dot_dimension_numbers<[1], [1], [0], [0], [0, 0, 1, 0], [], []>} : vector<8x8xbf16>, vector<8x8xbf16>, vector<8x8xf32> -> vector<8x8xf32>
    %cst_31 = arith.constant dense<0xFF800000> : vector<8xf32>
    %41 = vector.multi_reduction <maximumf>, %40, %cst_31 [1] : vector<8x8xf32> to vector<8xf32>
    %42 = vector.shape_cast %41 : vector<8xf32> to vector<8x1xf32>
    %43 = vector.broadcast %42 : vector<8x1xf32> to vector<8x8xf32>
    %44 = arith.subf %40, %43 : vector<8x8xf32>
    %45 = math.exp %44 : vector<8x8xf32>
    %cst_32 = arith.constant dense<0.000000e+00> : vector<8xf32>
    %46 = vector.multi_reduction <add>, %45, %cst_32 [1] : vector<8x8xf32> to vector<8xf32>
    %47 = vector.shape_cast %46 : vector<8xf32> to vector<8x1xf32>
    %48 = tpu.reciprocal %47 {approx = true} : vector<8x1xf32> -> vector<8x1xf32>
    %49 = arith.truncf %45 : vector<8x8xf32> to vector<8x8xbf16>
    %50 = arith.truncf %37 : vector<8x8xf32> to vector<8x8xbf16>
    %cst_33 = arith.constant dense<0.000000e+00> : vector<8x8xf32>
    %51 = tpu.matmul %49, %50, %cst_33 {dimension_numbers = #tpu.dot_dimension_numbers<[1], [0], [0], [1], [0, 0, 1, 1], [], []>} : vector<8x8xbf16>, vector<8x8xbf16>, vector<8x8xf32> -> vector<8x8xf32>
    %52 = vector.broadcast %48 : vector<8x1xf32> to vector<8x8xf32>
    %53 = arith.mulf %51, %52 : vector<8x8xf32>
    %c0_34 = arith.constant 0 : index
    %c8 = arith.constant 8 : index
    %54 = vector.load %arg11[%c0_34, %c8] : memref<8x32xf32, #tpu.memory_space<vmem>>, vector<8x8xf32>
    tpu.vector_store %arg11[%c0_34, %c8], %53 {strides = array<i32>} : memref<8x32xf32, #tpu.memory_space<vmem>>, vector<8x8xf32>,
    %c2 = arith.constant 2 : index
    %c0_35 = arith.constant 0 : index
    %c0_36 = arith.constant 0 : index
    %55 = vector.load %arg2[%c2, %c0_35, %c0_36] : memref<4x8x8xbf16, #tpu.memory_space<vmem>>, vector<1x8x8xbf16>
    %56 = vector.shape_cast %55 : vector<1x8x8xbf16> to vector<8x8xbf16>
    %cst_37 = arith.constant dense<0.000000e+00> : vector<8x8xf32>
    %57 = tpu.matmul %2, %56, %cst_37 {dimension_numbers = #tpu.dot_dimension_numbers<[1], [0], [0], [1], [0, 0, 1, 1], [], []>} : vector<8x8xbf16>, vector<8x8xbf16>, vector<8x8xf32> -> vector<8x8xf32>
    %c2_38 = arith.constant 2 : index
    %c0_39 = arith.constant 0 : index
    %c0_40 = arith.constant 0 : index
    %58 = vector.load %arg3[%c2_38, %c0_39, %c0_40] : memref<4x8x8xbf16, #tpu.memory_space<vmem>>, vector<1x8x8xbf16>
    %59 = vector.shape_cast %58 : vector<1x8x8xbf16> to vector<8x8xbf16>
    %cst_41 = arith.constant dense<0.000000e+00> : vector<8x8xf32>
    %60 = tpu.matmul %2, %59, %cst_41 {dimension_numbers = #tpu.dot_dimension_numbers<[1], [0], [0], [1], [0, 0, 1, 1], [], []>} : vector<8x8xbf16>, vector<8x8xbf16>, vector<8x8xf32> -> vector<8x8xf32>
    %c2_42 = arith.constant 2 : index
    %c0_43 = arith.constant 0 : index
    %c0_44 = arith.constant 0 : index
    %61 = vector.load %arg4[%c2_42, %c0_43, %c0_44] : memref<4x8x8xbf16, #tpu.memory_space<vmem>>, vector<1x8x8xbf16>
    %62 = vector.shape_cast %61 : vector<1x8x8xbf16> to vector<8x8xbf16>
    %cst_45 = arith.constant dense<0.000000e+00> : vector<8x8xf32>
    %63 = tpu.matmul %2, %62, %cst_45 {dimension_numbers = #tpu.dot_dimension_numbers<[1], [0], [0], [1], [0, 0, 1, 1], [], []>} : vector<8x8xbf16>, vector<8x8xbf16>, vector<8x8xf32> -> vector<8x8xf32>
    %64 = arith.truncf %57 : vector<8x8xf32> to vector<8x8xbf16>
    %65 = arith.truncf %60 : vector<8x8xf32> to vector<8x8xbf16>
    %cst_46 = arith.constant dense<0.000000e+00> : vector<8x8xf32>
    %66 = tpu.matmul %64, %65, %cst_46 {dimension_numbers = #tpu.dot_dimension_numbers<[1], [1], [0], [0], [0, 0, 1, 0], [], []>} : vector<8x8xbf16>, vector<8x8xbf16>, vector<8x8xf32> -> vector<8x8xf32>
    %cst_47 = arith.constant dense<0xFF800000> : vector<8xf32>
    %67 = vector.multi_reduction <maximumf>, %66, %cst_47 [1] : vector<8x8xf32> to vector<8xf32>
    %68 = vector.shape_cast %67 : vector<8xf32> to vector<8x1xf32>
    %69 = vector.broadcast %68 : vector<8x1xf32> to vector<8x8xf32>
    %70 = arith.subf %66, %69 : vector<8x8xf32>
    %71 = math.exp %70 : vector<8x8xf32>
    %cst_48 = arith.constant dense<0.000000e+00> : vector<8xf32>
    %72 = vector.multi_reduction <add>, %71, %cst_48 [1] : vector<8x8xf32> to vector<8xf32>
    %73 = vector.shape_cast %72 : vector<8xf32> to vector<8x1xf32>
    %74 = tpu.reciprocal %73 {approx = true} : vector<8x1xf32> -> vector<8x1xf32>
    %75 = arith.truncf %71 : vector<8x8xf32> to vector<8x8xbf16>
    %76 = arith.truncf %63 : vector<8x8xf32> to vector<8x8xbf16>
    %cst_49 = arith.constant dense<0.000000e+00> : vector<8x8xf32>
    %77 = tpu.matmul %75, %76, %cst_49 {dimension_numbers = #tpu.dot_dimension_numbers<[1], [0], [0], [1], [0, 0, 1, 1], [], []>} : vector<8x8xbf16>, vector<8x8xbf16>, vector<8x8xf32> -> vector<8x8xf32>
    %78 = vector.broadcast %74 : vector<8x1xf32> to vector<8x8xf32>
    %79 = arith.mulf %77, %78 : vector<8x8xf32>
    %c0_50 = arith.constant 0 : index
    %c16 = arith.constant 16 : index
    %80 = vector.load %arg11[%c0_50, %c16] : memref<8x32xf32, #tpu.memory_space<vmem>>, vector<8x8xf32>
    tpu.vector_store %arg11[%c0_50, %c16], %79 {strides = array<i32>} : memref<8x32xf32, #tpu.memory_space<vmem>>, vector<8x8xf32>,
    %c3 = arith.constant 3 : index
    %c0_51 = arith.constant 0 : index
    %c0_52 = arith.constant 0 : index
    %81 = vector.load %arg2[%c3, %c0_51, %c0_52] : memref<4x8x8xbf16, #tpu.memory_space<vmem>>, vector<1x8x8xbf16>
    %82 = vector.shape_cast %81 : vector<1x8x8xbf16> to vector<8x8xbf16>
    %cst_53 = arith.constant dense<0.000000e+00> : vector<8x8xf32>
    %83 = tpu.matmul %2, %82, %cst_53 {dimension_numbers = #tpu.dot_dimension_numbers<[1], [0], [0], [1], [0, 0, 1, 1], [], []>} : vector<8x8xbf16>, vector<8x8xbf16>, vector<8x8xf32> -> vector<8x8xf32>
    %c3_54 = arith.constant 3 : index
    %c0_55 = arith.constant 0 : index
    %c0_56 = arith.constant 0 : index
    %84 = vector.load %arg3[%c3_54, %c0_55, %c0_56] : memref<4x8x8xbf16, #tpu.memory_space<vmem>>, vector<1x8x8xbf16>
    %85 = vector.shape_cast %84 : vector<1x8x8xbf16> to vector<8x8xbf16>
    %cst_57 = arith.constant dense<0.000000e+00> : vector<8x8xf32>
    %86 = tpu.matmul %2, %85, %cst_57 {dimension_numbers = #tpu.dot_dimension_numbers<[1], [0], [0], [1], [0, 0, 1, 1], [], []>} : vector<8x8xbf16>, vector<8x8xbf16>, vector<8x8xf32> -> vector<8x8xf32>
    %c3_58 = arith.constant 3 : index
    %c0_59 = arith.constant 0 : index
    %c0_60 = arith.constant 0 : index
    %87 = vector.load %arg4[%c3_58, %c0_59, %c0_60] : memref<4x8x8xbf16, #tpu.memory_space<vmem>>, vector<1x8x8xbf16>
    %88 = vector.shape_cast %87 : vector<1x8x8xbf16> to vector<8x8xbf16>
    %cst_61 = arith.constant dense<0.000000e+00> : vector<8x8xf32>
    %89 = tpu.matmul %2, %88, %cst_61 {dimension_numbers = #tpu.dot_dimension_numbers<[1], [0], [0], [1], [0, 0, 1, 1], [], []>} : vector<8x8xbf16>, vector<8x8xbf16>, vector<8x8xf32> -> vector<8x8xf32>
    %90 = arith.truncf %83 : vector<8x8xf32> to vector<8x8xbf16>
    %91 = arith.truncf %86 : vector<8x8xf32> to vector<8x8xbf16>
    %cst_62 = arith.constant dense<0.000000e+00> : vector<8x8xf32>
    %92 = tpu.matmul %90, %91, %cst_62 {dimension_numbers = #tpu.dot_dimension_numbers<[1], [1], [0], [0], [0, 0, 1, 0], [], []>} : vector<8x8xbf16>, vector<8x8xbf16>, vector<8x8xf32> -> vector<8x8xf32>
    %cst_63 = arith.constant dense<0xFF800000> : vector<8xf32>
    %93 = vector.multi_reduction <maximumf>, %92, %cst_63 [1] : vector<8x8xf32> to vector<8xf32>
    %94 = vector.shape_cast %93 : vector<8xf32> to vector<8x1xf32>
    %95 = vector.broadcast %94 : vector<8x1xf32> to vector<8x8xf32>
    %96 = arith.subf %92, %95 : vector<8x8xf32>
    %97 = math.exp %96 : vector<8x8xf32>
    %cst_64 = arith.constant dense<0.000000e+00> : vector<8xf32>
    %98 = vector.multi_reduction <add>, %97, %cst_64 [1] : vector<8x8xf32> to vector<8xf32>
    %99 = vector.shape_cast %98 : vector<8xf32> to vector<8x1xf32>
    %100 = tpu.reciprocal %99 {approx = true} : vector<8x1xf32> -> vector<8x1xf32>
    %101 = arith.truncf %97 : vector<8x8xf32> to vector<8x8xbf16>
    %102 = arith.truncf %89 : vector<8x8xf32> to vector<8x8xbf16>
    %cst_65 = arith.constant dense<0.000000e+00> : vector<8x8xf32>
    %103 = tpu.matmul %101, %102, %cst_65 {dimension_numbers = #tpu.dot_dimension_numbers<[1], [0], [0], [1], [0, 0, 1, 1], [], []>} : vector<8x8xbf16>, vector<8x8xbf16>, vector<8x8xf32> -> vector<8x8xf32>
    %104 = vector.broadcast %100 : vector<8x1xf32> to vector<8x8xf32>
    %105 = arith.mulf %103, %104 : vector<8x8xf32>
    %c0_66 = arith.constant 0 : index
    %c24 = arith.constant 24 : index
    %106 = vector.load %arg11[%c0_66, %c24] : memref<8x32xf32, #tpu.memory_space<vmem>>, vector<8x8xf32>
    tpu.vector_store %arg11[%c0_66, %c24], %105 {strides = array<i32>} : memref<8x32xf32, #tpu.memory_space<vmem>>, vector<8x8xf32>,
    %c0_67 = arith.constant 0 : index
    %c0_68 = arith.constant 0 : index
    %107 = vector.load %arg11[%c0_67, %c0_68] : memref<8x32xf32, #tpu.memory_space<vmem>>, vector<8x32xf32>
    %108 = arith.truncf %107 : vector<8x32xf32> to vector<8x32xbf16>
    %c0_69 = arith.constant 0 : index
    %c0_70 = arith.constant 0 : index
    %109 = vector.load %arg8[%c0_69, %c0_70] : memref<8x32xf32, #tpu.memory_space<vmem>>, vector<8x32xf32>
    %c0_71 = arith.constant 0 : index
    %c0_72 = arith.constant 0 : index
    %c0_73 = arith.constant 0 : index
    %c0_74 = arith.constant 0 : index
    %110 = vector.load %arg7[%c0_71, %c0_72, %c0_73, %c0_74] : memref<3x8x32x32xbf16, #tpu.memory_space<vmem>>, vector<1x1x32x32xbf16>
    %111 = vector.shape_cast %110 : vector<1x1x32x32xbf16> to vector<32x32xbf16>
    %cst_75 = arith.constant dense<0.000000e+00> : vector<8x32xf32>
    %112 = tpu.matmul %108, %111, %cst_75 {dimension_numbers = #tpu.dot_dimension_numbers<[1], [0], [0], [1], [0, 0, 1, 1], [], []>} : vector<8x32xbf16>, vector<32x32xbf16>, vector<8x32xf32> -> vector<8x32xf32>
    %c0_76 = arith.constant 0 : index
    %c0_77 = arith.constant 0 : index
    %c0_78 = arith.constant 0 : index
    %113 = vector.load %arg6[%c0_76, %c0_77, %c0_78] : memref<8x8x1xf32, #tpu.memory_space<vmem>>, vector<1x8x1xf32>
    %114 = vector.shape_cast %113 : vector<1x8x1xf32> to vector<8x1xf32>
    %115 = vector.broadcast %114 : vector<8x1xf32> to vector<8x32xf32>
    %116 = arith.mulf %115, %112 : vector<8x32xf32>
    %117 = arith.addf %109, %116 : vector<8x32xf32>
    %c0_79 = arith.constant 0 : index
    %c1_80 = arith.constant 1 : index
    %c0_81 = arith.constant 0 : index
    %c0_82 = arith.constant 0 : index
    %118 = vector.load %arg7[%c0_79, %c1_80, %c0_81, %c0_82] : memref<3x8x32x32xbf16, #tpu.memory_space<vmem>>, vector<1x1x32x32xbf16>
    %119 = vector.shape_cast %118 : vector<1x1x32x32xbf16> to vector<32x32xbf16>
    %cst_83 = arith.constant dense<0.000000e+00> : vector<8x32xf32>
    %120 = tpu.matmul %108, %119, %cst_83 {dimension_numbers = #tpu.dot_dimension_numbers<[1], [0], [0], [1], [0, 0, 1, 1], [], []>} : vector<8x32xbf16>, vector<32x32xbf16>, vector<8x32xf32> -> vector<8x32xf32>
    %c1_84 = arith.constant 1 : index
    %c0_85 = arith.constant 0 : index
    %c0_86 = arith.constant 0 : index
    %121 = vector.load %arg6[%c1_84, %c0_85, %c0_86] : memref<8x8x1xf32, #tpu.memory_space<vmem>>, vector<1x8x1xf32>
    %122 = vector.shape_cast %121 : vector<1x8x1xf32> to vector<8x1xf32>
    %123 = vector.broadcast %122 : vector<8x1xf32> to vector<8x32xf32>
    %124 = arith.mulf %123, %120 : vector<8x32xf32>
    %125 = arith.addf %117, %124 : vector<8x32xf32>
    %c0_87 = arith.constant 0 : index
    %c2_88 = arith.constant 2 : index
    %c0_89 = arith.constant 0 : index
    %c0_90 = arith.constant 0 : index
    %126 = vector.load %arg7[%c0_87, %c2_88, %c0_89, %c0_90] : memref<3x8x32x32xbf16, #tpu.memory_space<vmem>>, vector<1x1x32x32xbf16>
    %127 = vector.shape_cast %126 : vector<1x1x32x32xbf16> to vector<32x32xbf16>
    %cst_91 = arith.constant dense<0.000000e+00> : vector<8x32xf32>
    %128 = tpu.matmul %108, %127, %cst_91 {dimension_numbers = #tpu.dot_dimension_numbers<[1], [0], [0], [1], [0, 0, 1, 1], [], []>} : vector<8x32xbf16>, vector<32x32xbf16>, vector<8x32xf32> -> vector<8x32xf32>
    %c2_92 = arith.constant 2 : index
    %c0_93 = arith.constant 0 : index
    %c0_94 = arith.constant 0 : index
    %129 = vector.load %arg6[%c2_92, %c0_93, %c0_94] : memref<8x8x1xf32, #tpu.memory_space<vmem>>, vector<1x8x1xf32>
    %130 = vector.shape_cast %129 : vector<1x8x1xf32> to vector<8x1xf32>
    %131 = vector.broadcast %130 : vector<8x1xf32> to vector<8x32xf32>
    %132 = arith.mulf %131, %128 : vector<8x32xf32>
    %133 = arith.addf %125, %132 : vector<8x32xf32>
    %c0_95 = arith.constant 0 : index
    %c3_96 = arith.constant 3 : index
    %c0_97 = arith.constant 0 : index
    %c0_98 = arith.constant 0 : index
    %134 = vector.load %arg7[%c0_95, %c3_96, %c0_97, %c0_98] : memref<3x8x32x32xbf16, #tpu.memory_space<vmem>>, vector<1x1x32x32xbf16>
    %135 = vector.shape_cast %134 : vector<1x1x32x32xbf16> to vector<32x32xbf16>
    %cst_99 = arith.constant dense<0.000000e+00> : vector<8x32xf32>
    %136 = tpu.matmul %108, %135, %cst_99 {dimension_numbers = #tpu.dot_dimension_numbers<[1], [0], [0], [1], [0, 0, 1, 1], [], []>} : vector<8x32xbf16>, vector<32x32xbf16>, vector<8x32xf32> -> vector<8x32xf32>
    %c3_100 = arith.constant 3 : index
    %c0_101 = arith.constant 0 : index
    %c0_102 = arith.constant 0 : index
    %137 = vector.load %arg6[%c3_100, %c0_101, %c0_102] : memref<8x8x1xf32, #tpu.memory_space<vmem>>, vector<1x8x1xf32>
    %138 = vector.shape_cast %137 : vector<1x8x1xf32> to vector<8x1xf32>
    %139 = vector.broadcast %138 : vector<8x1xf32> to vector<8x32xf32>
    %140 = arith.mulf %139, %136 : vector<8x32xf32>
    %141 = arith.addf %133, %140 : vector<8x32xf32>
    %c0_103 = arith.constant 0 : index
    %c4 = arith.constant 4 : index
    %c0_104 = arith.constant 0 : index
    %c0_105 = arith.constant 0 : index
    %142 = vector.load %arg7[%c0_103, %c4, %c0_104, %c0_105] : memref<3x8x32x32xbf16, #tpu.memory_space<vmem>>, vector<1x1x32x32xbf16>
    %143 = vector.shape_cast %142 : vector<1x1x32x32xbf16> to vector<32x32xbf16>
    %cst_106 = arith.constant dense<0.000000e+00> : vector<8x32xf32>
    %144 = tpu.matmul %108, %143, %cst_106 {dimension_numbers = #tpu.dot_dimension_numbers<[1], [0], [0], [1], [0, 0, 1, 1], [], []>} : vector<8x32xbf16>, vector<32x32xbf16>, vector<8x32xf32> -> vector<8x32xf32>
    %c4_107 = arith.constant 4 : index
    %c0_108 = arith.constant 0 : index
    %c0_109 = arith.constant 0 : index
    %145 = vector.load %arg6[%c4_107, %c0_108, %c0_109] : memref<8x8x1xf32, #tpu.memory_space<vmem>>, vector<1x8x1xf32>
    %146 = vector.shape_cast %145 : vector<1x8x1xf32> to vector<8x1xf32>
    %147 = vector.broadcast %146 : vector<8x1xf32> to vector<8x32xf32>
    %148 = arith.mulf %147, %144 : vector<8x32xf32>
    %149 = arith.addf %141, %148 : vector<8x32xf32>
    %c0_110 = arith.constant 0 : index
    %c5 = arith.constant 5 : index
    %c0_111 = arith.constant 0 : index
    %c0_112 = arith.constant 0 : index
    %150 = vector.load %arg7[%c0_110, %c5, %c0_111, %c0_112] : memref<3x8x32x32xbf16, #tpu.memory_space<vmem>>, vector<1x1x32x32xbf16>
    %151 = vector.shape_cast %150 : vector<1x1x32x32xbf16> to vector<32x32xbf16>
    %cst_113 = arith.constant dense<0.000000e+00> : vector<8x32xf32>
    %152 = tpu.matmul %108, %151, %cst_113 {dimension_numbers = #tpu.dot_dimension_numbers<[1], [0], [0], [1], [0, 0, 1, 1], [], []>} : vector<8x32xbf16>, vector<32x32xbf16>, vector<8x32xf32> -> vector<8x32xf32>
    %c5_114 = arith.constant 5 : index
    %c0_115 = arith.constant 0 : index
    %c0_116 = arith.constant 0 : index
    %153 = vector.load %arg6[%c5_114, %c0_115, %c0_116] : memref<8x8x1xf32, #tpu.memory_space<vmem>>, vector<1x8x1xf32>
    %154 = vector.shape_cast %153 : vector<1x8x1xf32> to vector<8x1xf32>
    %155 = vector.broadcast %154 : vector<8x1xf32> to vector<8x32xf32>
    %156 = arith.mulf %155, %152 : vector<8x32xf32>
    %157 = arith.addf %149, %156 : vector<8x32xf32>
    %c0_117 = arith.constant 0 : index
    %c6 = arith.constant 6 : index
    %c0_118 = arith.constant 0 : index
    %c0_119 = arith.constant 0 : index
    %158 = vector.load %arg7[%c0_117, %c6, %c0_118, %c0_119] : memref<3x8x32x32xbf16, #tpu.memory_space<vmem>>, vector<1x1x32x32xbf16>
    %159 = vector.shape_cast %158 : vector<1x1x32x32xbf16> to vector<32x32xbf16>
    %cst_120 = arith.constant dense<0.000000e+00> : vector<8x32xf32>
    %160 = tpu.matmul %108, %159, %cst_120 {dimension_numbers = #tpu.dot_dimension_numbers<[1], [0], [0], [1], [0, 0, 1, 1], [], []>} : vector<8x32xbf16>, vector<32x32xbf16>, vector<8x32xf32> -> vector<8x32xf32>
    %c6_121 = arith.constant 6 : index
    %c0_122 = arith.constant 0 : index
    %c0_123 = arith.constant 0 : index
    %161 = vector.load %arg6[%c6_121, %c0_122, %c0_123] : memref<8x8x1xf32, #tpu.memory_space<vmem>>, vector<1x8x1xf32>
    %162 = vector.shape_cast %161 : vector<1x8x1xf32> to vector<8x1xf32>
    %163 = vector.broadcast %162 : vector<8x1xf32> to vector<8x32xf32>
    %164 = arith.mulf %163, %160 : vector<8x32xf32>
    %165 = arith.addf %157, %164 : vector<8x32xf32>
    %c0_124 = arith.constant 0 : index
    %c7 = arith.constant 7 : index
    %c0_125 = arith.constant 0 : index
    %c0_126 = arith.constant 0 : index
    %166 = vector.load %arg7[%c0_124, %c7, %c0_125, %c0_126] : memref<3x8x32x32xbf16, #tpu.memory_space<vmem>>, vector<1x1x32x32xbf16>
    %167 = vector.shape_cast %166 : vector<1x1x32x32xbf16> to vector<32x32xbf16>
    %cst_127 = arith.constant dense<0.000000e+00> : vector<8x32xf32>
    %168 = tpu.matmul %108, %167, %cst_127 {dimension_numbers = #tpu.dot_dimension_numbers<[1], [0], [0], [1], [0, 0, 1, 1], [], []>} : vector<8x32xbf16>, vector<32x32xbf16>, vector<8x32xf32> -> vector<8x32xf32>
    %c7_128 = arith.constant 7 : index
    %c0_129 = arith.constant 0 : index
    %c0_130 = arith.constant 0 : index
    %169 = vector.load %arg6[%c7_128, %c0_129, %c0_130] : memref<8x8x1xf32, #tpu.memory_space<vmem>>, vector<1x8x1xf32>
    %170 = vector.shape_cast %169 : vector<1x8x1xf32> to vector<8x1xf32>
    %171 = vector.broadcast %170 : vector<8x1xf32> to vector<8x32xf32>
    %172 = arith.mulf %171, %168 : vector<8x32xf32>
    %173 = arith.addf %165, %172 : vector<8x32xf32>
    %c0_131 = arith.constant 0 : index
    %c0_132 = arith.constant 0 : index
    %c0_133 = arith.constant 0 : index
    %174 = vector.load %arg5[%c0_131, %c0_132, %c0_133] : memref<2x8x8xbf16, #tpu.memory_space<vmem>>, vector<1x8x8xbf16>
    %175 = vector.shape_cast %174 : vector<1x8x8xbf16> to vector<8x8xbf16>
    %cst_134 = arith.constant dense<0.000000e+00> : vector<8x32xf32>
    %176 = tpu.matmul %175, %108, %cst_134 {dimension_numbers = #tpu.dot_dimension_numbers<[1], [0], [0], [1], [0, 0, 1, 1], [], []>} : vector<8x8xbf16>, vector<8x32xbf16>, vector<8x32xf32> -> vector<8x32xf32>
    %177 = arith.truncf %176 : vector<8x32xf32> to vector<8x32xbf16>
    %c1_135 = arith.constant 1 : index
    %c0_136 = arith.constant 0 : index
    %c0_137 = arith.constant 0 : index
    %c0_138 = arith.constant 0 : index
    %178 = vector.load %arg7[%c1_135, %c0_136, %c0_137, %c0_138] : memref<3x8x32x32xbf16, #tpu.memory_space<vmem>>, vector<1x1x32x32xbf16>
    %179 = vector.shape_cast %178 : vector<1x1x32x32xbf16> to vector<32x32xbf16>
    %cst_139 = arith.constant dense<0.000000e+00> : vector<8x32xf32>
    %180 = tpu.matmul %177, %179, %cst_139 {dimension_numbers = #tpu.dot_dimension_numbers<[1], [0], [0], [1], [0, 0, 1, 1], [], []>} : vector<8x32xbf16>, vector<32x32xbf16>, vector<8x32xf32> -> vector<8x32xf32>
    %c0_140 = arith.constant 0 : index
    %c0_141 = arith.constant 0 : index
    %c0_142 = arith.constant 0 : index
    %181 = vector.load %arg6[%c0_140, %c0_141, %c0_142] : memref<8x8x1xf32, #tpu.memory_space<vmem>>, vector<1x8x1xf32>
    %182 = vector.shape_cast %181 : vector<1x8x1xf32> to vector<8x1xf32>
    %183 = vector.broadcast %182 : vector<8x1xf32> to vector<8x32xf32>
    %184 = arith.mulf %183, %180 : vector<8x32xf32>
    %185 = arith.addf %173, %184 : vector<8x32xf32>
    %c1_143 = arith.constant 1 : index
    %c1_144 = arith.constant 1 : index
    %c0_145 = arith.constant 0 : index
    %c0_146 = arith.constant 0 : index
    %186 = vector.load %arg7[%c1_143, %c1_144, %c0_145, %c0_146] : memref<3x8x32x32xbf16, #tpu.memory_space<vmem>>, vector<1x1x32x32xbf16>
    %187 = vector.shape_cast %186 : vector<1x1x32x32xbf16> to vector<32x32xbf16>
    %cst_147 = arith.constant dense<0.000000e+00> : vector<8x32xf32>
    %188 = tpu.matmul %177, %187, %cst_147 {dimension_numbers = #tpu.dot_dimension_numbers<[1], [0], [0], [1], [0, 0, 1, 1], [], []>} : vector<8x32xbf16>, vector<32x32xbf16>, vector<8x32xf32> -> vector<8x32xf32>
    %c1_148 = arith.constant 1 : index
    %c0_149 = arith.constant 0 : index
    %c0_150 = arith.constant 0 : index
    %189 = vector.load %arg6[%c1_148, %c0_149, %c0_150] : memref<8x8x1xf32, #tpu.memory_space<vmem>>, vector<1x8x1xf32>
    %190 = vector.shape_cast %189 : vector<1x8x1xf32> to vector<8x1xf32>
    %191 = vector.broadcast %190 : vector<8x1xf32> to vector<8x32xf32>
    %192 = arith.mulf %191, %188 : vector<8x32xf32>
    %193 = arith.addf %185, %192 : vector<8x32xf32>
    %c1_151 = arith.constant 1 : index
    %c2_152 = arith.constant 2 : index
    %c0_153 = arith.constant 0 : index
    %c0_154 = arith.constant 0 : index
    %194 = vector.load %arg7[%c1_151, %c2_152, %c0_153, %c0_154] : memref<3x8x32x32xbf16, #tpu.memory_space<vmem>>, vector<1x1x32x32xbf16>
    %195 = vector.shape_cast %194 : vector<1x1x32x32xbf16> to vector<32x32xbf16>
    %cst_155 = arith.constant dense<0.000000e+00> : vector<8x32xf32>
    %196 = tpu.matmul %177, %195, %cst_155 {dimension_numbers = #tpu.dot_dimension_numbers<[1], [0], [0], [1], [0, 0, 1, 1], [], []>} : vector<8x32xbf16>, vector<32x32xbf16>, vector<8x32xf32> -> vector<8x32xf32>
    %c2_156 = arith.constant 2 : index
    %c0_157 = arith.constant 0 : index
    %c0_158 = arith.constant 0 : index
    %197 = vector.load %arg6[%c2_156, %c0_157, %c0_158] : memref<8x8x1xf32, #tpu.memory_space<vmem>>, vector<1x8x1xf32>
    %198 = vector.shape_cast %197 : vector<1x8x1xf32> to vector<8x1xf32>
    %199 = vector.broadcast %198 : vector<8x1xf32> to vector<8x32xf32>
    %200 = arith.mulf %199, %196 : vector<8x32xf32>
    %201 = arith.addf %193, %200 : vector<8x32xf32>
    %c1_159 = arith.constant 1 : index
    %c3_160 = arith.constant 3 : index
    %c0_161 = arith.constant 0 : index
    %c0_162 = arith.constant 0 : index
    %202 = vector.load %arg7[%c1_159, %c3_160, %c0_161, %c0_162] : memref<3x8x32x32xbf16, #tpu.memory_space<vmem>>, vector<1x1x32x32xbf16>
    %203 = vector.shape_cast %202 : vector<1x1x32x32xbf16> to vector<32x32xbf16>
    %cst_163 = arith.constant dense<0.000000e+00> : vector<8x32xf32>
    %204 = tpu.matmul %177, %203, %cst_163 {dimension_numbers = #tpu.dot_dimension_numbers<[1], [0], [0], [1], [0, 0, 1, 1], [], []>} : vector<8x32xbf16>, vector<32x32xbf16>, vector<8x32xf32> -> vector<8x32xf32>
    %c3_164 = arith.constant 3 : index
    %c0_165 = arith.constant 0 : index
    %c0_166 = arith.constant 0 : index
    %205 = vector.load %arg6[%c3_164, %c0_165, %c0_166] : memref<8x8x1xf32, #tpu.memory_space<vmem>>, vector<1x8x1xf32>
    %206 = vector.shape_cast %205 : vector<1x8x1xf32> to vector<8x1xf32>
    %207 = vector.broadcast %206 : vector<8x1xf32> to vector<8x32xf32>
    %208 = arith.mulf %207, %204 : vector<8x32xf32>
    %209 = arith.addf %201, %208 : vector<8x32xf32>
    %c1_167 = arith.constant 1 : index
    %c4_168 = arith.constant 4 : index
    %c0_169 = arith.constant 0 : index
    %c0_170 = arith.constant 0 : index
    %210 = vector.load %arg7[%c1_167, %c4_168, %c0_169, %c0_170] : memref<3x8x32x32xbf16, #tpu.memory_space<vmem>>, vector<1x1x32x32xbf16>
    %211 = vector.shape_cast %210 : vector<1x1x32x32xbf16> to vector<32x32xbf16>
    %cst_171 = arith.constant dense<0.000000e+00> : vector<8x32xf32>
    %212 = tpu.matmul %177, %211, %cst_171 {dimension_numbers = #tpu.dot_dimension_numbers<[1], [0], [0], [1], [0, 0, 1, 1], [], []>} : vector<8x32xbf16>, vector<32x32xbf16>, vector<8x32xf32> -> vector<8x32xf32>
    %c4_172 = arith.constant 4 : index
    %c0_173 = arith.constant 0 : index
    %c0_174 = arith.constant 0 : index
    %213 = vector.load %arg6[%c4_172, %c0_173, %c0_174] : memref<8x8x1xf32, #tpu.memory_space<vmem>>, vector<1x8x1xf32>
    %214 = vector.shape_cast %213 : vector<1x8x1xf32> to vector<8x1xf32>
    %215 = vector.broadcast %214 : vector<8x1xf32> to vector<8x32xf32>
    %216 = arith.mulf %215, %212 : vector<8x32xf32>
    %217 = arith.addf %209, %216 : vector<8x32xf32>
    %c1_175 = arith.constant 1 : index
    %c5_176 = arith.constant 5 : index
    %c0_177 = arith.constant 0 : index
    %c0_178 = arith.constant 0 : index
    %218 = vector.load %arg7[%c1_175, %c5_176, %c0_177, %c0_178] : memref<3x8x32x32xbf16, #tpu.memory_space<vmem>>, vector<1x1x32x32xbf16>
    %219 = vector.shape_cast %218 : vector<1x1x32x32xbf16> to vector<32x32xbf16>
    %cst_179 = arith.constant dense<0.000000e+00> : vector<8x32xf32>
    %220 = tpu.matmul %177, %219, %cst_179 {dimension_numbers = #tpu.dot_dimension_numbers<[1], [0], [0], [1], [0, 0, 1, 1], [], []>} : vector<8x32xbf16>, vector<32x32xbf16>, vector<8x32xf32> -> vector<8x32xf32>
    %c5_180 = arith.constant 5 : index
    %c0_181 = arith.constant 0 : index
    %c0_182 = arith.constant 0 : index
    %221 = vector.load %arg6[%c5_180, %c0_181, %c0_182] : memref<8x8x1xf32, #tpu.memory_space<vmem>>, vector<1x8x1xf32>
    %222 = vector.shape_cast %221 : vector<1x8x1xf32> to vector<8x1xf32>
    %223 = vector.broadcast %222 : vector<8x1xf32> to vector<8x32xf32>
    %224 = arith.mulf %223, %220 : vector<8x32xf32>
    %225 = arith.addf %217, %224 : vector<8x32xf32>
    %c1_183 = arith.constant 1 : index
    %c6_184 = arith.constant 6 : index
    %c0_185 = arith.constant 0 : index
    %c0_186 = arith.constant 0 : index
    %226 = vector.load %arg7[%c1_183, %c6_184, %c0_185, %c0_186] : memref<3x8x32x32xbf16, #tpu.memory_space<vmem>>, vector<1x1x32x32xbf16>
    %227 = vector.shape_cast %226 : vector<1x1x32x32xbf16> to vector<32x32xbf16>
    %cst_187 = arith.constant dense<0.000000e+00> : vector<8x32xf32>
    %228 = tpu.matmul %177, %227, %cst_187 {dimension_numbers = #tpu.dot_dimension_numbers<[1], [0], [0], [1], [0, 0, 1, 1], [], []>} : vector<8x32xbf16>, vector<32x32xbf16>, vector<8x32xf32> -> vector<8x32xf32>
    %c6_188 = arith.constant 6 : index
    %c0_189 = arith.constant 0 : index
    %c0_190 = arith.constant 0 : index
    %229 = vector.load %arg6[%c6_188, %c0_189, %c0_190] : memref<8x8x1xf32, #tpu.memory_space<vmem>>, vector<1x8x1xf32>
    %230 = vector.shape_cast %229 : vector<1x8x1xf32> to vector<8x1xf32>
    %231 = vector.broadcast %230 : vector<8x1xf32> to vector<8x32xf32>
    %232 = arith.mulf %231, %228 : vector<8x32xf32>
    %233 = arith.addf %225, %232 : vector<8x32xf32>
    %c1_191 = arith.constant 1 : index
    %c7_192 = arith.constant 7 : index
    %c0_193 = arith.constant 0 : index
    %c0_194 = arith.constant 0 : index
    %234 = vector.load %arg7[%c1_191, %c7_192, %c0_193, %c0_194] : memref<3x8x32x32xbf16, #tpu.memory_space<vmem>>, vector<1x1x32x32xbf16>
    %235 = vector.shape_cast %234 : vector<1x1x32x32xbf16> to vector<32x32xbf16>
    %cst_195 = arith.constant dense<0.000000e+00> : vector<8x32xf32>
    %236 = tpu.matmul %177, %235, %cst_195 {dimension_numbers = #tpu.dot_dimension_numbers<[1], [0], [0], [1], [0, 0, 1, 1], [], []>} : vector<8x32xbf16>, vector<32x32xbf16>, vector<8x32xf32> -> vector<8x32xf32>
    %c7_196 = arith.constant 7 : index
    %c0_197 = arith.constant 0 : index
    %c0_198 = arith.constant 0 : index
    %237 = vector.load %arg6[%c7_196, %c0_197, %c0_198] : memref<8x8x1xf32, #tpu.memory_space<vmem>>, vector<1x8x1xf32>
    %238 = vector.shape_cast %237 : vector<1x8x1xf32> to vector<8x1xf32>
    %239 = vector.broadcast %238 : vector<8x1xf32> to vector<8x32xf32>
    %240 = arith.mulf %239, %236 : vector<8x32xf32>
    %241 = arith.addf %233, %240 : vector<8x32xf32>
    %c1_199 = arith.constant 1 : index
    %c0_200 = arith.constant 0 : index
    %c0_201 = arith.constant 0 : index
    %242 = vector.load %arg5[%c1_199, %c0_200, %c0_201] : memref<2x8x8xbf16, #tpu.memory_space<vmem>>, vector<1x8x8xbf16>
    %243 = vector.shape_cast %242 : vector<1x8x8xbf16> to vector<8x8xbf16>
    %cst_202 = arith.constant dense<0.000000e+00> : vector<8x32xf32>
    %244 = tpu.matmul %243, %108, %cst_202 {dimension_numbers = #tpu.dot_dimension_numbers<[1], [0], [0], [1], [0, 0, 1, 1], [], []>} : vector<8x8xbf16>, vector<8x32xbf16>, vector<8x32xf32> -> vector<8x32xf32>
    %245 = arith.truncf %244 : vector<8x32xf32> to vector<8x32xbf16>
    %c2_203 = arith.constant 2 : index
    %c0_204 = arith.constant 0 : index
    %c0_205 = arith.constant 0 : index
    %c0_206 = arith.constant 0 : index
    %246 = vector.load %arg7[%c2_203, %c0_204, %c0_205, %c0_206] : memref<3x8x32x32xbf16, #tpu.memory_space<vmem>>, vector<1x1x32x32xbf16>
    %247 = vector.shape_cast %246 : vector<1x1x32x32xbf16> to vector<32x32xbf16>
    %cst_207 = arith.constant dense<0.000000e+00> : vector<8x32xf32>
    %248 = tpu.matmul %245, %247, %cst_207 {dimension_numbers = #tpu.dot_dimension_numbers<[1], [0], [0], [1], [0, 0, 1, 1], [], []>} : vector<8x32xbf16>, vector<32x32xbf16>, vector<8x32xf32> -> vector<8x32xf32>
    %c0_208 = arith.constant 0 : index
    %c0_209 = arith.constant 0 : index
    %c0_210 = arith.constant 0 : index
    %249 = vector.load %arg6[%c0_208, %c0_209, %c0_210] : memref<8x8x1xf32, #tpu.memory_space<vmem>>, vector<1x8x1xf32>
    %250 = vector.shape_cast %249 : vector<1x8x1xf32> to vector<8x1xf32>
    %251 = vector.broadcast %250 : vector<8x1xf32> to vector<8x32xf32>
    %252 = arith.mulf %251, %248 : vector<8x32xf32>
    %253 = arith.addf %241, %252 : vector<8x32xf32>
    %c2_211 = arith.constant 2 : index
    %c1_212 = arith.constant 1 : index
    %c0_213 = arith.constant 0 : index
    %c0_214 = arith.constant 0 : index
    %254 = vector.load %arg7[%c2_211, %c1_212, %c0_213, %c0_214] : memref<3x8x32x32xbf16, #tpu.memory_space<vmem>>, vector<1x1x32x32xbf16>
    %255 = vector.shape_cast %254 : vector<1x1x32x32xbf16> to vector<32x32xbf16>
    %cst_215 = arith.constant dense<0.000000e+00> : vector<8x32xf32>
    %256 = tpu.matmul %245, %255, %cst_215 {dimension_numbers = #tpu.dot_dimension_numbers<[1], [0], [0], [1], [0, 0, 1, 1], [], []>} : vector<8x32xbf16>, vector<32x32xbf16>, vector<8x32xf32> -> vector<8x32xf32>
    %c1_216 = arith.constant 1 : index
    %c0_217 = arith.constant 0 : index
    %c0_218 = arith.constant 0 : index
    %257 = vector.load %arg6[%c1_216, %c0_217, %c0_218] : memref<8x8x1xf32, #tpu.memory_space<vmem>>, vector<1x8x1xf32>
    %258 = vector.shape_cast %257 : vector<1x8x1xf32> to vector<8x1xf32>
    %259 = vector.broadcast %258 : vector<8x1xf32> to vector<8x32xf32>
    %260 = arith.mulf %259, %256 : vector<8x32xf32>
    %261 = arith.addf %253, %260 : vector<8x32xf32>
    %c2_219 = arith.constant 2 : index
    %c2_220 = arith.constant 2 : index
    %c0_221 = arith.constant 0 : index
    %c0_222 = arith.constant 0 : index
    %262 = vector.load %arg7[%c2_219, %c2_220, %c0_221, %c0_222] : memref<3x8x32x32xbf16, #tpu.memory_space<vmem>>, vector<1x1x32x32xbf16>
    %263 = vector.shape_cast %262 : vector<1x1x32x32xbf16> to vector<32x32xbf16>
    %cst_223 = arith.constant dense<0.000000e+00> : vector<8x32xf32>
    %264 = tpu.matmul %245, %263, %cst_223 {dimension_numbers = #tpu.dot_dimension_numbers<[1], [0], [0], [1], [0, 0, 1, 1], [], []>} : vector<8x32xbf16>, vector<32x32xbf16>, vector<8x32xf32> -> vector<8x32xf32>
    %c2_224 = arith.constant 2 : index
    %c0_225 = arith.constant 0 : index
    %c0_226 = arith.constant 0 : index
    %265 = vector.load %arg6[%c2_224, %c0_225, %c0_226] : memref<8x8x1xf32, #tpu.memory_space<vmem>>, vector<1x8x1xf32>
    %266 = vector.shape_cast %265 : vector<1x8x1xf32> to vector<8x1xf32>
    %267 = vector.broadcast %266 : vector<8x1xf32> to vector<8x32xf32>
    %268 = arith.mulf %267, %264 : vector<8x32xf32>
    %269 = arith.addf %261, %268 : vector<8x32xf32>
    %c2_227 = arith.constant 2 : index
    %c3_228 = arith.constant 3 : index
    %c0_229 = arith.constant 0 : index
    %c0_230 = arith.constant 0 : index
    %270 = vector.load %arg7[%c2_227, %c3_228, %c0_229, %c0_230] : memref<3x8x32x32xbf16, #tpu.memory_space<vmem>>, vector<1x1x32x32xbf16>
    %271 = vector.shape_cast %270 : vector<1x1x32x32xbf16> to vector<32x32xbf16>
    %cst_231 = arith.constant dense<0.000000e+00> : vector<8x32xf32>
    %272 = tpu.matmul %245, %271, %cst_231 {dimension_numbers = #tpu.dot_dimension_numbers<[1], [0], [0], [1], [0, 0, 1, 1], [], []>} : vector<8x32xbf16>, vector<32x32xbf16>, vector<8x32xf32> -> vector<8x32xf32>
    %c3_232 = arith.constant 3 : index
    %c0_233 = arith.constant 0 : index
    %c0_234 = arith.constant 0 : index
    %273 = vector.load %arg6[%c3_232, %c0_233, %c0_234] : memref<8x8x1xf32, #tpu.memory_space<vmem>>, vector<1x8x1xf32>
    %274 = vector.shape_cast %273 : vector<1x8x1xf32> to vector<8x1xf32>
    %275 = vector.broadcast %274 : vector<8x1xf32> to vector<8x32xf32>
    %276 = arith.mulf %275, %272 : vector<8x32xf32>
    %277 = arith.addf %269, %276 : vector<8x32xf32>
    %c2_235 = arith.constant 2 : index
    %c4_236 = arith.constant 4 : index
    %c0_237 = arith.constant 0 : index
    %c0_238 = arith.constant 0 : index
    %278 = vector.load %arg7[%c2_235, %c4_236, %c0_237, %c0_238] : memref<3x8x32x32xbf16, #tpu.memory_space<vmem>>, vector<1x1x32x32xbf16>
    %279 = vector.shape_cast %278 : vector<1x1x32x32xbf16> to vector<32x32xbf16>
    %cst_239 = arith.constant dense<0.000000e+00> : vector<8x32xf32>
    %280 = tpu.matmul %245, %279, %cst_239 {dimension_numbers = #tpu.dot_dimension_numbers<[1], [0], [0], [1], [0, 0, 1, 1], [], []>} : vector<8x32xbf16>, vector<32x32xbf16>, vector<8x32xf32> -> vector<8x32xf32>
    %c4_240 = arith.constant 4 : index
    %c0_241 = arith.constant 0 : index
    %c0_242 = arith.constant 0 : index
    %281 = vector.load %arg6[%c4_240, %c0_241, %c0_242] : memref<8x8x1xf32, #tpu.memory_space<vmem>>, vector<1x8x1xf32>
    %282 = vector.shape_cast %281 : vector<1x8x1xf32> to vector<8x1xf32>
    %283 = vector.broadcast %282 : vector<8x1xf32> to vector<8x32xf32>
    %284 = arith.mulf %283, %280 : vector<8x32xf32>
    %285 = arith.addf %277, %284 : vector<8x32xf32>
    %c2_243 = arith.constant 2 : index
    %c5_244 = arith.constant 5 : index
    %c0_245 = arith.constant 0 : index
    %c0_246 = arith.constant 0 : index
    %286 = vector.load %arg7[%c2_243, %c5_244, %c0_245, %c0_246] : memref<3x8x32x32xbf16, #tpu.memory_space<vmem>>, vector<1x1x32x32xbf16>
    %287 = vector.shape_cast %286 : vector<1x1x32x32xbf16> to vector<32x32xbf16>
    %cst_247 = arith.constant dense<0.000000e+00> : vector<8x32xf32>
    %288 = tpu.matmul %245, %287, %cst_247 {dimension_numbers = #tpu.dot_dimension_numbers<[1], [0], [0], [1], [0, 0, 1, 1], [], []>} : vector<8x32xbf16>, vector<32x32xbf16>, vector<8x32xf32> -> vector<8x32xf32>
    %c5_248 = arith.constant 5 : index
    %c0_249 = arith.constant 0 : index
    %c0_250 = arith.constant 0 : index
    %289 = vector.load %arg6[%c5_248, %c0_249, %c0_250] : memref<8x8x1xf32, #tpu.memory_space<vmem>>, vector<1x8x1xf32>
    %290 = vector.shape_cast %289 : vector<1x8x1xf32> to vector<8x1xf32>
    %291 = vector.broadcast %290 : vector<8x1xf32> to vector<8x32xf32>
    %292 = arith.mulf %291, %288 : vector<8x32xf32>
    %293 = arith.addf %285, %292 : vector<8x32xf32>
    %c2_251 = arith.constant 2 : index
    %c6_252 = arith.constant 6 : index
    %c0_253 = arith.constant 0 : index
    %c0_254 = arith.constant 0 : index
    %294 = vector.load %arg7[%c2_251, %c6_252, %c0_253, %c0_254] : memref<3x8x32x32xbf16, #tpu.memory_space<vmem>>, vector<1x1x32x32xbf16>
    %295 = vector.shape_cast %294 : vector<1x1x32x32xbf16> to vector<32x32xbf16>
    %cst_255 = arith.constant dense<0.000000e+00> : vector<8x32xf32>
    %296 = tpu.matmul %245, %295, %cst_255 {dimension_numbers = #tpu.dot_dimension_numbers<[1], [0], [0], [1], [0, 0, 1, 1], [], []>} : vector<8x32xbf16>, vector<32x32xbf16>, vector<8x32xf32> -> vector<8x32xf32>
    %c6_256 = arith.constant 6 : index
    %c0_257 = arith.constant 0 : index
    %c0_258 = arith.constant 0 : index
    %297 = vector.load %arg6[%c6_256, %c0_257, %c0_258] : memref<8x8x1xf32, #tpu.memory_space<vmem>>, vector<1x8x1xf32>
    %298 = vector.shape_cast %297 : vector<1x8x1xf32> to vector<8x1xf32>
    %299 = vector.broadcast %298 : vector<8x1xf32> to vector<8x32xf32>
    %300 = arith.mulf %299, %296 : vector<8x32xf32>
    %301 = arith.addf %293, %300 : vector<8x32xf32>
    %c2_259 = arith.constant 2 : index
    %c7_260 = arith.constant 7 : index
    %c0_261 = arith.constant 0 : index
    %c0_262 = arith.constant 0 : index
    %302 = vector.load %arg7[%c2_259, %c7_260, %c0_261, %c0_262] : memref<3x8x32x32xbf16, #tpu.memory_space<vmem>>, vector<1x1x32x32xbf16>
    %303 = vector.shape_cast %302 : vector<1x1x32x32xbf16> to vector<32x32xbf16>
    %cst_263 = arith.constant dense<0.000000e+00> : vector<8x32xf32>
    %304 = tpu.matmul %245, %303, %cst_263 {dimension_numbers = #tpu.dot_dimension_numbers<[1], [0], [0], [1], [0, 0, 1, 1], [], []>} : vector<8x32xbf16>, vector<32x32xbf16>, vector<8x32xf32> -> vector<8x32xf32>
    %c7_264 = arith.constant 7 : index
    %c0_265 = arith.constant 0 : index
    %c0_266 = arith.constant 0 : index
    %305 = vector.load %arg6[%c7_264, %c0_265, %c0_266] : memref<8x8x1xf32, #tpu.memory_space<vmem>>, vector<1x8x1xf32>
    %306 = vector.shape_cast %305 : vector<1x8x1xf32> to vector<8x1xf32>
    %307 = vector.broadcast %306 : vector<8x1xf32> to vector<8x32xf32>
    %308 = arith.mulf %307, %304 : vector<8x32xf32>
    %309 = arith.addf %301, %308 : vector<8x32xf32>
    %310 = arith.addf %309, %107 : vector<8x32xf32>
    %311 = arith.truncf %310 : vector<8x32xf32> to vector<8x32xbf16>
    %c0_267 = arith.constant 0 : index
    %c0_268 = arith.constant 0 : index
    %312 = vector.load %arg9[%c0_267, %c0_268] : memref<32x32xbf16, #tpu.memory_space<vmem>>, vector<32x32xbf16>
    %cst_269 = arith.constant dense<0.000000e+00> : vector<8x32xf32>
    %313 = tpu.matmul %311, %312, %cst_269 {dimension_numbers = #tpu.dot_dimension_numbers<[1], [0], [0], [1], [0, 0, 1, 1], [], []>} : vector<8x32xbf16>, vector<32x32xbf16>, vector<8x32xf32> -> vector<8x32xf32>
    %314 = arith.addf %313, %310 : vector<8x32xf32>
    %c0_270 = arith.constant 0 : index
    %c0_271 = arith.constant 0 : index
    %c0_272 = arith.constant 0 : index
    %315 = vector.load %arg10[%c0_270, %c0_271, %c0_272] : memref<1x8x32xf32, #tpu.memory_space<vmem>>, vector<1x8x32xf32>
    %316 = vector.shape_cast %315 : vector<1x8x32xf32> to vector<8x32xf32>
    %317 = vector.shape_cast %314 : vector<8x32xf32> to vector<1x8x32xf32>
    tpu.vector_store %arg10[%c0_270, %c0_271, %c0_272], %317 {strides = array<i32>} : memref<1x8x32xf32, #tpu.memory_space<vmem>>, vector<1x8x32xf32>,
    return
  }
  func.func @transform_0(%arg0: i32) -> (i32, i32, i32) {
    %c0_i32 = arith.constant 0 : i32
    %c0_i32_0 = arith.constant 0 : i32
    %c0_i32_1 = arith.constant 0 : i32
    return %arg0, %c0_i32, %c0_i32_0 : i32, i32, i32
  }
  func.func @transform_1(%arg0: i32) -> (i32, i32, i32) {
    %c0_i32 = arith.constant 0 : i32
    %c0_i32_0 = arith.constant 0 : i32
    %c0_i32_1 = arith.constant 0 : i32
    %c0_i32_2 = arith.constant 0 : i32
    return %c0_i32, %c0_i32_0, %c0_i32_1 : i32, i32, i32
  }
  func.func @transform_2(%arg0: i32) -> (i32, i32, i32) {
    %c0_i32 = arith.constant 0 : i32
    %c0_i32_0 = arith.constant 0 : i32
    %c0_i32_1 = arith.constant 0 : i32
    %c0_i32_2 = arith.constant 0 : i32
    return %c0_i32, %c0_i32_0, %c0_i32_1 : i32, i32, i32
  }
  func.func @transform_3(%arg0: i32) -> (i32, i32, i32) {
    %c0_i32 = arith.constant 0 : i32
    %c0_i32_0 = arith.constant 0 : i32
    %c0_i32_1 = arith.constant 0 : i32
    %c0_i32_2 = arith.constant 0 : i32
    return %c0_i32, %c0_i32_0, %c0_i32_1 : i32, i32, i32
  }
  func.func @transform_4(%arg0: i32) -> (i32, i32, i32) {
    %c0_i32 = arith.constant 0 : i32
    %c0_i32_0 = arith.constant 0 : i32
    %c0_i32_1 = arith.constant 0 : i32
    %c0_i32_2 = arith.constant 0 : i32
    return %c0_i32, %c0_i32_0, %c0_i32_1 : i32, i32, i32
  }
  func.func @transform_5(%arg0: i32) -> (i32, i32, i32) {
    %c0_i32 = arith.constant 0 : i32
    %c0_i32_0 = arith.constant 0 : i32
    %c0_i32_1 = arith.constant 0 : i32
    %c0_i32_2 = arith.constant 0 : i32
    return %c0_i32, %c0_i32_0, %c0_i32_1 : i32, i32, i32
  }
  func.func @transform_6(%arg0: i32) -> (i32, i32, i32, i32) {
    %c0_i32 = arith.constant 0 : i32
    %c0_i32_0 = arith.constant 0 : i32
    %c0_i32_1 = arith.constant 0 : i32
    %c0_i32_2 = arith.constant 0 : i32
    %c0_i32_3 = arith.constant 0 : i32
    return %c0_i32, %c0_i32_0, %c0_i32_1, %c0_i32_2 : i32, i32, i32, i32
  }
  func.func @transform_7(%arg0: i32) -> (i32, i32) {
    %c0_i32 = arith.constant 0 : i32
    %c0_i32_0 = arith.constant 0 : i32
    %c0_i32_1 = arith.constant 0 : i32
    return %c0_i32, %c0_i32_0 : i32, i32
  }
  func.func @transform_8(%arg0: i32) -> (i32, i32) {
    %c0_i32 = arith.constant 0 : i32
    %c0_i32_0 = arith.constant 0 : i32
    %c0_i32_1 = arith.constant 0 : i32
    return %c0_i32, %c0_i32_0 : i32, i32
  }
  func.func @transform_9(%arg0: i32) -> (i32, i32, i32) {
    %c0_i32 = arith.constant 0 : i32
    %c0_i32_0 = arith.constant 0 : i32
    %c0_i32_1 = arith.constant 0 : i32
    return %arg0, %c0_i32, %c0_i32_0 : i32, i32, i32
  }
}

</mosaic_0001>

<llo_original>
// kernel: tpu_custom_call.1
$region0: #{tpu_custom_call.1}
  #allocation0 [shape = 'u32[]', space=smem, size = 0x4, offset = 0x4, fixed_abs, tag = 'smem constant byte address 0x4 - core index']
  #allocation1 [shape = 'u32[144,128]{1,0:T(1,128)}', space=vmem, size = 0x12000, scoped, tag = 'internal scratch']
  #allocation2 [shape = 'f32[8,32]{1,0:T(8,128)}', space=vmem, size = 0x1000, scoped, tag = 'scratch operand']
  %s0 = inlined_call_operand.vmem [shape: f32[2,8,8], index: 0, kind: input, shape index: {}]
  %s1 = inlined_call_operand.vmem [shape: bf16[4,8,8], index: 1, kind: input, shape index: {}]
  %s2 = inlined_call_operand.vmem [shape: bf16[4,8,8], index: 2, kind: input, shape index: {}]
  %s3 = inlined_call_operand.vmem [shape: bf16[4,8,8], index: 3, kind: input, shape index: {}]
  %s4 = inlined_call_operand.hbm [shape: bf16[2,8,8], index: 4, kind: input, shape index: {}]
  %s5 = inlined_call_operand.vmem [shape: f32[8,8,1], index: 5, kind: input, shape index: {}]
  %s6 = inlined_call_operand.hbm [shape: bf16[3,8,32,32], index: 6, kind: input, shape index: {}]
  %s7 = inlined_call_operand.vmem [shape: f32[8,32], index: 7, kind: input, shape index: {}]
  %s8 = inlined_call_operand.vmem [shape: bf16[32,32], index: 8, kind: input, shape index: {}]
  %s9 = inlined_call_operand.hbm [shape: f32[2,8,32], index: 9, kind: output, shape index: {}]
  %s10 = sld [smem:[#allocation0]]
  $region77: #{tpu_custom_call.1} parent=0
    _
  %s12 = ssub.s32 1, %s10
  %s13 = scalar_select 0, %s12, %s10
  $region1: #{tpu_custom_call.1} parent=0
    #allocation3 [shape = 'u8[4096]{0}', space=vmem, size = 0x1000, scoped, tag = 'input window, operand 4, single buffered']
    #allocation4 [shape = 's32[2]{0}', space=sflag, size = 0x8, scoped, tag = 'scoped memory for tpu_custom_call.1']
    #allocation5 [shape = 's32[2]{0}', space=sflag, size = 0x8, scoped, tag = 'scoped memory for tpu_custom_call.1']
    #allocation6 [shape = 'u8[196608]{0}', space=vmem, size = 0x30000, scoped, tag = 'input window, operand 6, single buffered']
    #allocation7 [shape = 's32[1]{0}', space=sflag, size = 0x4, scoped, tag = 'scoped memory for tpu_custom_call.1']
    #allocation8 [shape = 'u8[8192]{0}', space=vmem, size = 0x2000, scoped, tag = 'output window, operand 0']
    %14 = vsyncpa [#allocation4], 0
    %15 = vsyncpa [#allocation7], 0
    %16 = vsyncpa [#allocation5], 0
    %s17 = scalar_lea.sflag [#allocation5], 1
    %18 = vsyncpa %s17, 0
    loop: start=0, step=1, limit=4
    $region2: #{tpu_custom_call.1} parent=1 // loop_pre_header
      _
    $region3: #{tpu_custom_call.1} parent=1 // loop_header
      %s20 = sphi 0, %s24
      %p21 = scmp.ge.s32.totalorder %s20, 4
      %s30 = sphi 0, %s32
      %s33 = sphi 0, %s30
      %s34 = sphi 0, %s33
      %s50 = sphi 0, %s34
      %s54 = sphi 0, %s54
      %s56 = sphi 0, %s54
      %s57 = sphi 0, %s56
      %s71 = sphi 0, %s57
      %s75 = sphi 0, %s75
      %s77 = sphi 0, %s75
      %s78 = sphi 0, %s77
      %s92 = sphi 0, %s78
      %s96 = sphi 0, %s96
      %s98 = sphi 0, %s96
      %s99 = sphi 0, %s98
      %s113 = sphi 0, %s99
      %s117 = sphi 0, %s117
      %s119 = sphi 0, %s117
      %s120 = sphi 0, %s119
      %s134 = sphi 0, %s120
      %s138 = sphi 0, %s138
      %s140 = sphi 0, %s138
      %s141 = sphi 0, %s140
      %s155 = sphi 0, %s141
      %s159 = sphi 0, %s159
      %s161 = sphi 0, %s159
      %s162 = sphi 0, %s161
      %s176 = sphi 0, %s162
      %s180 = sphi 0, %s180
      %s182 = sphi 0, %s180
      %s183 = sphi 0, %s182
      %s197 = sphi 0, %s183
      %s201 = sphi 0, %s201
      %s203 = sphi 0, %s201
      %s204 = sphi 0, %s203
      %s218 = sphi 0, %s204
      %s224 = sphi 0, %s226
      %s227 = sphi 0, %s224
      %s228 = sphi 0, %s227
      %s244 = sphi 0, %s228
    $region4: #{tpu_custom_call.1} parent=1 // loop_header_branch
      %23 = sbr.rel (%p21) target = $region8
    $region5: #{tpu_custom_call.1} parent=1 // loop_body
      %s25 = ssub.s32 %s20, 1
      %s26 = ssub.s32 %s20, 2
      %s27 = sadd.s32 %s20, 1
      %s28 = ssub.s32 %s20, %s27
      %p29 = scmp.eq.s32.totalorder %s28, 0
      %s31 = sadd.s32 %s30, 1
      %s32 = scalar_select %p29, %s30, %s31
      %p35 = pneg %p29
      %p36 = scmp.eq.s32.totalorder %s20, 1
      %p37 = por %p35, %p36
      %p38 = scmp.ne.s32.totalorder %s30, %s33
      %p39 = scmp.eq.s32.totalorder %s20, 0
      %p40 = por %p38, %p39
      %p41 = scmp.ne.s32.totalorder %s30, %s33
      %p42 = scmp.eq.s32.totalorder %s25, 1
      %p43 = por %p41, %p42
      %p44 = scmp.ne.s32.totalorder %s33, %s34
      %p45 = scmp.eq.s32.totalorder %s25, 0
      %p46 = por %p44, %p45
      %p47 = scmp.ne.s32.totalorder %s33, %s34
      %p48 = scmp.eq.s32.totalorder %s26, 1
      %p49 = por %p47, %p48
      %p51 = scmp.ne.s32.totalorder %s34, %s50
      %p52 = scmp.eq.s32.totalorder %s26, 0
      %p53 = por %p51, %p52
      %s55 = sadd.s32 %s54, 1
      %p58 = scmp.eq.s32.totalorder %s20, 1
      %p59 = scmp.ne.s32.totalorder %s54, %s56
      %p60 = scmp.eq.s32.totalorder %s20, 0
      %p61 = por %p59, %p60
      %p62 = scmp.ne.s32.totalorder %s54, %s56
      %p63 = scmp.eq.s32.totalorder %s25, 1
      %p64 = por %p62, %p63
      %p65 = scmp.ne.s32.totalorder %s56, %s57
      %p66 = scmp.eq.s32.totalorder %s25, 0
      %p67 = por %p65, %p66
      %p68 = scmp.ne.s32.totalorder %s56, %s57
      %p69 = scmp.eq.s32.totalorder %s26, 1
      %p70 = por %p68, %p69
      %p72 = scmp.ne.s32.totalorder %s57, %s71
      %p73 = scmp.eq.s32.totalorder %s26, 0
      %p74 = por %p72, %p73
      %s76 = sadd.s32 %s75, 1
      %p79 = scmp.eq.s32.totalorder %s20, 1
      %p80 = scmp.ne.s32.totalorder %s75, %s77
      %p81 = scmp.eq.s32.totalorder %s20, 0
      %p82 = por %p80, %p81
      %p83 = scmp.ne.s32.totalorder %s75, %s77
      %p84 = scmp.eq.s32.totalorder %s25, 1
      %p85 = por %p83, %p84
      %p86 = scmp.ne.s32.totalorder %s77, %s78
      %p87 = scmp.eq.s32.totalorder %s25, 0
      %p88 = por %p86, %p87
      %p89 = scmp.ne.s32.totalorder %s77, %s78
      %p90 = scmp.eq.s32.totalorder %s26, 1
      %p91 = por %p89, %p90
      %p93 = scmp.ne.s32.totalorder %s78, %s92
      %p94 = scmp.eq.s32.totalorder %s26, 0
      %p95 = por %p93, %p94
      %s97 = sadd.s32 %s96, 1
      %p100 = scmp.eq.s32.totalorder %s20, 1
      %p101 = scmp.ne.s32.totalorder %s96, %s98
      %p102 = scmp.eq.s32.totalorder %s20, 0
      %p103 = por %p101, %p102
      %p104 = scmp.ne.s32.totalorder %s96, %s98
      %p105 = scmp.eq.s32.totalorder %s25, 1
      %p106 = por %p104, %p105
      %p107 = scmp.ne.s32.totalorder %s98, %s99
      %p108 = scmp.eq.s32.totalorder %s25, 0
      %p109 = por %p107, %p108
      %p110 = scmp.ne.s32.totalorder %s98, %s99
      %p111 = scmp.eq.s32.totalorder %s26, 1
      %p112 = por %p110, %p111
      %p114 = scmp.ne.s32.totalorder %s99, %s113
      %p115 = scmp.eq.s32.totalorder %s26, 0
      %p116 = por %p114, %p115
      %s118 = sadd.s32 %s117, 1
      %p121 = scmp.eq.s32.totalorder %s20, 1
      %p122 = scmp.ne.s32.totalorder %s117, %s119
      %p123 = scmp.eq.s32.totalorder %s20, 0
      %p124 = por %p122, %p123
      %p125 = scmp.ne.s32.totalorder %s117, %s119
      %p126 = scmp.eq.s32.totalorder %s25, 1
      %p127 = por %p125, %p126
      %p128 = scmp.ne.s32.totalorder %s119, %s120
      %p129 = scmp.eq.s32.totalorder %s25, 0
      %p130 = por %p128, %p129
      %p131 = scmp.ne.s32.totalorder %s119, %s120
      %p132 = scmp.eq.s32.totalorder %s26, 1
      %p133 = por %p131, %p132
      %p135 = scmp.ne.s32.totalorder %s120, %s134
      %p136 = scmp.eq.s32.totalorder %s26, 0
      %p137 = por %p135, %p136
      %s139 = sadd.s32 %s138, 1
      %p142 = scmp.eq.s32.totalorder %s20, 1
      %p143 = scmp.ne.s32.totalorder %s138, %s140
      %p144 = scmp.eq.s32.totalorder %s20, 0
      %p145 = por %p143, %p144
      %p146 = scmp.ne.s32.totalorder %s138, %s140
      %p147 = scmp.eq.s32.totalorder %s25, 1
      %p148 = por %p146, %p147
      %p149 = scmp.ne.s32.totalorder %s140, %s141
      %p150 = scmp.eq.s32.totalorder %s25, 0
      %p151 = por %p149, %p150
      %p152 = scmp.ne.s32.totalorder %s140, %s141
      %p153 = scmp.eq.s32.totalorder %s26, 1
      %p154 = por %p152, %p153
      %p156 = scmp.ne.s32.totalorder %s141, %s155
      %p157 = scmp.eq.s32.totalorder %s26, 0
      %p158 = por %p156, %p157
      %s160 = sadd.s32 %s159, 1
      %p163 = scmp.eq.s32.totalorder %s20, 1
      %p164 = scmp.ne.s32.totalorder %s159, %s161
      %p165 = scmp.eq.s32.totalorder %s20, 0
      %p166 = por %p164, %p165
      %p167 = scmp.ne.s32.totalorder %s159, %s161
      %p168 = scmp.eq.s32.totalorder %s25, 1
      %p169 = por %p167, %p168
      %p170 = scmp.ne.s32.totalorder %s161, %s162
      %p171 = scmp.eq.s32.totalorder %s25, 0
      %p172 = por %p170, %p171
      %p173 = scmp.ne.s32.totalorder %s161, %s162
      %p174 = scmp.eq.s32.totalorder %s26, 1
      %p175 = por %p173, %p174
      %p177 = scmp.ne.s32.totalorder %s162, %s176
      %p178 = scmp.eq.s32.totalorder %s26, 0
      %p179 = por %p177, %p178
      %s181 = sadd.s32 %s180, 1
      %p184 = scmp.eq.s32.totalorder %s20, 1
      %p185 = scmp.ne.s32.totalorder %s180, %s182
      %p186 = scmp.eq.s32.totalorder %s20, 0
      %p187 = por %p185, %p186
      %p188 = scmp.ne.s32.totalorder %s180, %s182
      %p189 = scmp.eq.s32.totalorder %s25, 1
      %p190 = por %p188, %p189
      %p191 = scmp.ne.s32.totalorder %s182, %s183
      %p192 = scmp.eq.s32.totalorder %s25, 0
      %p193 = por %p191, %p192
      %p194 = scmp.ne.s32.totalorder %s182, %s183
      %p195 = scmp.eq.s32.totalorder %s26, 1
      %p196 = por %p194, %p195
      %p198 = scmp.ne.s32.totalorder %s183, %s197
      %p199 = scmp.eq.s32.totalorder %s26, 0
      %p200 = por %p198, %p199
      %s202 = sadd.s32 %s201, 1
      %p205 = scmp.eq.s32.totalorder %s20, 1
      %p206 = scmp.ne.s32.totalorder %s201, %s203
      %p207 = scmp.eq.s32.totalorder %s20, 0
      %p208 = por %p206, %p207
      %p209 = scmp.ne.s32.totalorder %s201, %s203
      %p210 = scmp.eq.s32.totalorder %s25, 1
      %p211 = por %p209, %p210
      %p212 = scmp.ne.s32.totalorder %s203, %s204
      %p213 = scmp.eq.s32.totalorder %s25, 0
      %p214 = por %p212, %p213
      %p215 = scmp.ne.s32.totalorder %s203, %s204
      %p216 = scmp.eq.s32.totalorder %s26, 1
      %p217 = por %p215, %p216
      %p219 = scmp.ne.s32.totalorder %s204, %s218
      %p220 = scmp.eq.s32.totalorder %s26, 0
      %p221 = por %p219, %p220
      %s222 = ssub.s32 %s20, %s27
      %p223 = scmp.eq.s32.totalorder %s222, 0
      %s225 = sadd.s32 %s224, 1
      %s226 = scalar_select %p223, %s224, %s225
      %p229 = pneg %p223
      %p230 = scmp.eq.s32.totalorder %s20, 1
      %p231 = por %p229, %p230
      %p232 = scmp.ne.s32.totalorder %s224, %s227
      %p233 = scmp.eq.s32.totalorder %s20, 0
      %p234 = por %p232, %p233
      %p235 = scmp.ne.s32.totalorder %s224, %s227
      %p236 = scmp.eq.s32.totalorder %s25, 1
      %p237 = por %p235, %p236
      %p238 = scmp.ne.s32.totalorder %s227, %s228
      %p239 = scmp.eq.s32.totalorder %s25, 0
      %p240 = por %p238, %p239
      %p241 = scmp.ne.s32.totalorder %s227, %s228
      %p242 = scmp.eq.s32.totalorder %s26, 1
      %p243 = por %p241, %p242
      %p245 = scmp.ne.s32.totalorder %s228, %s244
      %p246 = scmp.eq.s32.totalorder %s26, 0
      %p247 = por %p245, %p246
      %p248 = scmp.le.s32.totalorder 1, %s20
      %p249 = scmp.lt.s32.totalorder %s20, 3
      %p250 = pnand %p248, %p249
      %p251 = pneg %p250
      // Predicated region
      $region9: #{tpu_custom_call.1} parent=5 // pred_check
        _
      $region10: #{tpu_custom_call.1} parent=5 // pred_check_branch
        %253 = sbr.rel (%p250) target = $region12
      $region11: #{tpu_custom_call.1} parent=5 // pred_region
        %s254 = ssub.s32 %s20, 1
        // Predicated region
        $region13: #{tpu_custom_call.1} parent=11 // pred_check
          %p255 = pneg %p67
        $region14: #{tpu_custom_call.1} parent=11 // pred_check_branch
          %257 = sbr.rel (%p255) target = $region16
        $region15: #{tpu_custom_call.1} parent=11 // pred_region
          _
        $region16: #{tpu_custom_call.1} parent=11 // pred_fallthru
          _
        // Predicated region
        $region17: #{tpu_custom_call.1} parent=11 // pred_check
          %p258 = pneg %p88
        $region18: #{tpu_custom_call.1} parent=11 // pred_check_branch
          %260 = sbr.rel (%p258) target = $region20
        $region19: #{tpu_custom_call.1} parent=11 // pred_region
          _
        $region20: #{tpu_custom_call.1} parent=11 // pred_fallthru
          _
        // Predicated region
        $region21: #{tpu_custom_call.1} parent=11 // pred_check
          %p261 = pneg %p109
        $region22: #{tpu_custom_call.1} parent=11 // pred_check_branch
          %263 = sbr.rel (%p261) target = $region24
        $region23: #{tpu_custom_call.1} parent=11 // pred_region
          _
        $region24: #{tpu_custom_call.1} parent=11 // pred_fallthru
          _
        // Predicated region
        $region25: #{tpu_custom_call.1} parent=11 // pred_check
          %p264 = pneg %p130
        $region26: #{tpu_custom_call.1} parent=11 // pred_check_branch
          %266 = sbr.rel (%p264) target = $region28
        $region27: #{tpu_custom_call.1} parent=11 // pred_region
          %s268 = ssub.s32 128, 128
          %269 = vsyncadd [#allocation4], %s268
          %s270 = sshll.u32 [#allocation3], 4
          %s271 = int_to_ptr.vmem [resolvable:$true] %s270
          %276 = dma.hbm_to_vmem [thread:$0]  %s4, 128, %s271, [#allocation4], 64, 64, 4
        $region28: #{tpu_custom_call.1} parent=11 // pred_fallthru
          _
        // Predicated region
        $region29: #{tpu_custom_call.1} parent=11 // pred_check
          %p277 = pneg %p151
        $region30: #{tpu_custom_call.1} parent=11 // pred_check_branch
          %279 = sbr.rel (%p277) target = $region32
        $region31: #{tpu_custom_call.1} parent=11 // pred_region
          _
        $region32: #{tpu_custom_call.1} parent=11 // pred_fallthru
          _
        // Predicated region
        $region33: #{tpu_custom_call.1} parent=11 // pred_check
          %p280 = pneg %p172
        $region34: #{tpu_custom_call.1} parent=11 // pred_check_branch
          %282 = sbr.rel (%p280) target = $region36
        $region35: #{tpu_custom_call.1} parent=11 // pred_region
          %s284 = ssub.s32 6144, 6144
          %285 = vsyncadd [#allocation7], %s284
          %s286 = sshll.u32 [#allocation6], 4
          %s287 = int_to_ptr.vmem [resolvable:$true] %s286
          %292 = dma.hbm_to_vmem [thread:$0]  %s6, 6144, %s287, [#allocation7], 64, 64, 4
        $region36: #{tpu_custom_call.1} parent=11 // pred_fallthru
          _
        // Predicated region
        $region37: #{tpu_custom_call.1} parent=11 // pred_check
          %p293 = pneg %p193
        $region38: #{tpu_custom_call.1} parent=11 // pred_check_branch
          %295 = sbr.rel (%p293) target = $region40
        $region39: #{tpu_custom_call.1} parent=11 // pred_region
          _
        $region40: #{tpu_custom_call.1} parent=11 // pred_fallthru
          _
        // Predicated region
        $region41: #{tpu_custom_call.1} parent=11 // pred_check
          %p296 = pneg %p214
        $region42: #{tpu_custom_call.1} parent=11 // pred_check_branch
          %298 = sbr.rel (%p296) target = $region44
        $region43: #{tpu_custom_call.1} parent=11 // pred_region
          _
        $region44: #{tpu_custom_call.1} parent=11 // pred_fallthru
          _
      $region12: #{tpu_custom_call.1} parent=5 // pred_fallthru
        _
      %p299 = scmp.lt.s32.totalorder %s20, 2
      // Predicated region
      $region45: #{tpu_custom_call.1} parent=5 // pred_check
        %p300 = pneg %p299
      $region46: #{tpu_custom_call.1} parent=5 // pred_check_branch
        %302 = sbr.rel (%p300) target = $region48
      $region47: #{tpu_custom_call.1} parent=5 // pred_region
        // Predicated region
        $region49: #{tpu_custom_call.1} parent=47 // pred_check
          %p303 = pneg %p40
        $region50: #{tpu_custom_call.1} parent=47 // pred_check_branch
          %305 = sbr.rel (%p303) target = $region52
        $region51: #{tpu_custom_call.1} parent=47 // pred_region
          %p306 = scmp.lt.s32.totalorder %s20, 1
          %s307 = scalar_select %p306, %s20, 1
          %s308 = smul.addr %s307, 8
          %s309 = scalar_lea.vmem %s0, %s308
        $region52: #{tpu_custom_call.1} parent=47 // pred_fallthru
          _
      $region48: #{tpu_custom_call.1} parent=5 // pred_fallthru
        _
      %p310 = scmp.le.s32.totalorder 1, %s20
      %p311 = scmp.lt.s32.totalorder %s20, 3
      %p312 = pnand %p310, %p311
      %p313 = pneg %p312
      // Predicated region
      $region53: #{tpu_custom_call.1} parent=5 // pred_check
        _
      $region54: #{tpu_custom_call.1} parent=5 // pred_check_branch
        %315 = sbr.rel (%p312) target = $region56
      $region55: #{tpu_custom_call.1} parent=5 // pred_region
        %s316 = ssub.s32 %s20, 1
        // Predicated region
        $region57: #{tpu_custom_call.1} parent=55 // pred_check
          %p317 = pneg %p130
        $region58: #{tpu_custom_call.1} parent=55 // pred_check_branch
          %319 = sbr.rel (%p317) target = $region60
        $region59: #{tpu_custom_call.1} parent=55 // pred_region
          %320 = dma.done [#allocation4], 128
        $region60: #{tpu_custom_call.1} parent=55 // pred_fallthru
          _
        // Predicated region
        $region61: #{tpu_custom_call.1} parent=55 // pred_check
          %p321 = pneg %p172
        $region62: #{tpu_custom_call.1} parent=55 // pred_check_branch
          %323 = sbr.rel (%p321) target = $region64
        $region63: #{tpu_custom_call.1} parent=55 // pred_region
          %324 = dma.done [#allocation7], 6144
        $region64: #{tpu_custom_call.1} parent=55 // pred_fallthru
          _
        %p325 = scmp.lt.s32.totalorder %s25, 1
        %s326 = scalar_select %p325, %s25, 1
        %s327 = smul.addr %s326, 8
        %s328 = scalar_lea.vmem %s0, %s327
        %p329 = pneg %p46
        %p330 = pneg %p43
        %p331 = pneg %p67
        %p332 = pneg %p64
        %p333 = pneg %p88
        %p334 = pneg %p85
        %p335 = pneg %p109
        %p336 = pneg %p106
        %p337 = pneg %p130
        %p338 = pneg %p127
        %p339 = pneg %p151
        %p340 = pneg %p148
        %p341 = pneg %p172
        %p342 = pneg %p169
        %p343 = pneg %p193
        %p344 = pneg %p190
        %p345 = pneg %p214
        %p346 = pneg %p211
        %p347 = pneg %p240
        %p348 = pneg %p237
        %s349 = sand.u32 %s227, 1
        %s350 = scalar_lea.sflag [#allocation5], %s349
        %s351 = sand.u32 %s227, 1
        %s352 = smul.addr %s351, 8
        %s353 = scalar_lea.vmem [#allocation8], %s352
        %p354 = scmp.lt.s32.totalorder %s25, 1
        %s355 = scalar_select %p354, %s25, 1
        %s356 = smul.addr %s355, 8
        %s357 = scalar_lea.vmem %s0, %s356
        %v359 = vld [vmem:[%s357] sm:$0xff]
        %v360 = vpack.c.bf16 %v359, %v359
        %v361 = vld [vmem:[%s1] sm:$0xf]
        %vm362 = vcmask 64512
        %v364 = vsel %vm362, %v360, 0
        %vm366 = vcmask 1043456
        %v368 = vsel %vm366, %v361, 0
        %370 = vmatprep.subr.bf16.mxu0 0
        %371 = vmatpush1.bf16.msra.mxu0 %v368
        %372 = vmatprep.subr.bf16.mxu0 0
        %373 = vmatpush1.bf16.msra.mxu0 0
        %374 = vmatprep.subr.bf16.mxu0 0
        %375 = vmatpush1.bf16.msra.mxu0 0
        %376 = vmatprep.subr.bf16.mxu0 0
        %377 = vmatpush1.bf16.msra.mxu0 0
        %378 = vmatprep.subr.bf16.mxu0 0
        %379 = vmatpush1.bf16.msra.mxu0 0
        %380 = vmatprep.subr.bf16.mxu0 0
        %381 = vmatpush1.bf16.msra.mxu0 0
        %382 = vmatprep.subr.bf16.mxu0 0
        %383 = vmatpush1.bf16.msra.mxu0 0
        %384 = vmatprep.subr.bf16.mxu0 0
        %385 = vmatpush1.bf16.msra.mxu0 0
        %386 = vmatprep.subr.bf16.mxu0 0
        %387 = vmatpush1.bf16.msra.mxu0 0
        %388 = vmatprep.subr.bf16.mxu0 0
        %389 = vmatpush1.bf16.msra.mxu0 0
        %390 = vmatprep.subr.bf16.mxu0 0
        %391 = vmatpush1.bf16.msra.mxu0 0
        %392 = vmatprep.subr.bf16.mxu0 0
        %393 = vmatpush1.bf16.msra.mxu0 0
        %394 = vmatprep.subr.bf16.mxu0 0
        %395 = vmatpush1.bf16.msra.mxu0 0
        %396 = vmatprep.subr.bf16.mxu0 0
        %397 = vmatpush1.bf16.msra.mxu0 0
        %398 = vmatprep.subr.bf16.mxu0 0
        %399 = vmatpush1.bf16.msra.mxu0 0
        %400 = vmatprep.subr.bf16.mxu0 0
        %401 = vmatpush1.bf16.msra.mxu0 0
        %402 = vmatprep.mubr.bf16.mxu0 0
        %403 = vmatmul.mubr.bf16.gmra.mrb[0].mxu0 %v364
        %v404 = vpop.f32.mrb[0].mxu0
        %v405 = vadd.f32 0.0, %v404
        %v406 = vpop.f32.mrb[0].mxu0
        %v407 = vpop.f32.mrb[0].mxu0
        %v408 = vpop.f32.mrb[0].mxu0
        %409 = vdwg.mxu0
        %v410 = vld [vmem:[%s2] sm:$0xf]
        %v412 = vsel %vm366, %v410, 0
        %414 = vmatprep.subr.bf16.mxu0 0
        %415 = vmatpush1.bf16.msra.mxu0 %v412
        %416 = vmatprep.subr.bf16.mxu0 0
        %417 = vmatpush1.bf16.msra.mxu0 0
        %418 = vmatprep.subr.bf16.mxu0 0
        %419 = vmatpush1.bf16.msra.mxu0 0
        %420 = vmatprep.subr.bf16.mxu0 0
        %421 = vmatpush1.bf16.msra.mxu0 0
        %422 = vmatprep.subr.bf16.mxu0 0
        %423 = vmatpush1.bf16.msra.mxu0 0
        %424 = vmatprep.subr.bf16.mxu0 0
        %425 = vmatpush1.bf16.msra.mxu0 0
        %426 = vmatprep.subr.bf16.mxu0 0
        %427 = vmatpush1.bf16.msra.mxu0 0
        %428 = vmatprep.subr.bf16.mxu0 0
        %429 = vmatpush1.bf16.msra.mxu0 0
        %430 = vmatprep.subr.bf16.mxu0 0
        %431 = vmatpush1.bf16.msra.mxu0 0
        %432 = vmatprep.subr.bf16.mxu0 0
        %433 = vmatpush1.bf16.msra.mxu0 0
        %434 = vmatprep.subr.bf16.mxu0 0
        %435 = vmatpush1.bf16.msra.mxu0 0
        %436 = vmatprep.subr.bf16.mxu0 0
        %437 = vmatpush1.bf16.msra.mxu0 0
        %438 = vmatprep.subr.bf16.mxu0 0
        %439 = vmatpush1.bf16.msra.mxu0 0
        %440 = vmatprep.subr.bf16.mxu0 0
        %441 = vmatpush1.bf16.msra.mxu0 0
        %442 = vmatprep.subr.bf16.mxu0 0
        %443 = vmatpush1.bf16.msra.mxu0 0
        %444 = vmatprep.subr.bf16.mxu0 0
        %445 = vmatpush1.bf16.msra.mxu0 0
        %446 = vmatprep.mubr.bf16.mxu0 0
        %447 = vmatmul.mubr.bf16.gmra.mrb[0].mxu0 %v364
        %v448 = vpop.f32.mrb[0].mxu0
        %v449 = vadd.f32 0.0, %v448
        %v450 = vpop.f32.mrb[0].mxu0
        %v451 = vpop.f32.mrb[0].mxu0
        %v452 = vpop.f32.mrb[0].mxu0
        %453 = vdwg.mxu0
        %v454 = vld [vmem:[%s3] sm:$0xf]
        %v456 = vsel %vm366, %v454, 0
        %458 = vmatprep.subr.bf16.mxu0 0
        %459 = vmatpush1.bf16.msra.mxu0 %v456
        %460 = vmatprep.subr.bf16.mxu0 0
        %461 = vmatpush1.bf16.msra.mxu0 0
        %462 = vmatprep.subr.bf16.mxu0 0
        %463 = vmatpush1.bf16.msra.mxu0 0
        %464 = vmatprep.subr.bf16.mxu0 0
        %465 = vmatpush1.bf16.msra.mxu0 0
        %466 = vmatprep.subr.bf16.mxu0 0
        %467 = vmatpush1.bf16.msra.mxu0 0
        %468 = vmatprep.subr.bf16.mxu0 0
        %469 = vmatpush1.bf16.msra.mxu0 0
        %470 = vmatprep.subr.bf16.mxu0 0
        %471 = vmatpush1.bf16.msra.mxu0 0
        %472 = vmatprep.subr.bf16.mxu0 0
        %473 = vmatpush1.bf16.msra.mxu0 0
        %474 = vmatprep.subr.bf16.mxu0 0
        %475 = vmatpush1.bf16.msra.mxu0 0
        %476 = vmatprep.subr.bf16.mxu0 0
        %477 = vmatpush1.bf16.msra.mxu0 0
        %478 = vmatprep.subr.bf16.mxu0 0
        %479 = vmatpush1.bf16.msra.mxu0 0
        %480 = vmatprep.subr.bf16.mxu0 0
        %481 = vmatpush1.bf16.msra.mxu0 0
        %482 = vmatprep.subr.bf16.mxu0 0
        %483 = vmatpush1.bf16.msra.mxu0 0
        %484 = vmatprep.subr.bf16.mxu0 0
        %485 = vmatpush1.bf16.msra.mxu0 0
        %486 = vmatprep.subr.bf16.mxu0 0
        %487 = vmatpush1.bf16.msra.mxu0 0
        %488 = vmatprep.subr.bf16.mxu0 0
        %489 = vmatpush1.bf16.msra.mxu0 0
        %490 = vmatprep.mubr.bf16.mxu0 0
        %491 = vmatmul.mubr.bf16.gmra.mrb[0].mxu0 %v364
        %v492 = vpop.f32.mrb[0].mxu0
        %v493 = vadd.f32 0.0, %v492
        %v494 = vpop.f32.mrb[0].mxu0
        %v495 = vpop.f32.mrb[0].mxu0
        %v496 = vpop.f32.mrb[0].mxu0
        %497 = vdwg.mxu0
        %v498 = vpack.c.bf16 %v405, %v405
        %v499 = vpack.c.bf16 %v449, %v449
        %v501 = vsel %vm362, %v498, 0
        %v504 = vsel %vm362, %v499, 0
        %506 = vmatprep.subr.bf16.mxu0 0
        %507 = vmatpush1.bf16.xpose.msra.mxu0 %v504
        %508 = vmatprep.subr.bf16.mxu0 0
        %509 = vmatpush1.bf16.xpose.msra.mxu0 0
        %510 = vmatprep.subr.bf16.mxu0 0
        %511 = vmatpush1.bf16.xpose.msra.mxu0 0
        %512 = vmatprep.subr.bf16.mxu0 0
        %513 = vmatpush1.bf16.xpose.msra.mxu0 0
        %514 = vmatprep.subr.bf16.mxu0 0
        %515 = vmatpush1.bf16.xpose.msra.mxu0 0
        %516 = vmatprep.subr.bf16.mxu0 0
        %517 = vmatpush1.bf16.xpose.msra.mxu0 0
        %518 = vmatprep.subr.bf16.mxu0 0
        %519 = vmatpush1.bf16.xpose.msra.mxu0 0
        %520 = vmatprep.subr.bf16.mxu0 0
        %521 = vmatpush1.bf16.xpose.msra.mxu0 0
        %522 = vmatprep.subr.bf16.mxu0 0
        %523 = vmatpush1.bf16.xpose.msra.mxu0 0
        %524 = vmatprep.subr.bf16.mxu0 0
        %525 = vmatpush1.bf16.xpose.msra.mxu0 0
        %526 = vmatprep.subr.bf16.mxu0 0
        %527 = vmatpush1.bf16.xpose.msra.mxu0 0
        %528 = vmatprep.subr.bf16.mxu0 0
        %529 = vmatpush1.bf16.xpose.msra.mxu0 0
        %530 = vmatprep.subr.bf16.mxu0 0
        %531 = vmatpush1.bf16.xpose.msra.mxu0 0
        %532 = vmatprep.subr.bf16.mxu0 0
        %533 = vmatpush1.bf16.xpose.msra.mxu0 0
        %534 = vmatprep.subr.bf16.mxu0 0
        %535 = vmatpush1.bf16.xpose.msra.mxu0 0
        %536 = vmatprep.subr.bf16.mxu0 0
        %537 = vmatpush1.bf16.xpose.msra.mxu0 0
        %538 = vmatprep.mubr.bf16.mxu0 0
        %539 = vmatmul.mubr.bf16.gmra.mrb[0].mxu0 %v501
        %v540 = vpop.f32.mrb[0].mxu0
        %v541 = vadd.f32 0.0, %v540
        %v542 = vpop.f32.mrb[0].mxu0
        %v543 = vpop.f32.mrb[0].mxu0
        %v544 = vpop.f32.mrb[0].mxu0
        %545 = vdwg.mxu0
        %v546 = vsel %vm362, %v541, -inf
        %547 = vmax.xlane.f32.xlu0 %v546
        %v548 = vpop.xlane.xlu0 %547
        %v549 = vsub.f32 %v541, %v548
        %v550 = vmul.f32 %v549, 1.442695
        %v551 = vpow.pop %v550
        %v552 = vsel %vm362, %v551, 0.0
        %553 = vadd.xlane.f32.xlu0 %v552
        %v554 = vpop.xlane.xlu0 %553
        %v555 = vrcp.pop %v554
        %v556 = vpack.c.bf16 %v551, %v551
        %v557 = vpack.c.bf16 %v493, %v493
        %v559 = vsel %vm362, %v556, 0
        %v562 = vsel %vm366, %v557, 0
        %564 = vmatprep.subr.bf16.mxu0 0
        %565 = vmatpush1.bf16.msra.mxu0 %v562
        %566 = vmatprep.subr.bf16.mxu0 0
        %567 = vmatpush1.bf16.msra.mxu0 0
        %568 = vmatprep.subr.bf16.mxu0 0
        %569 = vmatpush1.bf16.msra.mxu0 0
        %570 = vmatprep.subr.bf16.mxu0 0
        %571 = vmatpush1.bf16.msra.mxu0 0
        %572 = vmatprep.subr.bf16.mxu0 0
        %573 = vmatpush1.bf16.msra.mxu0 0
        %574 = vmatprep.subr.bf16.mxu0 0
        %575 = vmatpush1.bf16.msra.mxu0 0
        %576 = vmatprep.subr.bf16.mxu0 0
        %577 = vmatpush1.bf16.msra.mxu0 0
        %578 = vmatprep.subr.bf16.mxu0 0
        %579 = vmatpush1.bf16.msra.mxu0 0
        %580 = vmatprep.subr.bf16.mxu0 0
        %581 = vmatpush1.bf16.msra.mxu0 0
        %582 = vmatprep.subr.bf16.mxu0 0
        %583 = vmatpush1.bf16.msra.mxu0 0
        %584 = vmatprep.subr.bf16.mxu0 0
        %585 = vmatpush1.bf16.msra.mxu0 0
        %586 = vmatprep.subr.bf16.mxu0 0
        %587 = vmatpush1.bf16.msra.mxu0 0
        %588 = vmatprep.subr.bf16.mxu0 0
        %589 = vmatpush1.bf16.msra.mxu0 0
        %590 = vmatprep.subr.bf16.mxu0 0
        %591 = vmatpush1.bf16.msra.mxu0 0
        %592 = vmatprep.subr.bf16.mxu0 0
        %593 = vmatpush1.bf16.msra.mxu0 0
        %594 = vmatprep.subr.bf16.mxu0 0
        %595 = vmatpush1.bf16.msra.mxu0 0
        %596 = vmatprep.mubr.bf16.mxu0 0
        %597 = vmatmul.mubr.bf16.gmra.mrb[0].mxu0 %v559
        %v598 = vpop.f32.mrb[0].mxu0
        %v599 = vadd.f32 0.0, %v598
        %v600 = vpop.f32.mrb[0].mxu0
        %v601 = vpop.f32.mrb[0].mxu0
        %v602 = vpop.f32.mrb[0].mxu0
        %603 = vdwg.mxu0
        %v604 = vmul.f32 %v599, %v555
        %605 = vst.msk [vmem:[#allocation2] sm:$0xff] %vm362, %v604
        %s606 = scalar_lea.vmem %s1, 4
        %v607 = vld [vmem:[%s606] sm:$0xf]
        %v609 = vsel %vm366, %v607, 0
        %611 = vmatprep.subr.bf16.mxu0 0
        %612 = vmatpush1.bf16.msra.mxu0 %v609
        %613 = vmatprep.subr.bf16.mxu0 0
        %614 = vmatpush1.bf16.msra.mxu0 0
        %615 = vmatprep.subr.bf16.mxu0 0
        %616 = vmatpush1.bf16.msra.mxu0 0
        %617 = vmatprep.subr.bf16.mxu0 0
        %618 = vmatpush1.bf16.msra.mxu0 0
        %619 = vmatprep.subr.bf16.mxu0 0
        %620 = vmatpush1.bf16.msra.mxu0 0
        %621 = vmatprep.subr.bf16.mxu0 0
        %622 = vmatpush1.bf16.msra.mxu0 0
        %623 = vmatprep.subr.bf16.mxu0 0
        %624 = vmatpush1.bf16.msra.mxu0 0
        %625 = vmatprep.subr.bf16.mxu0 0
        %626 = vmatpush1.bf16.msra.mxu0 0
        %627 = vmatprep.subr.bf16.mxu0 0
        %628 = vmatpush1.bf16.msra.mxu0 0
        %629 = vmatprep.subr.bf16.mxu0 0
        %630 = vmatpush1.bf16.msra.mxu0 0
        %631 = vmatprep.subr.bf16.mxu0 0
        %632 = vmatpush1.bf16.msra.mxu0 0
        %633 = vmatprep.subr.bf16.mxu0 0
        %634 = vmatpush1.bf16.msra.mxu0 0
        %635 = vmatprep.subr.bf16.mxu0 0
        %636 = vmatpush1.bf16.msra.mxu0 0
        %637 = vmatprep.subr.bf16.mxu0 0
        %638 = vmatpush1.bf16.msra.mxu0 0
        %639 = vmatprep.subr.bf16.mxu0 0
        %640 = vmatpush1.bf16.msra.mxu0 0
        %641 = vmatprep.subr.bf16.mxu0 0
        %642 = vmatpush1.bf16.msra.mxu0 0
        %643 = vmatprep.mubr.bf16.mxu0 0
        %644 = vmatmul.mubr.bf16.gmra.mrb[0].mxu0 %v364
        %v645 = vpop.f32.mrb[0].mxu0
        %v646 = vadd.f32 0.0, %v645
        %v647 = vpop.f32.mrb[0].mxu0
        %v648 = vpop.f32.mrb[0].mxu0
        %v649 = vpop.f32.mrb[0].mxu0
        %650 = vdwg.mxu0
        %s651 = scalar_lea.vmem %s2, 4
        %v652 = vld [vmem:[%s651] sm:$0xf]
        %v654 = vsel %vm366, %v652, 0
        %656 = vmatprep.subr.bf16.mxu0 0
        %657 = vmatpush1.bf16.msra.mxu0 %v654
        %658 = vmatprep.subr.bf16.mxu0 0
        %659 = vmatpush1.bf16.msra.mxu0 0
        %660 = vmatprep.subr.bf16.mxu0 0
        %661 = vmatpush1.bf16.msra.mxu0 0
        %662 = vmatprep.subr.bf16.mxu0 0
        %663 = vmatpush1.bf16.msra.mxu0 0
        %664 = vmatprep.subr.bf16.mxu0 0
        %665 = vmatpush1.bf16.msra.mxu0 0
        %666 = vmatprep.subr.bf16.mxu0 0
        %667 = vmatpush1.bf16.msra.mxu0 0
        %668 = vmatprep.subr.bf16.mxu0 0
        %669 = vmatpush1.bf16.msra.mxu0 0
        %670 = vmatprep.subr.bf16.mxu0 0
        %671 = vmatpush1.bf16.msra.mxu0 0
        %672 = vmatprep.subr.bf16.mxu0 0
        %673 = vmatpush1.bf16.msra.mxu0 0
        %674 = vmatprep.subr.bf16.mxu0 0
        %675 = vmatpush1.bf16.msra.mxu0 0
        %676 = vmatprep.subr.bf16.mxu0 0
        %677 = vmatpush1.bf16.msra.mxu0 0
        %678 = vmatprep.subr.bf16.mxu0 0
        %679 = vmatpush1.bf16.msra.mxu0 0
        %680 = vmatprep.subr.bf16.mxu0 0
        %681 = vmatpush1.bf16.msra.mxu0 0
        %682 = vmatprep.subr.bf16.mxu0 0
        %683 = vmatpush1.bf16.msra.mxu0 0
        %684 = vmatprep.subr.bf16.mxu0 0
        %685 = vmatpush1.bf16.msra.mxu0 0
        %686 = vmatprep.subr.bf16.mxu0 0
        %687 = vmatpush1.bf16.msra.mxu0 0
        %688 = vmatprep.mubr.bf16.mxu0 0
        %689 = vmatmul.mubr.bf16.gmra.mrb[0].mxu0 %v364
        %v690 = vpop.f32.mrb[0].mxu0
        %v691 = vadd.f32 0.0, %v690
        %v692 = vpop.f32.mrb[0].mxu0
        %v693 = vpop.f32.mrb[0].mxu0
        %v694 = vpop.f32.mrb[0].mxu0
        %695 = vdwg.mxu0
        %s696 = scalar_lea.vmem %s3, 4
        %v697 = vld [vmem:[%s696] sm:$0xf]
        %v699 = vsel %vm366, %v697, 0
        %701 = vmatprep.subr.bf16.mxu0 0
        %702 = vmatpush1.bf16.msra.mxu0 %v699
        %703 = vmatprep.subr.bf16.mxu0 0
        %704 = vmatpush1.bf16.msra.mxu0 0
        %705 = vmatprep.subr.bf16.mxu0 0
        %706 = vmatpush1.bf16.msra.mxu0 0
        %707 = vmatprep.subr.bf16.mxu0 0
        %708 = vmatpush1.bf16.msra.mxu0 0
        %709 = vmatprep.subr.bf16.mxu0 0
        %710 = vmatpush1.bf16.msra.mxu0 0
        %711 = vmatprep.subr.bf16.mxu0 0
        %712 = vmatpush1.bf16.msra.mxu0 0
        %713 = vmatprep.subr.bf16.mxu0 0
        %714 = vmatpush1.bf16.msra.mxu0 0
        %715 = vmatprep.subr.bf16.mxu0 0
        %716 = vmatpush1.bf16.msra.mxu0 0
        %717 = vmatprep.subr.bf16.mxu0 0
        %718 = vmatpush1.bf16.msra.mxu0 0
        %719 = vmatprep.subr.bf16.mxu0 0
        %720 = vmatpush1.bf16.msra.mxu0 0
        %721 = vmatprep.subr.bf16.mxu0 0
        %722 = vmatpush1.bf16.msra.mxu0 0
        %723 = vmatprep.subr.bf16.mxu0 0
        %724 = vmatpush1.bf16.msra.mxu0 0
        %725 = vmatprep.subr.bf16.mxu0 0
        %726 = vmatpush1.bf16.msra.mxu0 0
        %727 = vmatprep.subr.bf16.mxu0 0
        %728 = vmatpush1.bf16.msra.mxu0 0
        %729 = vmatprep.subr.bf16.mxu0 0
        %730 = vmatpush1.bf16.msra.mxu0 0
        %731 = vmatprep.subr.bf16.mxu0 0
        %732 = vmatpush1.bf16.msra.mxu0 0
        %733 = vmatprep.mubr.bf16.mxu0 0
        %734 = vmatmul.mubr.bf16.gmra.mrb[0].mxu0 %v364
        %v735 = vpop.f32.mrb[0].mxu0
        %v736 = vadd.f32 0.0, %v735
        %v737 = vpop.f32.mrb[0].mxu0
        %v738 = vpop.f32.mrb[0].mxu0
        %v739 = vpop.f32.mrb[0].mxu0
        %740 = vdwg.mxu0
        %v741 = vpack.c.bf16 %v646, %v646
        %v742 = vpack.c.bf16 %v691, %v691
        %v744 = vsel %vm362, %v741, 0
        %v747 = vsel %vm362, %v742, 0
        %749 = vmatprep.subr.bf16.mxu0 0
        %750 = vmatpush1.bf16.xpose.msra.mxu0 %v747
        %751 = vmatprep.subr.bf16.mxu0 0
        %752 = vmatpush1.bf16.xpose.msra.mxu0 0
        %753 = vmatprep.subr.bf16.mxu0 0
        %754 = vmatpush1.bf16.xpose.msra.mxu0 0
        %755 = vmatprep.subr.bf16.mxu0 0
        %756 = vmatpush1.bf16.xpose.msra.mxu0 0
        %757 = vmatprep.subr.bf16.mxu0 0
        %758 = vmatpush1.bf16.xpose.msra.mxu0 0
        %759 = vmatprep.subr.bf16.mxu0 0
        %760 = vmatpush1.bf16.xpose.msra.mxu0 0
        %761 = vmatprep.subr.bf16.mxu0 0
        %762 = vmatpush1.bf16.xpose.msra.mxu0 0
        %763 = vmatprep.subr.bf16.mxu0 0
        %764 = vmatpush1.bf16.xpose.msra.mxu0 0
        %765 = vmatprep.subr.bf16.mxu0 0
        %766 = vmatpush1.bf16.xpose.msra.mxu0 0
        %767 = vmatprep.subr.bf16.mxu0 0
        %768 = vmatpush1.bf16.xpose.msra.mxu0 0
        %769 = vmatprep.subr.bf16.mxu0 0
        %770 = vmatpush1.bf16.xpose.msra.mxu0 0
        %771 = vmatprep.subr.bf16.mxu0 0
        %772 = vmatpush1.bf16.xpose.msra.mxu0 0
        %773 = vmatprep.subr.bf16.mxu0 0
        %774 = vmatpush1.bf16.xpose.msra.mxu0 0
        %775 = vmatprep.subr.bf16.mxu0 0
        %776 = vmatpush1.bf16.xpose.msra.mxu0 0
        %777 = vmatprep.subr.bf16.mxu0 0
        %778 = vmatpush1.bf16.xpose.msra.mxu0 0
        %779 = vmatprep.subr.bf16.mxu0 0
        %780 = vmatpush1.bf16.xpose.msra.mxu0 0
        %781 = vmatprep.mubr.bf16.mxu0 0
        %782 = vmatmul.mubr.bf16.gmra.mrb[0].mxu0 %v744
        %v783 = vpop.f32.mrb[0].mxu0
        %v784 = vadd.f32 0.0, %v783
        %v785 = vpop.f32.mrb[0].mxu0
        %v786 = vpop.f32.mrb[0].mxu0
        %v787 = vpop.f32.mrb[0].mxu0
        %788 = vdwg.mxu0
        %v789 = vsel %vm362, %v784, -inf
        %790 = vmax.xlane.f32.xlu0 %v789
        %v791 = vpop.xlane.xlu0 %790
        %v792 = vsub.f32 %v784, %v791
        %v793 = vmul.f32 %v792, 1.442695
        %v794 = vpow.pop %v793
        %v795 = vsel %vm362, %v794, 0.0
        %796 = vadd.xlane.f32.xlu0 %v795
        %v797 = vpop.xlane.xlu0 %796
        %v798 = vrcp.pop %v797
        %v799 = vpack.c.bf16 %v794, %v794
        %v800 = vpack.c.bf16 %v736, %v736
        %v802 = vsel %vm362, %v799, 0
        %v805 = vsel %vm366, %v800, 0
        %807 = vmatprep.subr.bf16.mxu0 0
        %808 = vmatpush1.bf16.msra.mxu0 %v805
        %809 = vmatprep.subr.bf16.mxu0 0
        %810 = vmatpush1.bf16.msra.mxu0 0
        %811 = vmatprep.subr.bf16.mxu0 0
        %812 = vmatpush1.bf16.msra.mxu0 0
        %813 = vmatprep.subr.bf16.mxu0 0
        %814 = vmatpush1.bf16.msra.mxu0 0
        %815 = vmatprep.subr.bf16.mxu0 0
        %816 = vmatpush1.bf16.msra.mxu0 0
        %817 = vmatprep.subr.bf16.mxu0 0
        %818 = vmatpush1.bf16.msra.mxu0 0
        %819 = vmatprep.subr.bf16.mxu0 0
        %820 = vmatpush1.bf16.msra.mxu0 0
        %821 = vmatprep.subr.bf16.mxu0 0
        %822 = vmatpush1.bf16.msra.mxu0 0
        %823 = vmatprep.subr.bf16.mxu0 0
        %824 = vmatpush1.bf16.msra.mxu0 0
        %825 = vmatprep.subr.bf16.mxu0 0
        %826 = vmatpush1.bf16.msra.mxu0 0
        %827 = vmatprep.subr.bf16.mxu0 0
        %828 = vmatpush1.bf16.msra.mxu0 0
        %829 = vmatprep.subr.bf16.mxu0 0
        %830 = vmatpush1.bf16.msra.mxu0 0
        %831 = vmatprep.subr.bf16.mxu0 0
        %832 = vmatpush1.bf16.msra.mxu0 0
        %833 = vmatprep.subr.bf16.mxu0 0
        %834 = vmatpush1.bf16.msra.mxu0 0
        %835 = vmatprep.subr.bf16.mxu0 0
        %836 = vmatpush1.bf16.msra.mxu0 0
        %837 = vmatprep.subr.bf16.mxu0 0
        %838 = vmatpush1.bf16.msra.mxu0 0
        %839 = vmatprep.mubr.bf16.mxu0 0
        %840 = vmatmul.mubr.bf16.gmra.mrb[0].mxu0 %v802
        %v841 = vpop.f32.mrb[0].mxu0
        %v842 = vadd.f32 0.0, %v841
        %v843 = vpop.f32.mrb[0].mxu0
        %v844 = vpop.f32.mrb[0].mxu0
        %v845 = vpop.f32.mrb[0].mxu0
        %846 = vdwg.mxu0
        %v847 = vmul.f32 %v842, %v798
        %849 = vrot.lane.b32.xlu0 %v847, 8
        %v850 = vpop.permute.xlu0 %849
        %vm852 = vcmask 130112
        %853 = vst.msk [vmem:[#allocation2] sm:$0xff] %vm852, %v850
        %s854 = scalar_lea.vmem %s1, 8
        %v855 = vld [vmem:[%s854] sm:$0xf]
        %v857 = vsel %vm366, %v855, 0
        %859 = vmatprep.subr.bf16.mxu0 0
        %860 = vmatpush1.bf16.msra.mxu0 %v857
        %861 = vmatprep.subr.bf16.mxu0 0
        %862 = vmatpush1.bf16.msra.mxu0 0
        %863 = vmatprep.subr.bf16.mxu0 0
        %864 = vmatpush1.bf16.msra.mxu0 0
        %865 = vmatprep.subr.bf16.mxu0 0
        %866 = vmatpush1.bf16.msra.mxu0 0
        %867 = vmatprep.subr.bf16.mxu0 0
        %868 = vmatpush1.bf16.msra.mxu0 0
        %869 = vmatprep.subr.bf16.mxu0 0
        %870 = vmatpush1.bf16.msra.mxu0 0
        %871 = vmatprep.subr.bf16.mxu0 0
        %872 = vmatpush1.bf16.msra.mxu0 0
        %873 = vmatprep.subr.bf16.mxu0 0
        %874 = vmatpush1.bf16.msra.mxu0 0
        %875 = vmatprep.subr.bf16.mxu0 0
        %876 = vmatpush1.bf16.msra.mxu0 0
        %877 = vmatprep.subr.bf16.mxu0 0
        %878 = vmatpush1.bf16.msra.mxu0 0
        %879 = vmatprep.subr.bf16.mxu0 0
        %880 = vmatpush1.bf16.msra.mxu0 0
        %881 = vmatprep.subr.bf16.mxu0 0
        %882 = vmatpush1.bf16.msra.mxu0 0
        %883 = vmatprep.subr.bf16.mxu0 0
        %884 = vmatpush1.bf16.msra.mxu0 0
        %885 = vmatprep.subr.bf16.mxu0 0
        %886 = vmatpush1.bf16.msra.mxu0 0
        %887 = vmatprep.subr.bf16.mxu0 0
        %888 = vmatpush1.bf16.msra.mxu0 0
        %889 = vmatprep.subr.bf16.mxu0 0
        %890 = vmatpush1.bf16.msra.mxu0 0
        %891 = vmatprep.mubr.bf16.mxu0 0
        %892 = vmatmul.mubr.bf16.gmra.mrb[0].mxu0 %v364
        %v893 = vpop.f32.mrb[0].mxu0
        %v894 = vadd.f32 0.0, %v893
        %v895 = vpop.f32.mrb[0].mxu0
        %v896 = vpop.f32.mrb[0].mxu0
        %v897 = vpop.f32.mrb[0].mxu0
        %898 = vdwg.mxu0
        %s899 = scalar_lea.vmem %s2, 8
        %v900 = vld [vmem:[%s899] sm:$0xf]
        %v902 = vsel %vm366, %v900, 0
        %904 = vmatprep.subr.bf16.mxu0 0
        %905 = vmatpush1.bf16.msra.mxu0 %v902
        %906 = vmatprep.subr.bf16.mxu0 0
        %907 = vmatpush1.bf16.msra.mxu0 0
        %908 = vmatprep.subr.bf16.mxu0 0
        %909 = vmatpush1.bf16.msra.mxu0 0
        %910 = vmatprep.subr.bf16.mxu0 0
        %911 = vmatpush1.bf16.msra.mxu0 0
        %912 = vmatprep.subr.bf16.mxu0 0
        %913 = vmatpush1.bf16.msra.mxu0 0
        %914 = vmatprep.subr.bf16.mxu0 0
        %915 = vmatpush1.bf16.msra.mxu0 0
        %916 = vmatprep.subr.bf16.mxu0 0
        %917 = vmatpush1.bf16.msra.mxu0 0
        %918 = vmatprep.subr.bf16.mxu0 0
        %919 = vmatpush1.bf16.msra.mxu0 0
        %920 = vmatprep.subr.bf16.mxu0 0
        %921 = vmatpush1.bf16.msra.mxu0 0
        %922 = vmatprep.subr.bf16.mxu0 0
        %923 = vmatpush1.bf16.msra.mxu0 0
        %924 = vmatprep.subr.bf16.mxu0 0
        %925 = vmatpush1.bf16.msra.mxu0 0
        %926 = vmatprep.subr.bf16.mxu0 0
        %927 = vmatpush1.bf16.msra.mxu0 0
        %928 = vmatprep.subr.bf16.mxu0 0
        %929 = vmatpush1.bf16.msra.mxu0 0
        %930 = vmatprep.subr.bf16.mxu0 0
        %931 = vmatpush1.bf16.msra.mxu0 0
        %932 = vmatprep.subr.bf16.mxu0 0
        %933 = vmatpush1.bf16.msra.mxu0 0
        %934 = vmatprep.subr.bf16.mxu0 0
        %935 = vmatpush1.bf16.msra.mxu0 0
        %936 = vmatprep.mubr.bf16.mxu0 0
        %937 = vmatmul.mubr.bf16.gmra.mrb[0].mxu0 %v364
        %v938 = vpop.f32.mrb[0].mxu0
        %v939 = vadd.f32 0.0, %v938
        %v940 = vpop.f32.mrb[0].mxu0
        %v941 = vpop.f32.mrb[0].mxu0
        %v942 = vpop.f32.mrb[0].mxu0
        %943 = vdwg.mxu0
        %s944 = scalar_lea.vmem %s3, 8
        %v945 = vld [vmem:[%s944] sm:$0xf]
        %v947 = vsel %vm366, %v945, 0
        %949 = vmatprep.subr.bf16.mxu0 0
        %950 = vmatpush1.bf16.msra.mxu0 %v947
        %951 = vmatprep.subr.bf16.mxu0 0
        %952 = vmatpush1.bf16.msra.mxu0 0
        %953 = vmatprep.subr.bf16.mxu0 0
        %954 = vmatpush1.bf16.msra.mxu0 0
        %955 = vmatprep.subr.bf16.mxu0 0
        %956 = vmatpush1.bf16.msra.mxu0 0
        %957 = vmatprep.subr.bf16.mxu0 0
        %958 = vmatpush1.bf16.msra.mxu0 0
        %959 = vmatprep.subr.bf16.mxu0 0
        %960 = vmatpush1.bf16.msra.mxu0 0
        %961 = vmatprep.subr.bf16.mxu0 0
        %962 = vmatpush1.bf16.msra.mxu0 0
        %963 = vmatprep.subr.bf16.mxu0 0
        %964 = vmatpush1.bf16.msra.mxu0 0
        %965 = vmatprep.subr.bf16.mxu0 0
        %966 = vmatpush1.bf16.msra.mxu0 0
        %967 = vmatprep.subr.bf16.mxu0 0
        %968 = vmatpush1.bf16.msra.mxu0 0
        %969 = vmatprep.subr.bf16.mxu0 0
        %970 = vmatpush1.bf16.msra.mxu0 0
        %971 = vmatprep.subr.bf16.mxu0 0
        %972 = vmatpush1.bf16.msra.mxu0 0
        %973 = vmatprep.subr.bf16.mxu0 0
        %974 = vmatpush1.bf16.msra.mxu0 0
        %975 = vmatprep.subr.bf16.mxu0 0
        %976 = vmatpush1.bf16.msra.mxu0 0
        %977 = vmatprep.subr.bf16.mxu0 0
        %978 = vmatpush1.bf16.msra.mxu0 0
        %979 = vmatprep.subr.bf16.mxu0 0
        %980 = vmatpush1.bf16.msra.mxu0 0
        %981 = vmatprep.mubr.bf16.mxu0 0
        %982 = vmatmul.mubr.bf16.gmra.mrb[0].mxu0 %v364
        %v983 = vpop.f32.mrb[0].mxu0
        %v984 = vadd.f32 0.0, %v983
        %v985 = vpop.f32.mrb[0].mxu0
        %v986 = vpop.f32.mrb[0].mxu0
        %v987 = vpop.f32.mrb[0].mxu0
        %988 = vdwg.mxu0
        %v989 = vpack.c.bf16 %v894, %v894
        %v990 = vpack.c.bf16 %v939, %v939
        %v992 = vsel %vm362, %v989, 0
        %v995 = vsel %vm362, %v990, 0
        %997 = vmatprep.subr.bf16.mxu0 0
        %998 = vmatpush1.bf16.xpose.msra.mxu0 %v995
        %999 = vmatprep.subr.bf16.mxu0 0
        %1000 = vmatpush1.bf16.xpose.msra.mxu0 0
        %1001 = vmatprep.subr.bf16.mxu0 0
        %1002 = vmatpush1.bf16.xpose.msra.mxu0 0
        %1003 = vmatprep.subr.bf16.mxu0 0
        %1004 = vmatpush1.bf16.xpose.msra.mxu0 0
        %1005 = vmatprep.subr.bf16.mxu0 0
        %1006 = vmatpush1.bf16.xpose.msra.mxu0 0
        %1007 = vmatprep.subr.bf16.mxu0 0
        %1008 = vmatpush1.bf16.xpose.msra.mxu0 0
        %1009 = vmatprep.subr.bf16.mxu0 0
        %1010 = vmatpush1.bf16.xpose.msra.mxu0 0
        %1011 = vmatprep.subr.bf16.mxu0 0
        %1012 = vmatpush1.bf16.xpose.msra.mxu0 0
        %1013 = vmatprep.subr.bf16.mxu0 0
        %1014 = vmatpush1.bf16.xpose.msra.mxu0 0
        %1015 = vmatprep.subr.bf16.mxu0 0
        %1016 = vmatpush1.bf16.xpose.msra.mxu0 0
        %1017 = vmatprep.subr.bf16.mxu0 0
        %1018 = vmatpush1.bf16.xpose.msra.mxu0 0
        %1019 = vmatprep.subr.bf16.mxu0 0
        %1020 = vmatpush1.bf16.xpose.msra.mxu0 0
        %1021 = vmatprep.subr.bf16.mxu0 0
        %1022 = vmatpush1.bf16.xpose.msra.mxu0 0
        %1023 = vmatprep.subr.bf16.mxu0 0
        %1024 = vmatpush1.bf16.xpose.msra.mxu0 0
        %1025 = vmatprep.subr.bf16.mxu0 0
        %1026 = vmatpush1.bf16.xpose.msra.mxu0 0
        %1027 = vmatprep.subr.bf16.mxu0 0
        %1028 = vmatpush1.bf16.xpose.msra.mxu0 0
        %1029 = vmatprep.mubr.bf16.mxu0 0
        %1030 = vmatmul.mubr.bf16.gmra.mrb[0].mxu0 %v992
        %v1031 = vpop.f32.mrb[0].mxu0
        %v1032 = vadd.f32 0.0, %v1031
        %v1033 = vpop.f32.mrb[0].mxu0
        %v1034 = vpop.f32.mrb[0].mxu0
        %v1035 = vpop.f32.mrb[0].mxu0
        %1036 = vdwg.mxu0
        %v1037 = vsel %vm362, %v1032, -inf
        %1038 = vmax.xlane.f32.xlu0 %v1037
        %v1039 = vpop.xlane.xlu0 %1038
        %v1040 = vsub.f32 %v1032, %v1039
        %v1041 = vmul.f32 %v1040, 1.442695
        %v1042 = vpow.pop %v1041
        %v1043 = vsel %vm362, %v1042, 0.0
        %1044 = vadd.xlane.f32.xlu0 %v1043
        %v1045 = vpop.xlane.xlu0 %1044
        %v1046 = vrcp.pop %v1045
        %v1047 = vpack.c.bf16 %v1042, %v1042
        %v1048 = vpack.c.bf16 %v984, %v984
        %v1050 = vsel %vm362, %v1047, 0
        %v1053 = vsel %vm366, %v1048, 0
        %1055 = vmatprep.subr.bf16.mxu0 0
        %1056 = vmatpush1.bf16.msra.mxu0 %v1053
        %1057 = vmatprep.subr.bf16.mxu0 0
        %1058 = vmatpush1.bf16.msra.mxu0 0
        %1059 = vmatprep.subr.bf16.mxu0 0
        %1060 = vmatpush1.bf16.msra.mxu0 0
        %1061 = vmatprep.subr.bf16.mxu0 0
        %1062 = vmatpush1.bf16.msra.mxu0 0
        %1063 = vmatprep.subr.bf16.mxu0 0
        %1064 = vmatpush1.bf16.msra.mxu0 0
        %1065 = vmatprep.subr.bf16.mxu0 0
        %1066 = vmatpush1.bf16.msra.mxu0 0
        %1067 = vmatprep.subr.bf16.mxu0 0
        %1068 = vmatpush1.bf16.msra.mxu0 0
        %1069 = vmatprep.subr.bf16.mxu0 0
        %1070 = vmatpush1.bf16.msra.mxu0 0
        %1071 = vmatprep.subr.bf16.mxu0 0
        %1072 = vmatpush1.bf16.msra.mxu0 0
        %1073 = vmatprep.subr.bf16.mxu0 0
        %1074 = vmatpush1.bf16.msra.mxu0 0
        %1075 = vmatprep.subr.bf16.mxu0 0
        %1076 = vmatpush1.bf16.msra.mxu0 0
        %1077 = vmatprep.subr.bf16.mxu0 0
        %1078 = vmatpush1.bf16.msra.mxu0 0
        %1079 = vmatprep.subr.bf16.mxu0 0
        %1080 = vmatpush1.bf16.msra.mxu0 0
        %1081 = vmatprep.subr.bf16.mxu0 0
        %1082 = vmatpush1.bf16.msra.mxu0 0
        %1083 = vmatprep.subr.bf16.mxu0 0
        %1084 = vmatpush1.bf16.msra.mxu0 0
        %1085 = vmatprep.subr.bf16.mxu0 0
        %1086 = vmatpush1.bf16.msra.mxu0 0
        %1087 = vmatprep.mubr.bf16.mxu0 0
        %1088 = vmatmul.mubr.bf16.gmra.mrb[0].mxu0 %v1050
        %v1089 = vpop.f32.mrb[0].mxu0
        %v1090 = vadd.f32 0.0, %v1089
        %v1091 = vpop.f32.mrb[0].mxu0
        %v1092 = vpop.f32.mrb[0].mxu0
        %v1093 = vpop.f32.mrb[0].mxu0
        %1094 = vdwg.mxu0
        %v1095 = vmul.f32 %v1090, %v1046
        %1097 = vrot.lane.b32.xlu0 %v1095, 16
        %v1098 = vpop.permute.xlu0 %1097
        %vm1100 = vcmask 195712
        %1101 = vst.msk [vmem:[#allocation2] sm:$0xff] %vm1100, %v1098
        %s1102 = scalar_lea.vmem %s1, 12
        %v1103 = vld [vmem:[%s1102] sm:$0xf]
        %v1105 = vsel %vm366, %v1103, 0
        %1107 = vmatprep.subr.bf16.mxu0 0
        %1108 = vmatpush1.bf16.msra.mxu0 %v1105
        %1109 = vmatprep.subr.bf16.mxu0 0
        %1110 = vmatpush1.bf16.msra.mxu0 0
        %1111 = vmatprep.subr.bf16.mxu0 0
        %1112 = vmatpush1.bf16.msra.mxu0 0
        %1113 = vmatprep.subr.bf16.mxu0 0
        %1114 = vmatpush1.bf16.msra.mxu0 0
        %1115 = vmatprep.subr.bf16.mxu0 0
        %1116 = vmatpush1.bf16.msra.mxu0 0
        %1117 = vmatprep.subr.bf16.mxu0 0
        %1118 = vmatpush1.bf16.msra.mxu0 0
        %1119 = vmatprep.subr.bf16.mxu0 0
        %1120 = vmatpush1.bf16.msra.mxu0 0
        %1121 = vmatprep.subr.bf16.mxu0 0
        %1122 = vmatpush1.bf16.msra.mxu0 0
        %1123 = vmatprep.subr.bf16.mxu0 0
        %1124 = vmatpush1.bf16.msra.mxu0 0
        %1125 = vmatprep.subr.bf16.mxu0 0
        %1126 = vmatpush1.bf16.msra.mxu0 0
        %1127 = vmatprep.subr.bf16.mxu0 0
        %1128 = vmatpush1.bf16.msra.mxu0 0
        %1129 = vmatprep.subr.bf16.mxu0 0
        %1130 = vmatpush1.bf16.msra.mxu0 0
        %1131 = vmatprep.subr.bf16.mxu0 0
        %1132 = vmatpush1.bf16.msra.mxu0 0
        %1133 = vmatprep.subr.bf16.mxu0 0
        %1134 = vmatpush1.bf16.msra.mxu0 0
        %1135 = vmatprep.subr.bf16.mxu0 0
        %1136 = vmatpush1.bf16.msra.mxu0 0
        %1137 = vmatprep.subr.bf16.mxu0 0
        %1138 = vmatpush1.bf16.msra.mxu0 0
        %1139 = vmatprep.mubr.bf16.mxu0 0
        %1140 = vmatmul.mubr.bf16.gmra.mrb[0].mxu0 %v364
        %v1141 = vpop.f32.mrb[0].mxu0
        %v1142 = vadd.f32 0.0, %v1141
        %v1143 = vpop.f32.mrb[0].mxu0
        %v1144 = vpop.f32.mrb[0].mxu0
        %v1145 = vpop.f32.mrb[0].mxu0
        %1146 = vdwg.mxu0
        %s1147 = scalar_lea.vmem %s2, 12
        %v1148 = vld [vmem:[%s1147] sm:$0xf]
        %v1150 = vsel %vm366, %v1148, 0
        %1152 = vmatprep.subr.bf16.mxu0 0
        %1153 = vmatpush1.bf16.msra.mxu0 %v1150
        %1154 = vmatprep.subr.bf16.mxu0 0
        %1155 = vmatpush1.bf16.msra.mxu0 0
        %1156 = vmatprep.subr.bf16.mxu0 0
        %1157 = vmatpush1.bf16.msra.mxu0 0
        %1158 = vmatprep.subr.bf16.mxu0 0
        %1159 = vmatpush1.bf16.msra.mxu0 0
        %1160 = vmatprep.subr.bf16.mxu0 0
        %1161 = vmatpush1.bf16.msra.mxu0 0
        %1162 = vmatprep.subr.bf16.mxu0 0
        %1163 = vmatpush1.bf16.msra.mxu0 0
        %1164 = vmatprep.subr.bf16.mxu0 0
        %1165 = vmatpush1.bf16.msra.mxu0 0
        %1166 = vmatprep.subr.bf16.mxu0 0
        %1167 = vmatpush1.bf16.msra.mxu0 0
        %1168 = vmatprep.subr.bf16.mxu0 0
        %1169 = vmatpush1.bf16.msra.mxu0 0
        %1170 = vmatprep.subr.bf16.mxu0 0
        %1171 = vmatpush1.bf16.msra.mxu0 0
        %1172 = vmatprep.subr.bf16.mxu0 0
        %1173 = vmatpush1.bf16.msra.mxu0 0
        %1174 = vmatprep.subr.bf16.mxu0 0
        %1175 = vmatpush1.bf16.msra.mxu0 0
        %1176 = vmatprep.subr.bf16.mxu0 0
        %1177 = vmatpush1.bf16.msra.mxu0 0
        %1178 = vmatprep.subr.bf16.mxu0 0
        %1179 = vmatpush1.bf16.msra.mxu0 0
        %1180 = vmatprep.subr.bf16.mxu0 0
        %1181 = vmatpush1.bf16.msra.mxu0 0
        %1182 = vmatprep.subr.bf16.mxu0 0
        %1183 = vmatpush1.bf16.msra.mxu0 0
        %1184 = vmatprep.mubr.bf16.mxu0 0
        %1185 = vmatmul.mubr.bf16.gmra.mrb[0].mxu0 %v364
        %v1186 = vpop.f32.mrb[0].mxu0
        %v1187 = vadd.f32 0.0, %v1186
        %v1188 = vpop.f32.mrb[0].mxu0
        %v1189 = vpop.f32.mrb[0].mxu0
        %v1190 = vpop.f32.mrb[0].mxu0
        %1191 = vdwg.mxu0
        %s1192 = scalar_lea.vmem %s3, 12
        %v1193 = vld [vmem:[%s1192] sm:$0xf]
        %v1195 = vsel %vm366, %v1193, 0
        %1197 = vmatprep.subr.bf16.mxu0 0
        %1198 = vmatpush1.bf16.msra.mxu0 %v1195
        %1199 = vmatprep.subr.bf16.mxu0 0
        %1200 = vmatpush1.bf16.msra.mxu0 0
        %1201 = vmatprep.subr.bf16.mxu0 0
        %1202 = vmatpush1.bf16.msra.mxu0 0
        %1203 = vmatprep.subr.bf16.mxu0 0
        %1204 = vmatpush1.bf16.msra.mxu0 0
        %1205 = vmatprep.subr.bf16.mxu0 0
        %1206 = vmatpush1.bf16.msra.mxu0 0
        %1207 = vmatprep.subr.bf16.mxu0 0
        %1208 = vmatpush1.bf16.msra.mxu0 0
        %1209 = vmatprep.subr.bf16.mxu0 0
        %1210 = vmatpush1.bf16.msra.mxu0 0
        %1211 = vmatprep.subr.bf16.mxu0 0
        %1212 = vmatpush1.bf16.msra.mxu0 0
        %1213 = vmatprep.subr.bf16.mxu0 0
        %1214 = vmatpush1.bf16.msra.mxu0 0
        %1215 = vmatprep.subr.bf16.mxu0 0
        %1216 = vmatpush1.bf16.msra.mxu0 0
        %1217 = vmatprep.subr.bf16.mxu0 0
        %1218 = vmatpush1.bf16.msra.mxu0 0
        %1219 = vmatprep.subr.bf16.mxu0 0
        %1220 = vmatpush1.bf16.msra.mxu0 0
        %1221 = vmatprep.subr.bf16.mxu0 0
        %1222 = vmatpush1.bf16.msra.mxu0 0
        %1223 = vmatprep.subr.bf16.mxu0 0
        %1224 = vmatpush1.bf16.msra.mxu0 0
        %1225 = vmatprep.subr.bf16.mxu0 0
        %1226 = vmatpush1.bf16.msra.mxu0 0
        %1227 = vmatprep.subr.bf16.mxu0 0
        %1228 = vmatpush1.bf16.msra.mxu0 0
        %1229 = vmatprep.mubr.bf16.mxu0 0
        %1230 = vmatmul.mubr.bf16.gmra.mrb[0].mxu0 %v364
        %v1231 = vpop.f32.mrb[0].mxu0
        %v1232 = vadd.f32 0.0, %v1231
        %v1233 = vpop.f32.mrb[0].mxu0
        %v1234 = vpop.f32.mrb[0].mxu0
        %v1235 = vpop.f32.mrb[0].mxu0
        %1236 = vdwg.mxu0
        %v1237 = vpack.c.bf16 %v1142, %v1142
        %v1238 = vpack.c.bf16 %v1187, %v1187
        %v1240 = vsel %vm362, %v1237, 0
        %v1243 = vsel %vm362, %v1238, 0
        %1245 = vmatprep.subr.bf16.mxu0 0
        %1246 = vmatpush1.bf16.xpose.msra.mxu0 %v1243
        %1247 = vmatprep.subr.bf16.mxu0 0
        %1248 = vmatpush1.bf16.xpose.msra.mxu0 0
        %1249 = vmatprep.subr.bf16.mxu0 0
        %1250 = vmatpush1.bf16.xpose.msra.mxu0 0
        %1251 = vmatprep.subr.bf16.mxu0 0
        %1252 = vmatpush1.bf16.xpose.msra.mxu0 0
        %1253 = vmatprep.subr.bf16.mxu0 0
        %1254 = vmatpush1.bf16.xpose.msra.mxu0 0
        %1255 = vmatprep.subr.bf16.mxu0 0
        %1256 = vmatpush1.bf16.xpose.msra.mxu0 0
        %1257 = vmatprep.subr.bf16.mxu0 0
        %1258 = vmatpush1.bf16.xpose.msra.mxu0 0
        %1259 = vmatprep.subr.bf16.mxu0 0
        %1260 = vmatpush1.bf16.xpose.msra.mxu0 0
        %1261 = vmatprep.subr.bf16.mxu0 0
        %1262 = vmatpush1.bf16.xpose.msra.mxu0 0
        %1263 = vmatprep.subr.bf16.mxu0 0
        %1264 = vmatpush1.bf16.xpose.msra.mxu0 0
        %1265 = vmatprep.subr.bf16.mxu0 0
        %1266 = vmatpush1.bf16.xpose.msra.mxu0 0
        %1267 = vmatprep.subr.bf16.mxu0 0
        %1268 = vmatpush1.bf16.xpose.msra.mxu0 0
        %1269 = vmatprep.subr.bf16.mxu0 0
        %1270 = vmatpush1.bf16.xpose.msra.mxu0 0
        %1271 = vmatprep.subr.bf16.mxu0 0
        %1272 = vmatpush1.bf16.xpose.msra.mxu0 0
        %1273 = vmatprep.subr.bf16.mxu0 0
        %1274 = vmatpush1.bf16.xpose.msra.mxu0 0
        %1275 = vmatprep.subr.bf16.mxu0 0
        %1276 = vmatpush1.bf16.xpose.msra.mxu0 0
        %1277 = vmatprep.mubr.bf16.mxu0 0
        %1278 = vmatmul.mubr.bf16.gmra.mrb[0].mxu0 %v1240
        %v1279 = vpop.f32.mrb[0].mxu0
        %v1280 = vadd.f32 0.0, %v1279
        %v1281 = vpop.f32.mrb[0].mxu0
        %v1282 = vpop.f32.mrb[0].mxu0
        %v1283 = vpop.f32.mrb[0].mxu0
        %1284 = vdwg.mxu0
        %v1285 = vsel %vm362, %v1280, -inf
        %1286 = vmax.xlane.f32.xlu0 %v1285
        %v1287 = vpop.xlane.xlu0 %1286
        %v1288 = vsub.f32 %v1280, %v1287
        %v1289 = vmul.f32 %v1288, 1.442695
        %v1290 = vpow.pop %v1289
        %v1291 = vsel %vm362, %v1290, 0.0
        %1292 = vadd.xlane.f32.xlu0 %v1291
        %v1293 = vpop.xlane.xlu0 %1292
        %v1294 = vrcp.pop %v1293
        %v1295 = vpack.c.bf16 %v1290, %v1290
        %v1296 = vpack.c.bf16 %v1232, %v1232
        %v1298 = vsel %vm362, %v1295, 0
        %v1301 = vsel %vm366, %v1296, 0
        %1303 = vmatprep.subr.bf16.mxu0 0
        %1304 = vmatpush1.bf16.msra.mxu0 %v1301
        %1305 = vmatprep.subr.bf16.mxu0 0
        %1306 = vmatpush1.bf16.msra.mxu0 0
        %1307 = vmatprep.subr.bf16.mxu0 0
        %1308 = vmatpush1.bf16.msra.mxu0 0
        %1309 = vmatprep.subr.bf16.mxu0 0
        %1310 = vmatpush1.bf16.msra.mxu0 0
        %1311 = vmatprep.subr.bf16.mxu0 0
        %1312 = vmatpush1.bf16.msra.mxu0 0
        %1313 = vmatprep.subr.bf16.mxu0 0
        %1314 = vmatpush1.bf16.msra.mxu0 0
        %1315 = vmatprep.subr.bf16.mxu0 0
        %1316 = vmatpush1.bf16.msra.mxu0 0
        %1317 = vmatprep.subr.bf16.mxu0 0
        %1318 = vmatpush1.bf16.msra.mxu0 0
        %1319 = vmatprep.subr.bf16.mxu0 0
        %1320 = vmatpush1.bf16.msra.mxu0 0
        %1321 = vmatprep.subr.bf16.mxu0 0
        %1322 = vmatpush1.bf16.msra.mxu0 0
        %1323 = vmatprep.subr.bf16.mxu0 0
        %1324 = vmatpush1.bf16.msra.mxu0 0
        %1325 = vmatprep.subr.bf16.mxu0 0
        %1326 = vmatpush1.bf16.msra.mxu0 0
        %1327 = vmatprep.subr.bf16.mxu0 0
        %1328 = vmatpush1.bf16.msra.mxu0 0
        %1329 = vmatprep.subr.bf16.mxu0 0
        %1330 = vmatpush1.bf16.msra.mxu0 0
        %1331 = vmatprep.subr.bf16.mxu0 0
        %1332 = vmatpush1.bf16.msra.mxu0 0
        %1333 = vmatprep.subr.bf16.mxu0 0
        %1334 = vmatpush1.bf16.msra.mxu0 0
        %1335 = vmatprep.mubr.bf16.mxu0 0
        %1336 = vmatmul.mubr.bf16.gmra.mrb[0].mxu0 %v1298
        %v1337 = vpop.f32.mrb[0].mxu0
        %v1338 = vadd.f32 0.0, %v1337
        %v1339 = vpop.f32.mrb[0].mxu0
        %v1340 = vpop.f32.mrb[0].mxu0
        %v1341 = vpop.f32.mrb[0].mxu0
        %1342 = vdwg.mxu0
        %v1343 = vmul.f32 %v1338, %v1294
        %1345 = vrot.lane.b32.xlu0 %v1343, 24
        %v1346 = vpop.permute.xlu0 %1345
        %vm1348 = vcmask 261312
        %1349 = vst.msk [vmem:[#allocation2] sm:$0xff] %vm1348, %v1346
        %v1350 = vld [vmem:[#allocation2] sm:$0xff]
        %v1351 = vpack.c.bf16 %v1350, %v1350
        %v1352 = vld [vmem:[%s7] sm:$0xff]
        %v1353 = vld [vmem:[#allocation6] sm:$0xf]
        %v1354 = vld [vmem:[#allocation6 + $0x4] sm:$0xf]
        %v1355 = vld [vmem:[#allocation6 + $0x8] sm:$0xf]
        %v1356 = vld [vmem:[#allocation6 + $0xc] sm:$0xf]
        %v1361 = vunpack.c.l.b16 %v1353
        %v1362 = vunpack.c.l.b16 %v1354
        %v1363 = vunpack.c.l.b16 %v1355
        %v1364 = vunpack.c.l.b16 %v1356
        %v1365 = vpack.c.b16 %v1362, %v1361
        %v1366 = vpack.c.b16 %v1364, %v1363
        %vm1369 = vcmask 261120
        %v1371 = vsel %vm1369, %v1351, 0
        %1373 = vmatprep.subr.bf16.mxu0 0
        %1374 = vmatpush1.bf16.msra.mxu0 %v1365
        %1375 = vmatprep.subr.bf16.mxu0 0
        %1376 = vmatpush1.bf16.msra.mxu0 %v1366
        %1377 = vmatprep.subr.bf16.mxu0 0
        %1378 = vmatpush1.bf16.msra.mxu0 0
        %1379 = vmatprep.subr.bf16.mxu0 0
        %1380 = vmatpush1.bf16.msra.mxu0 0
        %1381 = vmatprep.subr.bf16.mxu0 0
        %1382 = vmatpush1.bf16.msra.mxu0 0
        %1383 = vmatprep.subr.bf16.mxu0 0
        %1384 = vmatpush1.bf16.msra.mxu0 0
        %1385 = vmatprep.subr.bf16.mxu0 0
        %1386 = vmatpush1.bf16.msra.mxu0 0
        %1387 = vmatprep.subr.bf16.mxu0 0
        %1388 = vmatpush1.bf16.msra.mxu0 0
        %1389 = vmatprep.subr.bf16.mxu0 0
        %1390 = vmatpush1.bf16.msra.mxu0 0
        %1391 = vmatprep.subr.bf16.mxu0 0
        %1392 = vmatpush1.bf16.msra.mxu0 0
        %1393 = vmatprep.subr.bf16.mxu0 0
        %1394 = vmatpush1.bf16.msra.mxu0 0
        %1395 = vmatprep.subr.bf16.mxu0 0
        %1396 = vmatpush1.bf16.msra.mxu0 0
        %1397 = vmatprep.subr.bf16.mxu0 0
        %1398 = vmatpush1.bf16.msra.mxu0 0
        %1399 = vmatprep.subr.bf16.mxu0 0
        %1400 = vmatpush1.bf16.msra.mxu0 0
        %1401 = vmatprep.subr.bf16.mxu0 0
        %1402 = vmatpush1.bf16.msra.mxu0 0
        %1403 = vmatprep.subr.bf16.mxu0 0
        %1404 = vmatpush1.bf16.msra.mxu0 0
        %1405 = vmatprep.mubr.bf16.mxu0 0
        %1406 = vmatmul.mubr.bf16.gmra.mrb[0].mxu0 %v1371
        %v1407 = vpop.f32.mrb[0].mxu0
        %v1408 = vadd.f32 0.0, %v1407
        %v1409 = vpop.f32.mrb[0].mxu0
        %v1410 = vpop.f32.mrb[0].mxu0
        %v1411 = vpop.f32.mrb[0].mxu0
        %1412 = vdwg.mxu0
        %v1413 = vld [vmem:[%s5] sm:$0xff]
        %1415 = vset.pattern.permute.xlu0 0
        %1416 = vperm.xlu0 %1415, %v1413
        %v1417 = vpop.permute.xlu0 %1416
        %v1419 = vmul.f32 %v1417, %v1408
        %v1420 = vadd.f32 %v1352, %v1419
        %s1421 = scalar_lea.vmem [#allocation6], 16
        %v1422 = vld [vmem:[%s1421] sm:$0xf]
        %v1423 = vld [vmem:[%s1421 + $0x4] sm:$0xf]
        %v1424 = vld [vmem:[%s1421 + $0x8] sm:$0xf]
        %v1425 = vld [vmem:[%s1421 + $0xc] sm:$0xf]
        %v1430 = vunpack.c.l.b16 %v1422
        %v1431 = vunpack.c.l.b16 %v1423
        %v1432 = vunpack.c.l.b16 %v1424
        %v1433 = vunpack.c.l.b16 %v1425
        %v1434 = vpack.c.b16 %v1431, %v1430
        %v1435 = vpack.c.b16 %v1433, %v1432
        %1438 = vmatprep.subr.bf16.mxu0 0
        %1439 = vmatpush1.bf16.msra.mxu0 %v1434
        %1440 = vmatprep.subr.bf16.mxu0 0
        %1441 = vmatpush1.bf16.msra.mxu0 %v1435
        %1442 = vmatprep.subr.bf16.mxu0 0
        %1443 = vmatpush1.bf16.msra.mxu0 0
        %1444 = vmatprep.subr.bf16.mxu0 0
        %1445 = vmatpush1.bf16.msra.mxu0 0
        %1446 = vmatprep.subr.bf16.mxu0 0
        %1447 = vmatpush1.bf16.msra.mxu0 0
        %1448 = vmatprep.subr.bf16.mxu0 0
        %1449 = vmatpush1.bf16.msra.mxu0 0
        %1450 = vmatprep.subr.bf16.mxu0 0
        %1451 = vmatpush1.bf16.msra.mxu0 0
        %1452 = vmatprep.subr.bf16.mxu0 0
        %1453 = vmatpush1.bf16.msra.mxu0 0
        %1454 = vmatprep.subr.bf16.mxu0 0
        %1455 = vmatpush1.bf16.msra.mxu0 0
        %1456 = vmatprep.subr.bf16.mxu0 0
        %1457 = vmatpush1.bf16.msra.mxu0 0
        %1458 = vmatprep.subr.bf16.mxu0 0
        %1459 = vmatpush1.bf16.msra.mxu0 0
        %1460 = vmatprep.subr.bf16.mxu0 0
        %1461 = vmatpush1.bf16.msra.mxu0 0
        %1462 = vmatprep.subr.bf16.mxu0 0
        %1463 = vmatpush1.bf16.msra.mxu0 0
        %1464 = vmatprep.subr.bf16.mxu0 0
        %1465 = vmatpush1.bf16.msra.mxu0 0
        %1466 = vmatprep.subr.bf16.mxu0 0
        %1467 = vmatpush1.bf16.msra.mxu0 0
        %1468 = vmatprep.subr.bf16.mxu0 0
        %1469 = vmatpush1.bf16.msra.mxu0 0
        %1470 = vmatprep.mubr.bf16.mxu0 0
        %1471 = vmatmul.mubr.bf16.gmra.mrb[0].mxu0 %v1371
        %v1472 = vpop.f32.mrb[0].mxu0
        %v1473 = vadd.f32 0.0, %v1472
        %v1474 = vpop.f32.mrb[0].mxu0
        %v1475 = vpop.f32.mrb[0].mxu0
        %v1476 = vpop.f32.mrb[0].mxu0
        %1477 = vdwg.mxu0
        %s1478 = scalar_lea.vmem %s5, 8
        %v1479 = vld [vmem:[%s1478] sm:$0xff]
        %1481 = vset.pattern.permute.xlu0 0
        %1482 = vperm.xlu0 %1481, %v1479
        %v1483 = vpop.permute.xlu0 %1482
        %v1485 = vmul.f32 %v1483, %v1473
        %v1486 = vadd.f32 %v1420, %v1485
        %s1487 = scalar_lea.vmem [#allocation6], 32
        %v1488 = vld [vmem:[%s1487] sm:$0xf]
        %v1489 = vld [vmem:[%s1487 + $0x4] sm:$0xf]
        %v1490 = vld [vmem:[%s1487 + $0x8] sm:$0xf]
        %v1491 = vld [vmem:[%s1487 + $0xc] sm:$0xf]
        %v1496 = vunpack.c.l.b16 %v1488
        %v1497 = vunpack.c.l.b16 %v1489
        %v1498 = vunpack.c.l.b16 %v1490
        %v1499 = vunpack.c.l.b16 %v1491
        %v1500 = vpack.c.b16 %v1497, %v1496
        %v1501 = vpack.c.b16 %v1499, %v1498
        %1504 = vmatprep.subr.bf16.mxu0 0
        %1505 = vmatpush1.bf16.msra.mxu0 %v1500
        %1506 = vmatprep.subr.bf16.mxu0 0
        %1507 = vmatpush1.bf16.msra.mxu0 %v1501
        %1508 = vmatprep.subr.bf16.mxu0 0
        %1509 = vmatpush1.bf16.msra.mxu0 0
        %1510 = vmatprep.subr.bf16.mxu0 0
        %1511 = vmatpush1.bf16.msra.mxu0 0
        %1512 = vmatprep.subr.bf16.mxu0 0
        %1513 = vmatpush1.bf16.msra.mxu0 0
        %1514 = vmatprep.subr.bf16.mxu0 0
        %1515 = vmatpush1.bf16.msra.mxu0 0
        %1516 = vmatprep.subr.bf16.mxu0 0
        %1517 = vmatpush1.bf16.msra.mxu0 0
        %1518 = vmatprep.subr.bf16.mxu0 0
        %1519 = vmatpush1.bf16.msra.mxu0 0
        %1520 = vmatprep.subr.bf16.mxu0 0
        %1521 = vmatpush1.bf16.msra.mxu0 0
        %1522 = vmatprep.subr.bf16.mxu0 0
        %1523 = vmatpush1.bf16.msra.mxu0 0
        %1524 = vmatprep.subr.bf16.mxu0 0
        %1525 = vmatpush1.bf16.msra.mxu0 0
        %1526 = vmatprep.subr.bf16.mxu0 0
        %1527 = vmatpush1.bf16.msra.mxu0 0
        %1528 = vmatprep.subr.bf16.mxu0 0
        %1529 = vmatpush1.bf16.msra.mxu0 0
        %1530 = vmatprep.subr.bf16.mxu0 0
        %1531 = vmatpush1.bf16.msra.mxu0 0
        %1532 = vmatprep.subr.bf16.mxu0 0
        %1533 = vmatpush1.bf16.msra.mxu0 0
        %1534 = vmatprep.subr.bf16.mxu0 0
        %1535 = vmatpush1.bf16.msra.mxu0 0
        %1536 = vmatprep.mubr.bf16.mxu0 0
        %1537 = vmatmul.mubr.bf16.gmra.mrb[0].mxu0 %v1371
        %v1538 = vpop.f32.mrb[0].mxu0
        %v1539 = vadd.f32 0.0, %v1538
        %v1540 = vpop.f32.mrb[0].mxu0
        %v1541 = vpop.f32.mrb[0].mxu0
        %v1542 = vpop.f32.mrb[0].mxu0
        %1543 = vdwg.mxu0
        %s1544 = scalar_lea.vmem %s5, 16
        %v1545 = vld [vmem:[%s1544] sm:$0xff]
        %1547 = vset.pattern.permute.xlu0 0
        %1548 = vperm.xlu0 %1547, %v1545
        %v1549 = vpop.permute.xlu0 %1548
        %v1551 = vmul.f32 %v1549, %v1539
        %v1552 = vadd.f32 %v1486, %v1551
        %s1553 = scalar_lea.vmem [#allocation6], 48
        %v1554 = vld [vmem:[%s1553] sm:$0xf]
        %v1555 = vld [vmem:[%s1553 + $0x4] sm:$0xf]
        %v1556 = vld [vmem:[%s1553 + $0x8] sm:$0xf]
        %v1557 = vld [vmem:[%s1553 + $0xc] sm:$0xf]
        %v1562 = vunpack.c.l.b16 %v1554
        %v1563 = vunpack.c.l.b16 %v1555
        %v1564 = vunpack.c.l.b16 %v1556
        %v1565 = vunpack.c.l.b16 %v1557
        %v1566 = vpack.c.b16 %v1563, %v1562
        %v1567 = vpack.c.b16 %v1565, %v1564
        %1570 = vmatprep.subr.bf16.mxu0 0
        %1571 = vmatpush1.bf16.msra.mxu0 %v1566
        %1572 = vmatprep.subr.bf16.mxu0 0
        %1573 = vmatpush1.bf16.msra.mxu0 %v1567
        %1574 = vmatprep.subr.bf16.mxu0 0
        %1575 = vmatpush1.bf16.msra.mxu0 0
        %1576 = vmatprep.subr.bf16.mxu0 0
        %1577 = vmatpush1.bf16.msra.mxu0 0
        %1578 = vmatprep.subr.bf16.mxu0 0
        %1579 = vmatpush1.bf16.msra.mxu0 0
        %1580 = vmatprep.subr.bf16.mxu0 0
        %1581 = vmatpush1.bf16.msra.mxu0 0
        %1582 = vmatprep.subr.bf16.mxu0 0
        %1583 = vmatpush1.bf16.msra.mxu0 0
        %1584 = vmatprep.subr.bf16.mxu0 0
        %1585 = vmatpush1.bf16.msra.mxu0 0
        %1586 = vmatprep.subr.bf16.mxu0 0
        %1587 = vmatpush1.bf16.msra.mxu0 0
        %1588 = vmatprep.subr.bf16.mxu0 0
        %1589 = vmatpush1.bf16.msra.mxu0 0
        %1590 = vmatprep.subr.bf16.mxu0 0
        %1591 = vmatpush1.bf16.msra.mxu0 0
        %1592 = vmatprep.subr.bf16.mxu0 0
        %1593 = vmatpush1.bf16.msra.mxu0 0
        %1594 = vmatprep.subr.bf16.mxu0 0
        %1595 = vmatpush1.bf16.msra.mxu0 0
        %1596 = vmatprep.subr.bf16.mxu0 0
        %1597 = vmatpush1.bf16.msra.mxu0 0
        %1598 = vmatprep.subr.bf16.mxu0 0
        %1599 = vmatpush1.bf16.msra.mxu0 0
        %1600 = vmatprep.subr.bf16.mxu0 0
        %1601 = vmatpush1.bf16.msra.mxu0 0
        %1602 = vmatprep.mubr.bf16.mxu0 0
        %1603 = vmatmul.mubr.bf16.gmra.mrb[0].mxu0 %v1371
        %v1604 = vpop.f32.mrb[0].mxu0
        %v1605 = vadd.f32 0.0, %v1604
        %v1606 = vpop.f32.mrb[0].mxu0
        %v1607 = vpop.f32.mrb[0].mxu0
        %v1608 = vpop.f32.mrb[0].mxu0
        %1609 = vdwg.mxu0
        %s1610 = scalar_lea.vmem %s5, 24
        %v1611 = vld [vmem:[%s1610] sm:$0xff]
        %1613 = vset.pattern.permute.xlu0 0
        %1614 = vperm.xlu0 %1613, %v1611
        %v1615 = vpop.permute.xlu0 %1614
        %v1617 = vmul.f32 %v1615, %v1605
        %v1618 = vadd.f32 %v1552, %v1617
        %s1619 = scalar_lea.vmem [#allocation6], 64
        %v1620 = vld [vmem:[%s1619] sm:$0xf]
        %v1621 = vld [vmem:[%s1619 + $0x4] sm:$0xf]
        %v1622 = vld [vmem:[%s1619 + $0x8] sm:$0xf]
        %v1623 = vld [vmem:[%s1619 + $0xc] sm:$0xf]
        %v1628 = vunpack.c.l.b16 %v1620
        %v1629 = vunpack.c.l.b16 %v1621
        %v1630 = vunpack.c.l.b16 %v1622
        %v1631 = vunpack.c.l.b16 %v1623
        %v1632 = vpack.c.b16 %v1629, %v1628
        %v1633 = vpack.c.b16 %v1631, %v1630
        %1636 = vmatprep.subr.bf16.mxu0 0
        %1637 = vmatpush1.bf16.msra.mxu0 %v1632
        %1638 = vmatprep.subr.bf16.mxu0 0
        %1639 = vmatpush1.bf16.msra.mxu0 %v1633
        %1640 = vmatprep.subr.bf16.mxu0 0
        %1641 = vmatpush1.bf16.msra.mxu0 0
        %1642 = vmatprep.subr.bf16.mxu0 0
        %1643 = vmatpush1.bf16.msra.mxu0 0
        %1644 = vmatprep.subr.bf16.mxu0 0
        %1645 = vmatpush1.bf16.msra.mxu0 0
        %1646 = vmatprep.subr.bf16.mxu0 0
        %1647 = vmatpush1.bf16.msra.mxu0 0
        %1648 = vmatprep.subr.bf16.mxu0 0
        %1649 = vmatpush1.bf16.msra.mxu0 0
        %1650 = vmatprep.subr.bf16.mxu0 0
        %1651 = vmatpush1.bf16.msra.mxu0 0
        %1652 = vmatprep.subr.bf16.mxu0 0
        %1653 = vmatpush1.bf16.msra.mxu0 0
        %1654 = vmatprep.subr.bf16.mxu0 0
        %1655 = vmatpush1.bf16.msra.mxu0 0
        %1656 = vmatprep.subr.bf16.mxu0 0
        %1657 = vmatpush1.bf16.msra.mxu0 0
        %1658 = vmatprep.subr.bf16.mxu0 0
        %1659 = vmatpush1.bf16.msra.mxu0 0
        %1660 = vmatprep.subr.bf16.mxu0 0
        %1661 = vmatpush1.bf16.msra.mxu0 0
        %1662 = vmatprep.subr.bf16.mxu0 0
        %1663 = vmatpush1.bf16.msra.mxu0 0
        %1664 = vmatprep.subr.bf16.mxu0 0
        %1665 = vmatpush1.bf16.msra.mxu0 0
        %1666 = vmatprep.subr.bf16.mxu0 0
        %1667 = vmatpush1.bf16.msra.mxu0 0
        %1668 = vmatprep.mubr.bf16.mxu0 0
        %1669 = vmatmul.mubr.bf16.gmra.mrb[0].mxu0 %v1371
        %v1670 = vpop.f32.mrb[0].mxu0
        %v1671 = vadd.f32 0.0, %v1670
        %v1672 = vpop.f32.mrb[0].mxu0
        %v1673 = vpop.f32.mrb[0].mxu0
        %v1674 = vpop.f32.mrb[0].mxu0
        %1675 = vdwg.mxu0
        %s1676 = scalar_lea.vmem %s5, 32
        %v1677 = vld [vmem:[%s1676] sm:$0xff]
        %1679 = vset.pattern.permute.xlu0 0
        %1680 = vperm.xlu0 %1679, %v1677
        %v1681 = vpop.permute.xlu0 %1680
        %v1683 = vmul.f32 %v1681, %v1671
        %v1684 = vadd.f32 %v1618, %v1683
        %s1685 = scalar_lea.vmem [#allocation6], 80
        %v1686 = vld [vmem:[%s1685] sm:$0xf]
        %v1687 = vld [vmem:[%s1685 + $0x4] sm:$0xf]
        %v1688 = vld [vmem:[%s1685 + $0x8] sm:$0xf]
        %v1689 = vld [vmem:[%s1685 + $0xc] sm:$0xf]
        %v1694 = vunpack.c.l.b16 %v1686
        %v1695 = vunpack.c.l.b16 %v1687
        %v1696 = vunpack.c.l.b16 %v1688
        %v1697 = vunpack.c.l.b16 %v1689
        %v1698 = vpack.c.b16 %v1695, %v1694
        %v1699 = vpack.c.b16 %v1697, %v1696
        %1702 = vmatprep.subr.bf16.mxu0 0
        %1703 = vmatpush1.bf16.msra.mxu0 %v1698
        %1704 = vmatprep.subr.bf16.mxu0 0
        %1705 = vmatpush1.bf16.msra.mxu0 %v1699
        %1706 = vmatprep.subr.bf16.mxu0 0
        %1707 = vmatpush1.bf16.msra.mxu0 0
        %1708 = vmatprep.subr.bf16.mxu0 0
        %1709 = vmatpush1.bf16.msra.mxu0 0
        %1710 = vmatprep.subr.bf16.mxu0 0
        %1711 = vmatpush1.bf16.msra.mxu0 0
        %1712 = vmatprep.subr.bf16.mxu0 0
        %1713 = vmatpush1.bf16.msra.mxu0 0
        %1714 = vmatprep.subr.bf16.mxu0 0
        %1715 = vmatpush1.bf16.msra.mxu0 0
        %1716 = vmatprep.subr.bf16.mxu0 0
        %1717 = vmatpush1.bf16.msra.mxu0 0
        %1718 = vmatprep.subr.bf16.mxu0 0
        %1719 = vmatpush1.bf16.msra.mxu0 0
        %1720 = vmatprep.subr.bf16.mxu0 0
        %1721 = vmatpush1.bf16.msra.mxu0 0
        %1722 = vmatprep.subr.bf16.mxu0 0
        %1723 = vmatpush1.bf16.msra.mxu0 0
        %1724 = vmatprep.subr.bf16.mxu0 0
        %1725 = vmatpush1.bf16.msra.mxu0 0
        %1726 = vmatprep.subr.bf16.mxu0 0
        %1727 = vmatpush1.bf16.msra.mxu0 0
        %1728 = vmatprep.subr.bf16.mxu0 0
        %1729 = vmatpush1.bf16.msra.mxu0 0
        %1730 = vmatprep.subr.bf16.mxu0 0
        %1731 = vmatpush1.bf16.msra.mxu0 0
        %1732 = vmatprep.subr.bf16.mxu0 0
        %1733 = vmatpush1.bf16.msra.mxu0 0
        %1734 = vmatprep.mubr.bf16.mxu0 0
        %1735 = vmatmul.mubr.bf16.gmra.mrb[0].mxu0 %v1371
        %v1736 = vpop.f32.mrb[0].mxu0
        %v1737 = vadd.f32 0.0, %v1736
        %v1738 = vpop.f32.mrb[0].mxu0
        %v1739 = vpop.f32.mrb[0].mxu0
        %v1740 = vpop.f32.mrb[0].mxu0
        %1741 = vdwg.mxu0
        %s1742 = scalar_lea.vmem %s5, 40
        %v1743 = vld [vmem:[%s1742] sm:$0xff]
        %1745 = vset.pattern.permute.xlu0 0
        %1746 = vperm.xlu0 %1745, %v1743
        %v1747 = vpop.permute.xlu0 %1746
        %v1749 = vmul.f32 %v1747, %v1737
        %v1750 = vadd.f32 %v1684, %v1749
        %s1751 = scalar_lea.vmem [#allocation6], 96
        %v1752 = vld [vmem:[%s1751] sm:$0xf]
        %v1753 = vld [vmem:[%s1751 + $0x4] sm:$0xf]
        %v1754 = vld [vmem:[%s1751 + $0x8] sm:$0xf]
        %v1755 = vld [vmem:[%s1751 + $0xc] sm:$0xf]
        %v1760 = vunpack.c.l.b16 %v1752
        %v1761 = vunpack.c.l.b16 %v1753
        %v1762 = vunpack.c.l.b16 %v1754
        %v1763 = vunpack.c.l.b16 %v1755
        %v1764 = vpack.c.b16 %v1761, %v1760
        %v1765 = vpack.c.b16 %v1763, %v1762
        %1768 = vmatprep.subr.bf16.mxu0 0
        %1769 = vmatpush1.bf16.msra.mxu0 %v1764
        %1770 = vmatprep.subr.bf16.mxu0 0
        %1771 = vmatpush1.bf16.msra.mxu0 %v1765
        %1772 = vmatprep.subr.bf16.mxu0 0
        %1773 = vmatpush1.bf16.msra.mxu0 0
        %1774 = vmatprep.subr.bf16.mxu0 0
        %1775 = vmatpush1.bf16.msra.mxu0 0
        %1776 = vmatprep.subr.bf16.mxu0 0
        %1777 = vmatpush1.bf16.msra.mxu0 0
        %1778 = vmatprep.subr.bf16.mxu0 0
        %1779 = vmatpush1.bf16.msra.mxu0 0
        %1780 = vmatprep.subr.bf16.mxu0 0
        %1781 = vmatpush1.bf16.msra.mxu0 0
        %1782 = vmatprep.subr.bf16.mxu0 0
        %1783 = vmatpush1.bf16.msra.mxu0 0
        %1784 = vmatprep.subr.bf16.mxu0 0
        %1785 = vmatpush1.bf16.msra.mxu0 0
        %1786 = vmatprep.subr.bf16.mxu0 0
        %1787 = vmatpush1.bf16.msra.mxu0 0
        %1788 = vmatprep.subr.bf16.mxu0 0
        %1789 = vmatpush1.bf16.msra.mxu0 0
        %1790 = vmatprep.subr.bf16.mxu0 0
        %1791 = vmatpush1.bf16.msra.mxu0 0
        %1792 = vmatprep.subr.bf16.mxu0 0
        %1793 = vmatpush1.bf16.msra.mxu0 0
        %1794 = vmatprep.subr.bf16.mxu0 0
        %1795 = vmatpush1.bf16.msra.mxu0 0
        %1796 = vmatprep.subr.bf16.mxu0 0
        %1797 = vmatpush1.bf16.msra.mxu0 0
        %1798 = vmatprep.subr.bf16.mxu0 0
        %1799 = vmatpush1.bf16.msra.mxu0 0
        %1800 = vmatprep.mubr.bf16.mxu0 0
        %1801 = vmatmul.mubr.bf16.gmra.mrb[0].mxu0 %v1371
        %v1802 = vpop.f32.mrb[0].mxu0
        %v1803 = vadd.f32 0.0, %v1802
        %v1804 = vpop.f32.mrb[0].mxu0
        %v1805 = vpop.f32.mrb[0].mxu0
        %v1806 = vpop.f32.mrb[0].mxu0
        %1807 = vdwg.mxu0
        %s1808 = scalar_lea.vmem %s5, 48
        %v1809 = vld [vmem:[%s1808] sm:$0xff]
        %1811 = vset.pattern.permute.xlu0 0
        %1812 = vperm.xlu0 %1811, %v1809
        %v1813 = vpop.permute.xlu0 %1812
        %v1815 = vmul.f32 %v1813, %v1803
        %v1816 = vadd.f32 %v1750, %v1815
        %s1817 = scalar_lea.vmem [#allocation6], 112
        %v1818 = vld [vmem:[%s1817] sm:$0xf]
        %v1819 = vld [vmem:[%s1817 + $0x4] sm:$0xf]
        %v1820 = vld [vmem:[%s1817 + $0x8] sm:$0xf]
        %v1821 = vld [vmem:[%s1817 + $0xc] sm:$0xf]
        %v1826 = vunpack.c.l.b16 %v1818
        %v1827 = vunpack.c.l.b16 %v1819
        %v1828 = vunpack.c.l.b16 %v1820
        %v1829 = vunpack.c.l.b16 %v1821
        %v1830 = vpack.c.b16 %v1827, %v1826
        %v1831 = vpack.c.b16 %v1829, %v1828
        %1834 = vmatprep.subr.bf16.mxu0 0
        %1835 = vmatpush1.bf16.msra.mxu0 %v1830
        %1836 = vmatprep.subr.bf16.mxu0 0
        %1837 = vmatpush1.bf16.msra.mxu0 %v1831
        %1838 = vmatprep.subr.bf16.mxu0 0
        %1839 = vmatpush1.bf16.msra.mxu0 0
        %1840 = vmatprep.subr.bf16.mxu0 0
        %1841 = vmatpush1.bf16.msra.mxu0 0
        %1842 = vmatprep.subr.bf16.mxu0 0
        %1843 = vmatpush1.bf16.msra.mxu0 0
        %1844 = vmatprep.subr.bf16.mxu0 0
        %1845 = vmatpush1.bf16.msra.mxu0 0
        %1846 = vmatprep.subr.bf16.mxu0 0
        %1847 = vmatpush1.bf16.msra.mxu0 0
        %1848 = vmatprep.subr.bf16.mxu0 0
        %1849 = vmatpush1.bf16.msra.mxu0 0
        %1850 = vmatprep.subr.bf16.mxu0 0
        %1851 = vmatpush1.bf16.msra.mxu0 0
        %1852 = vmatprep.subr.bf16.mxu0 0
        %1853 = vmatpush1.bf16.msra.mxu0 0
        %1854 = vmatprep.subr.bf16.mxu0 0
        %1855 = vmatpush1.bf16.msra.mxu0 0
        %1856 = vmatprep.subr.bf16.mxu0 0
        %1857 = vmatpush1.bf16.msra.mxu0 0
        %1858 = vmatprep.subr.bf16.mxu0 0
        %1859 = vmatpush1.bf16.msra.mxu0 0
        %1860 = vmatprep.subr.bf16.mxu0 0
        %1861 = vmatpush1.bf16.msra.mxu0 0
        %1862 = vmatprep.subr.bf16.mxu0 0
        %1863 = vmatpush1.bf16.msra.mxu0 0
        %1864 = vmatprep.subr.bf16.mxu0 0
        %1865 = vmatpush1.bf16.msra.mxu0 0
        %1866 = vmatprep.mubr.bf16.mxu0 0
        %1867 = vmatmul.mubr.bf16.gmra.mrb[0].mxu0 %v1371
        %v1868 = vpop.f32.mrb[0].mxu0
        %v1869 = vadd.f32 0.0, %v1868
        %v1870 = vpop.f32.mrb[0].mxu0
        %v1871 = vpop.f32.mrb[0].mxu0
        %v1872 = vpop.f32.mrb[0].mxu0
        %1873 = vdwg.mxu0
        %s1874 = scalar_lea.vmem %s5, 56
        %v1875 = vld [vmem:[%s1874] sm:$0xff]
        %1877 = vset.pattern.permute.xlu0 0
        %1878 = vperm.xlu0 %1877, %v1875
        %v1879 = vpop.permute.xlu0 %1878
        %v1881 = vmul.f32 %v1879, %v1869
        %v1882 = vadd.f32 %v1816, %v1881
        %v1883 = vld [vmem:[#allocation3] sm:$0xf]
        %v1885 = vsel %vm362, %v1883, 0
        %v1887 = vsel %vm366, %v1351, 0
        %1889 = vmatprep.subr.bf16.mxu0 0
        %1890 = vmatpush1.bf16.msra.mxu0 %v1887
        %1891 = vmatprep.subr.bf16.mxu0 0
        %1892 = vmatpush1.bf16.msra.mxu0 0
        %1893 = vmatprep.subr.bf16.mxu0 0
        %1894 = vmatpush1.bf16.msra.mxu0 0
        %1895 = vmatprep.subr.bf16.mxu0 0
        %1896 = vmatpush1.bf16.msra.mxu0 0
        %1897 = vmatprep.subr.bf16.mxu0 0
        %1898 = vmatpush1.bf16.msra.mxu0 0
        %1899 = vmatprep.subr.bf16.mxu0 0
        %1900 = vmatpush1.bf16.msra.mxu0 0
        %1901 = vmatprep.subr.bf16.mxu0 0
        %1902 = vmatpush1.bf16.msra.mxu0 0
        %1903 = vmatprep.subr.bf16.mxu0 0
        %1904 = vmatpush1.bf16.msra.mxu0 0
        %1905 = vmatprep.subr.bf16.mxu0 0
        %1906 = vmatpush1.bf16.msra.mxu0 0
        %1907 = vmatprep.subr.bf16.mxu0 0
        %1908 = vmatpush1.bf16.msra.mxu0 0
        %1909 = vmatprep.subr.bf16.mxu0 0
        %1910 = vmatpush1.bf16.msra.mxu0 0
        %1911 = vmatprep.subr.bf16.mxu0 0
        %1912 = vmatpush1.bf16.msra.mxu0 0
        %1913 = vmatprep.subr.bf16.mxu0 0
        %1914 = vmatpush1.bf16.msra.mxu0 0
        %1915 = vmatprep.subr.bf16.mxu0 0
        %1916 = vmatpush1.bf16.msra.mxu0 0
        %1917 = vmatprep.subr.bf16.mxu0 0
        %1918 = vmatpush1.bf16.msra.mxu0 0
        %1919 = vmatprep.subr.bf16.mxu0 0
        %1920 = vmatpush1.bf16.msra.mxu0 0
        %1921 = vmatprep.mubr.bf16.mxu0 0
        %1922 = vmatmul.mubr.bf16.gmra.mrb[0].mxu0 %v1885
        %v1923 = vpop.f32.mrb[0].mxu0
        %v1924 = vadd.f32 0.0, %v1923
        %v1925 = vpop.f32.mrb[0].mxu0
        %v1926 = vpop.f32.mrb[0].mxu0
        %v1927 = vpop.f32.mrb[0].mxu0
        %1928 = vdwg.mxu0
        %v1929 = vpack.c.bf16 %v1924, %v1924
        %s1930 = scalar_lea.vmem [#allocation6], 128
        %v1931 = vld [vmem:[%s1930] sm:$0xf]
        %v1932 = vld [vmem:[%s1930 + $0x4] sm:$0xf]
        %v1933 = vld [vmem:[%s1930 + $0x8] sm:$0xf]
        %v1934 = vld [vmem:[%s1930 + $0xc] sm:$0xf]
        %v1939 = vunpack.c.l.b16 %v1931
        %v1940 = vunpack.c.l.b16 %v1932
        %v1941 = vunpack.c.l.b16 %v1933
        %v1942 = vunpack.c.l.b16 %v1934
        %v1943 = vpack.c.b16 %v1940, %v1939
        %v1944 = vpack.c.b16 %v1942, %v1941
        %v1948 = vsel %vm1369, %v1929, 0
        %1950 = vmatprep.subr.bf16.mxu0 0
        %1951 = vmatpush1.bf16.msra.mxu0 %v1943
        %1952 = vmatprep.subr.bf16.mxu0 0
        %1953 = vmatpush1.bf16.msra.mxu0 %v1944
        %1954 = vmatprep.subr.bf16.mxu0 0
        %1955 = vmatpush1.bf16.msra.mxu0 0
        %1956 = vmatprep.subr.bf16.mxu0 0
        %1957 = vmatpush1.bf16.msra.mxu0 0
        %1958 = vmatprep.subr.bf16.mxu0 0
        %1959 = vmatpush1.bf16.msra.mxu0 0
        %1960 = vmatprep.subr.bf16.mxu0 0
        %1961 = vmatpush1.bf16.msra.mxu0 0
        %1962 = vmatprep.subr.bf16.mxu0 0
        %1963 = vmatpush1.bf16.msra.mxu0 0
        %1964 = vmatprep.subr.bf16.mxu0 0
        %1965 = vmatpush1.bf16.msra.mxu0 0
        %1966 = vmatprep.subr.bf16.mxu0 0
        %1967 = vmatpush1.bf16.msra.mxu0 0
        %1968 = vmatprep.subr.bf16.mxu0 0
        %1969 = vmatpush1.bf16.msra.mxu0 0
        %1970 = vmatprep.subr.bf16.mxu0 0
        %1971 = vmatpush1.bf16.msra.mxu0 0
        %1972 = vmatprep.subr.bf16.mxu0 0
        %1973 = vmatpush1.bf16.msra.mxu0 0
        %1974 = vmatprep.subr.bf16.mxu0 0
        %1975 = vmatpush1.bf16.msra.mxu0 0
        %1976 = vmatprep.subr.bf16.mxu0 0
        %1977 = vmatpush1.bf16.msra.mxu0 0
        %1978 = vmatprep.subr.bf16.mxu0 0
        %1979 = vmatpush1.bf16.msra.mxu0 0
        %1980 = vmatprep.subr.bf16.mxu0 0
        %1981 = vmatpush1.bf16.msra.mxu0 0
        %1982 = vmatprep.mubr.bf16.mxu0 0
        %1983 = vmatmul.mubr.bf16.gmra.mrb[0].mxu0 %v1948
        %v1984 = vpop.f32.mrb[0].mxu0
        %v1985 = vadd.f32 0.0, %v1984
        %v1986 = vpop.f32.mrb[0].mxu0
        %v1987 = vpop.f32.mrb[0].mxu0
        %v1988 = vpop.f32.mrb[0].mxu0
        %1989 = vdwg.mxu0
        %v1990 = vmul.f32 %v1417, %v1985
        %v1991 = vadd.f32 %v1882, %v1990
        %s1992 = scalar_lea.vmem [#allocation6], 144
        %v1993 = vld [vmem:[%s1992] sm:$0xf]
        %v1994 = vld [vmem:[%s1992 + $0x4] sm:$0xf]
        %v1995 = vld [vmem:[%s1992 + $0x8] sm:$0xf]
        %v1996 = vld [vmem:[%s1992 + $0xc] sm:$0xf]
        %v2001 = vunpack.c.l.b16 %v1993
        %v2002 = vunpack.c.l.b16 %v1994
        %v2003 = vunpack.c.l.b16 %v1995
        %v2004 = vunpack.c.l.b16 %v1996
        %v2005 = vpack.c.b16 %v2002, %v2001
        %v2006 = vpack.c.b16 %v2004, %v2003
        %2009 = vmatprep.subr.bf16.mxu0 0
        %2010 = vmatpush1.bf16.msra.mxu0 %v2005
        %2011 = vmatprep.subr.bf16.mxu0 0
        %2012 = vmatpush1.bf16.msra.mxu0 %v2006
        %2013 = vmatprep.subr.bf16.mxu0 0
        %2014 = vmatpush1.bf16.msra.mxu0 0
        %2015 = vmatprep.subr.bf16.mxu0 0
        %2016 = vmatpush1.bf16.msra.mxu0 0
        %2017 = vmatprep.subr.bf16.mxu0 0
        %2018 = vmatpush1.bf16.msra.mxu0 0
        %2019 = vmatprep.subr.bf16.mxu0 0
        %2020 = vmatpush1.bf16.msra.mxu0 0
        %2021 = vmatprep.subr.bf16.mxu0 0
        %2022 = vmatpush1.bf16.msra.mxu0 0
        %2023 = vmatprep.subr.bf16.mxu0 0
        %2024 = vmatpush1.bf16.msra.mxu0 0
        %2025 = vmatprep.subr.bf16.mxu0 0
        %2026 = vmatpush1.bf16.msra.mxu0 0
        %2027 = vmatprep.subr.bf16.mxu0 0
        %2028 = vmatpush1.bf16.msra.mxu0 0
        %2029 = vmatprep.subr.bf16.mxu0 0
        %2030 = vmatpush1.bf16.msra.mxu0 0
        %2031 = vmatprep.subr.bf16.mxu0 0
        %2032 = vmatpush1.bf16.msra.mxu0 0
        %2033 = vmatprep.subr.bf16.mxu0 0
        %2034 = vmatpush1.bf16.msra.mxu0 0
        %2035 = vmatprep.subr.bf16.mxu0 0
        %2036 = vmatpush1.bf16.msra.mxu0 0
        %2037 = vmatprep.subr.bf16.mxu0 0
        %2038 = vmatpush1.bf16.msra.mxu0 0
        %2039 = vmatprep.subr.bf16.mxu0 0
        %2040 = vmatpush1.bf16.msra.mxu0 0
        %2041 = vmatprep.mubr.bf16.mxu0 0
        %2042 = vmatmul.mubr.bf16.gmra.mrb[0].mxu0 %v1948
        %v2043 = vpop.f32.mrb[0].mxu0
        %v2044 = vadd.f32 0.0, %v2043
        %v2045 = vpop.f32.mrb[0].mxu0
        %v2046 = vpop.f32.mrb[0].mxu0
        %v2047 = vpop.f32.mrb[0].mxu0
        %2048 = vdwg.mxu0
        %v2049 = vmul.f32 %v1483, %v2044
        %v2050 = vadd.f32 %v1991, %v2049
        %s2051 = scalar_lea.vmem [#allocation6], 160
        %v2052 = vld [vmem:[%s2051] sm:$0xf]
        %v2053 = vld [vmem:[%s2051 + $0x4] sm:$0xf]
        %v2054 = vld [vmem:[%s2051 + $0x8] sm:$0xf]
        %v2055 = vld [vmem:[%s2051 + $0xc] sm:$0xf]
        %v2060 = vunpack.c.l.b16 %v2052
        %v2061 = vunpack.c.l.b16 %v2053
        %v2062 = vunpack.c.l.b16 %v2054
        %v2063 = vunpack.c.l.b16 %v2055
        %v2064 = vpack.c.b16 %v2061, %v2060
        %v2065 = vpack.c.b16 %v2063, %v2062
        %2068 = vmatprep.subr.bf16.mxu0 0
        %2069 = vmatpush1.bf16.msra.mxu0 %v2064
        %2070 = vmatprep.subr.bf16.mxu0 0
        %2071 = vmatpush1.bf16.msra.mxu0 %v2065
        %2072 = vmatprep.subr.bf16.mxu0 0
        %2073 = vmatpush1.bf16.msra.mxu0 0
        %2074 = vmatprep.subr.bf16.mxu0 0
        %2075 = vmatpush1.bf16.msra.mxu0 0
        %2076 = vmatprep.subr.bf16.mxu0 0
        %2077 = vmatpush1.bf16.msra.mxu0 0
        %2078 = vmatprep.subr.bf16.mxu0 0
        %2079 = vmatpush1.bf16.msra.mxu0 0
        %2080 = vmatprep.subr.bf16.mxu0 0
        %2081 = vmatpush1.bf16.msra.mxu0 0
        %2082 = vmatprep.subr.bf16.mxu0 0
        %2083 = vmatpush1.bf16.msra.mxu0 0
        %2084 = vmatprep.subr.bf16.mxu0 0
        %2085 = vmatpush1.bf16.msra.mxu0 0
        %2086 = vmatprep.subr.bf16.mxu0 0
        %2087 = vmatpush1.bf16.msra.mxu0 0
        %2088 = vmatprep.subr.bf16.mxu0 0
        %2089 = vmatpush1.bf16.msra.mxu0 0
        %2090 = vmatprep.subr.bf16.mxu0 0
        %2091 = vmatpush1.bf16.msra.mxu0 0
        %2092 = vmatprep.subr.bf16.mxu0 0
        %2093 = vmatpush1.bf16.msra.mxu0 0
        %2094 = vmatprep.subr.bf16.mxu0 0
        %2095 = vmatpush1.bf16.msra.mxu0 0
        %2096 = vmatprep.subr.bf16.mxu0 0
        %2097 = vmatpush1.bf16.msra.mxu0 0
        %2098 = vmatprep.subr.bf16.mxu0 0
        %2099 = vmatpush1.bf16.msra.mxu0 0
        %2100 = vmatprep.mubr.bf16.mxu0 0
        %2101 = vmatmul.mubr.bf16.gmra.mrb[0].mxu0 %v1948
        %v2102 = vpop.f32.mrb[0].mxu0
        %v2103 = vadd.f32 0.0, %v2102
        %v2104 = vpop.f32.mrb[0].mxu0
        %v2105 = vpop.f32.mrb[0].mxu0
        %v2106 = vpop.f32.mrb[0].mxu0
        %2107 = vdwg.mxu0
        %v2108 = vmul.f32 %v1549, %v2103
        %v2109 = vadd.f32 %v2050, %v2108
        %s2110 = scalar_lea.vmem [#allocation6], 176
        %v2111 = vld [vmem:[%s2110] sm:$0xf]
        %v2112 = vld [vmem:[%s2110 + $0x4] sm:$0xf]
        %v2113 = vld [vmem:[%s2110 + $0x8] sm:$0xf]
        %v2114 = vld [vmem:[%s2110 + $0xc] sm:$0xf]
        %v2119 = vunpack.c.l.b16 %v2111
        %v2120 = vunpack.c.l.b16 %v2112
        %v2121 = vunpack.c.l.b16 %v2113
        %v2122 = vunpack.c.l.b16 %v2114
        %v2123 = vpack.c.b16 %v2120, %v2119
        %v2124 = vpack.c.b16 %v2122, %v2121
        %2127 = vmatprep.subr.bf16.mxu0 0
        %2128 = vmatpush1.bf16.msra.mxu0 %v2123
        %2129 = vmatprep.subr.bf16.mxu0 0
        %2130 = vmatpush1.bf16.msra.mxu0 %v2124
        %2131 = vmatprep.subr.bf16.mxu0 0
        %2132 = vmatpush1.bf16.msra.mxu0 0
        %2133 = vmatprep.subr.bf16.mxu0 0
        %2134 = vmatpush1.bf16.msra.mxu0 0
        %2135 = vmatprep.subr.bf16.mxu0 0
        %2136 = vmatpush1.bf16.msra.mxu0 0
        %2137 = vmatprep.subr.bf16.mxu0 0
        %2138 = vmatpush1.bf16.msra.mxu0 0
        %2139 = vmatprep.subr.bf16.mxu0 0
        %2140 = vmatpush1.bf16.msra.mxu0 0
        %2141 = vmatprep.subr.bf16.mxu0 0
        %2142 = vmatpush1.bf16.msra.mxu0 0
        %2143 = vmatprep.subr.bf16.mxu0 0
        %2144 = vmatpush1.bf16.msra.mxu0 0
        %2145 = vmatprep.subr.bf16.mxu0 0
        %2146 = vmatpush1.bf16.msra.mxu0 0
        %2147 = vmatprep.subr.bf16.mxu0 0
        %2148 = vmatpush1.bf16.msra.mxu0 0
        %2149 = vmatprep.subr.bf16.mxu0 0
        %2150 = vmatpush1.bf16.msra.mxu0 0
        %2151 = vmatprep.subr.bf16.mxu0 0
        %2152 = vmatpush1.bf16.msra.mxu0 0
        %2153 = vmatprep.subr.bf16.mxu0 0
        %2154 = vmatpush1.bf16.msra.mxu0 0
        %2155 = vmatprep.subr.bf16.mxu0 0
        %2156 = vmatpush1.bf16.msra.mxu0 0
        %2157 = vmatprep.subr.bf16.mxu0 0
        %2158 = vmatpush1.bf16.msra.mxu0 0
        %2159 = vmatprep.mubr.bf16.mxu0 0
        %2160 = vmatmul.mubr.bf16.gmra.mrb[0].mxu0 %v1948
        %v2161 = vpop.f32.mrb[0].mxu0
        %v2162 = vadd.f32 0.0, %v2161
        %v2163 = vpop.f32.mrb[0].mxu0
        %v2164 = vpop.f32.mrb[0].mxu0
        %v2165 = vpop.f32.mrb[0].mxu0
        %2166 = vdwg.mxu0
        %v2167 = vmul.f32 %v1615, %v2162
        %v2168 = vadd.f32 %v2109, %v2167
        %s2169 = scalar_lea.vmem [#allocation6], 192
        %v2170 = vld [vmem:[%s2169] sm:$0xf]
        %v2171 = vld [vmem:[%s2169 + $0x4] sm:$0xf]
        %v2172 = vld [vmem:[%s2169 + $0x8] sm:$0xf]
        %v2173 = vld [vmem:[%s2169 + $0xc] sm:$0xf]
        %v2178 = vunpack.c.l.b16 %v2170
        %v2179 = vunpack.c.l.b16 %v2171
        %v2180 = vunpack.c.l.b16 %v2172
        %v2181 = vunpack.c.l.b16 %v2173
        %v2182 = vpack.c.b16 %v2179, %v2178
        %v2183 = vpack.c.b16 %v2181, %v2180
        %2186 = vmatprep.subr.bf16.mxu0 0
        %2187 = vmatpush1.bf16.msra.mxu0 %v2182
        %2188 = vmatprep.subr.bf16.mxu0 0
        %2189 = vmatpush1.bf16.msra.mxu0 %v2183
        %2190 = vmatprep.subr.bf16.mxu0 0
        %2191 = vmatpush1.bf16.msra.mxu0 0
        %2192 = vmatprep.subr.bf16.mxu0 0
        %2193 = vmatpush1.bf16.msra.mxu0 0
        %2194 = vmatprep.subr.bf16.mxu0 0
        %2195 = vmatpush1.bf16.msra.mxu0 0
        %2196 = vmatprep.subr.bf16.mxu0 0
        %2197 = vmatpush1.bf16.msra.mxu0 0
        %2198 = vmatprep.subr.bf16.mxu0 0
        %2199 = vmatpush1.bf16.msra.mxu0 0
        %2200 = vmatprep.subr.bf16.mxu0 0
        %2201 = vmatpush1.bf16.msra.mxu0 0
        %2202 = vmatprep.subr.bf16.mxu0 0
        %2203 = vmatpush1.bf16.msra.mxu0 0
        %2204 = vmatprep.subr.bf16.mxu0 0
        %2205 = vmatpush1.bf16.msra.mxu0 0
        %2206 = vmatprep.subr.bf16.mxu0 0
        %2207 = vmatpush1.bf16.msra.mxu0 0
        %2208 = vmatprep.subr.bf16.mxu0 0
        %2209 = vmatpush1.bf16.msra.mxu0 0
        %2210 = vmatprep.subr.bf16.mxu0 0
        %2211 = vmatpush1.bf16.msra.mxu0 0
        %2212 = vmatprep.subr.bf16.mxu0 0
        %2213 = vmatpush1.bf16.msra.mxu0 0
        %2214 = vmatprep.subr.bf16.mxu0 0
        %2215 = vmatpush1.bf16.msra.mxu0 0
        %2216 = vmatprep.subr.bf16.mxu0 0
        %2217 = vmatpush1.bf16.msra.mxu0 0
        %2218 = vmatprep.mubr.bf16.mxu0 0
        %2219 = vmatmul.mubr.bf16.gmra.mrb[0].mxu0 %v1948
        %v2220 = vpop.f32.mrb[0].mxu0
        %v2221 = vadd.f32 0.0, %v2220
        %v2222 = vpop.f32.mrb[0].mxu0
        %v2223 = vpop.f32.mrb[0].mxu0
        %v2224 = vpop.f32.mrb[0].mxu0
        %2225 = vdwg.mxu0
        %v2226 = vmul.f32 %v1681, %v2221
        %v2227 = vadd.f32 %v2168, %v2226
        %s2228 = scalar_lea.vmem [#allocation6], 208
        %v2229 = vld [vmem:[%s2228] sm:$0xf]
        %v2230 = vld [vmem:[%s2228 + $0x4] sm:$0xf]
        %v2231 = vld [vmem:[%s2228 + $0x8] sm:$0xf]
        %v2232 = vld [vmem:[%s2228 + $0xc] sm:$0xf]
        %v2237 = vunpack.c.l.b16 %v2229
        %v2238 = vunpack.c.l.b16 %v2230
        %v2239 = vunpack.c.l.b16 %v2231
        %v2240 = vunpack.c.l.b16 %v2232
        %v2241 = vpack.c.b16 %v2238, %v2237
        %v2242 = vpack.c.b16 %v2240, %v2239
        %2245 = vmatprep.subr.bf16.mxu0 0
        %2246 = vmatpush1.bf16.msra.mxu0 %v2241
        %2247 = vmatprep.subr.bf16.mxu0 0
        %2248 = vmatpush1.bf16.msra.mxu0 %v2242
        %2249 = vmatprep.subr.bf16.mxu0 0
        %2250 = vmatpush1.bf16.msra.mxu0 0
        %2251 = vmatprep.subr.bf16.mxu0 0
        %2252 = vmatpush1.bf16.msra.mxu0 0
        %2253 = vmatprep.subr.bf16.mxu0 0
        %2254 = vmatpush1.bf16.msra.mxu0 0
        %2255 = vmatprep.subr.bf16.mxu0 0
        %2256 = vmatpush1.bf16.msra.mxu0 0
        %2257 = vmatprep.subr.bf16.mxu0 0
        %2258 = vmatpush1.bf16.msra.mxu0 0
        %2259 = vmatprep.subr.bf16.mxu0 0
        %2260 = vmatpush1.bf16.msra.mxu0 0
        %2261 = vmatprep.subr.bf16.mxu0 0
        %2262 = vmatpush1.bf16.msra.mxu0 0
        %2263 = vmatprep.subr.bf16.mxu0 0
        %2264 = vmatpush1.bf16.msra.mxu0 0
        %2265 = vmatprep.subr.bf16.mxu0 0
        %2266 = vmatpush1.bf16.msra.mxu0 0
        %2267 = vmatprep.subr.bf16.mxu0 0
        %2268 = vmatpush1.bf16.msra.mxu0 0
        %2269 = vmatprep.subr.bf16.mxu0 0
        %2270 = vmatpush1.bf16.msra.mxu0 0
        %2271 = vmatprep.subr.bf16.mxu0 0
        %2272 = vmatpush1.bf16.msra.mxu0 0
        %2273 = vmatprep.subr.bf16.mxu0 0
        %2274 = vmatpush1.bf16.msra.mxu0 0
        %2275 = vmatprep.subr.bf16.mxu0 0
        %2276 = vmatpush1.bf16.msra.mxu0 0
        %2277 = vmatprep.mubr.bf16.mxu0 0
        %2278 = vmatmul.mubr.bf16.gmra.mrb[0].mxu0 %v1948
        %v2279 = vpop.f32.mrb[0].mxu0
        %v2280 = vadd.f32 0.0, %v2279
        %v2281 = vpop.f32.mrb[0].mxu0
        %v2282 = vpop.f32.mrb[0].mxu0
        %v2283 = vpop.f32.mrb[0].mxu0
        %2284 = vdwg.mxu0
        %v2285 = vmul.f32 %v1747, %v2280
        %v2286 = vadd.f32 %v2227, %v2285
        %s2287 = scalar_lea.vmem [#allocation6], 224
        %v2288 = vld [vmem:[%s2287] sm:$0xf]
        %v2289 = vld [vmem:[%s2287 + $0x4] sm:$0xf]
        %v2290 = vld [vmem:[%s2287 + $0x8] sm:$0xf]
        %v2291 = vld [vmem:[%s2287 + $0xc] sm:$0xf]
        %v2296 = vunpack.c.l.b16 %v2288
        %v2297 = vunpack.c.l.b16 %v2289
        %v2298 = vunpack.c.l.b16 %v2290
        %v2299 = vunpack.c.l.b16 %v2291
        %v2300 = vpack.c.b16 %v2297, %v2296
        %v2301 = vpack.c.b16 %v2299, %v2298
        %2304 = vmatprep.subr.bf16.mxu0 0
        %2305 = vmatpush1.bf16.msra.mxu0 %v2300
        %2306 = vmatprep.subr.bf16.mxu0 0
        %2307 = vmatpush1.bf16.msra.mxu0 %v2301
        %2308 = vmatprep.subr.bf16.mxu0 0
        %2309 = vmatpush1.bf16.msra.mxu0 0
        %2310 = vmatprep.subr.bf16.mxu0 0
        %2311 = vmatpush1.bf16.msra.mxu0 0
        %2312 = vmatprep.subr.bf16.mxu0 0
        %2313 = vmatpush1.bf16.msra.mxu0 0
        %2314 = vmatprep.subr.bf16.mxu0 0
        %2315 = vmatpush1.bf16.msra.mxu0 0
        %2316 = vmatprep.subr.bf16.mxu0 0
        %2317 = vmatpush1.bf16.msra.mxu0 0
        %2318 = vmatprep.subr.bf16.mxu0 0
        %2319 = vmatpush1.bf16.msra.mxu0 0
        %2320 = vmatprep.subr.bf16.mxu0 0
        %2321 = vmatpush1.bf16.msra.mxu0 0
        %2322 = vmatprep.subr.bf16.mxu0 0
        %2323 = vmatpush1.bf16.msra.mxu0 0
        %2324 = vmatprep.subr.bf16.mxu0 0
        %2325 = vmatpush1.bf16.msra.mxu0 0
        %2326 = vmatprep.subr.bf16.mxu0 0
        %2327 = vmatpush1.bf16.msra.mxu0 0
        %2328 = vmatprep.subr.bf16.mxu0 0
        %2329 = vmatpush1.bf16.msra.mxu0 0
        %2330 = vmatprep.subr.bf16.mxu0 0
        %2331 = vmatpush1.bf16.msra.mxu0 0
        %2332 = vmatprep.subr.bf16.mxu0 0
        %2333 = vmatpush1.bf16.msra.mxu0 0
        %2334 = vmatprep.subr.bf16.mxu0 0
        %2335 = vmatpush1.bf16.msra.mxu0 0
        %2336 = vmatprep.mubr.bf16.mxu0 0
        %2337 = vmatmul.mubr.bf16.gmra.mrb[0].mxu0 %v1948
        %v2338 = vpop.f32.mrb[0].mxu0
        %v2339 = vadd.f32 0.0, %v2338
        %v2340 = vpop.f32.mrb[0].mxu0
        %v2341 = vpop.f32.mrb[0].mxu0
        %v2342 = vpop.f32.mrb[0].mxu0
        %2343 = vdwg.mxu0
        %v2344 = vmul.f32 %v1813, %v2339
        %v2345 = vadd.f32 %v2286, %v2344
        %s2346 = scalar_lea.vmem [#allocation6], 240
        %v2347 = vld [vmem:[%s2346] sm:$0xf]
        %v2348 = vld [vmem:[%s2346 + $0x4] sm:$0xf]
        %v2349 = vld [vmem:[%s2346 + $0x8] sm:$0xf]
        %v2350 = vld [vmem:[%s2346 + $0xc] sm:$0xf]
        %v2355 = vunpack.c.l.b16 %v2347
        %v2356 = vunpack.c.l.b16 %v2348
        %v2357 = vunpack.c.l.b16 %v2349
        %v2358 = vunpack.c.l.b16 %v2350
        %v2359 = vpack.c.b16 %v2356, %v2355
        %v2360 = vpack.c.b16 %v2358, %v2357
        %2363 = vmatprep.subr.bf16.mxu0 0
        %2364 = vmatpush1.bf16.msra.mxu0 %v2359
        %2365 = vmatprep.subr.bf16.mxu0 0
        %2366 = vmatpush1.bf16.msra.mxu0 %v2360
        %2367 = vmatprep.subr.bf16.mxu0 0
        %2368 = vmatpush1.bf16.msra.mxu0 0
        %2369 = vmatprep.subr.bf16.mxu0 0
        %2370 = vmatpush1.bf16.msra.mxu0 0
        %2371 = vmatprep.subr.bf16.mxu0 0
        %2372 = vmatpush1.bf16.msra.mxu0 0
        %2373 = vmatprep.subr.bf16.mxu0 0
        %2374 = vmatpush1.bf16.msra.mxu0 0
        %2375 = vmatprep.subr.bf16.mxu0 0
        %2376 = vmatpush1.bf16.msra.mxu0 0
        %2377 = vmatprep.subr.bf16.mxu0 0
        %2378 = vmatpush1.bf16.msra.mxu0 0
        %2379 = vmatprep.subr.bf16.mxu0 0
        %2380 = vmatpush1.bf16.msra.mxu0 0
        %2381 = vmatprep.subr.bf16.mxu0 0
        %2382 = vmatpush1.bf16.msra.mxu0 0
        %2383 = vmatprep.subr.bf16.mxu0 0
        %2384 = vmatpush1.bf16.msra.mxu0 0
        %2385 = vmatprep.subr.bf16.mxu0 0
        %2386 = vmatpush1.bf16.msra.mxu0 0
        %2387 = vmatprep.subr.bf16.mxu0 0
        %2388 = vmatpush1.bf16.msra.mxu0 0
        %2389 = vmatprep.subr.bf16.mxu0 0
        %2390 = vmatpush1.bf16.msra.mxu0 0
        %2391 = vmatprep.subr.bf16.mxu0 0
        %2392 = vmatpush1.bf16.msra.mxu0 0
        %2393 = vmatprep.subr.bf16.mxu0 0
        %2394 = vmatpush1.bf16.msra.mxu0 0
        %2395 = vmatprep.mubr.bf16.mxu0 0
        %2396 = vmatmul.mubr.bf16.gmra.mrb[0].mxu0 %v1948
        %v2397 = vpop.f32.mrb[0].mxu0
        %v2398 = vadd.f32 0.0, %v2397
        %v2399 = vpop.f32.mrb[0].mxu0
        %v2400 = vpop.f32.mrb[0].mxu0
        %v2401 = vpop.f32.mrb[0].mxu0
        %2402 = vdwg.mxu0
        %v2403 = vmul.f32 %v1879, %v2398
        %v2404 = vadd.f32 %v2345, %v2403
        %s2405 = scalar_lea.vmem [#allocation3], 4
        %v2406 = vld [vmem:[%s2405] sm:$0xf]
        %v2408 = vsel %vm362, %v2406, 0
        %2410 = vmatprep.subr.bf16.mxu0 0
        %2411 = vmatpush1.bf16.msra.mxu0 %v1887
        %2412 = vmatprep.subr.bf16.mxu0 0
        %2413 = vmatpush1.bf16.msra.mxu0 0
        %2414 = vmatprep.subr.bf16.mxu0 0
        %2415 = vmatpush1.bf16.msra.mxu0 0
        %2416 = vmatprep.subr.bf16.mxu0 0
        %2417 = vmatpush1.bf16.msra.mxu0 0
        %2418 = vmatprep.subr.bf16.mxu0 0
        %2419 = vmatpush1.bf16.msra.mxu0 0
        %2420 = vmatprep.subr.bf16.mxu0 0
        %2421 = vmatpush1.bf16.msra.mxu0 0
        %2422 = vmatprep.subr.bf16.mxu0 0
        %2423 = vmatpush1.bf16.msra.mxu0 0
        %2424 = vmatprep.subr.bf16.mxu0 0
        %2425 = vmatpush1.bf16.msra.mxu0 0
        %2426 = vmatprep.subr.bf16.mxu0 0
        %2427 = vmatpush1.bf16.msra.mxu0 0
        %2428 = vmatprep.subr.bf16.mxu0 0
        %2429 = vmatpush1.bf16.msra.mxu0 0
        %2430 = vmatprep.subr.bf16.mxu0 0
        %2431 = vmatpush1.bf16.msra.mxu0 0
        %2432 = vmatprep.subr.bf16.mxu0 0
        %2433 = vmatpush1.bf16.msra.mxu0 0
        %2434 = vmatprep.subr.bf16.mxu0 0
        %2435 = vmatpush1.bf16.msra.mxu0 0
        %2436 = vmatprep.subr.bf16.mxu0 0
        %2437 = vmatpush1.bf16.msra.mxu0 0
        %2438 = vmatprep.subr.bf16.mxu0 0
        %2439 = vmatpush1.bf16.msra.mxu0 0
        %2440 = vmatprep.subr.bf16.mxu0 0
        %2441 = vmatpush1.bf16.msra.mxu0 0
        %2442 = vmatprep.mubr.bf16.mxu0 0
        %2443 = vmatmul.mubr.bf16.gmra.mrb[0].mxu0 %v2408
        %v2444 = vpop.f32.mrb[0].mxu0
        %v2445 = vadd.f32 0.0, %v2444
        %v2446 = vpop.f32.mrb[0].mxu0
        %v2447 = vpop.f32.mrb[0].mxu0
        %v2448 = vpop.f32.mrb[0].mxu0
        %2449 = vdwg.mxu0
        %v2450 = vpack.c.bf16 %v2445, %v2445
        %s2451 = scalar_lea.vmem [#allocation6], 256
        %v2452 = vld [vmem:[%s2451] sm:$0xf]
        %v2453 = vld [vmem:[%s2451 + $0x4] sm:$0xf]
        %v2454 = vld [vmem:[%s2451 + $0x8] sm:$0xf]
        %v2455 = vld [vmem:[%s2451 + $0xc] sm:$0xf]
        %v2460 = vunpack.c.l.b16 %v2452
        %v2461 = vunpack.c.l.b16 %v2453
        %v2462 = vunpack.c.l.b16 %v2454
        %v2463 = vunpack.c.l.b16 %v2455
        %v2464 = vpack.c.b16 %v2461, %v2460
        %v2465 = vpack.c.b16 %v2463, %v2462
        %v2469 = vsel %vm1369, %v2450, 0
        %2471 = vmatprep.subr.bf16.mxu0 0
        %2472 = vmatpush1.bf16.msra.mxu0 %v2464
        %2473 = vmatprep.subr.bf16.mxu0 0
        %2474 = vmatpush1.bf16.msra.mxu0 %v2465
        %2475 = vmatprep.subr.bf16.mxu0 0
        %2476 = vmatpush1.bf16.msra.mxu0 0
        %2477 = vmatprep.subr.bf16.mxu0 0
        %2478 = vmatpush1.bf16.msra.mxu0 0
        %2479 = vmatprep.subr.bf16.mxu0 0
        %2480 = vmatpush1.bf16.msra.mxu0 0
        %2481 = vmatprep.subr.bf16.mxu0 0
        %2482 = vmatpush1.bf16.msra.mxu0 0
        %2483 = vmatprep.subr.bf16.mxu0 0
        %2484 = vmatpush1.bf16.msra.mxu0 0
        %2485 = vmatprep.subr.bf16.mxu0 0
        %2486 = vmatpush1.bf16.msra.mxu0 0
        %2487 = vmatprep.subr.bf16.mxu0 0
        %2488 = vmatpush1.bf16.msra.mxu0 0
        %2489 = vmatprep.subr.bf16.mxu0 0
        %2490 = vmatpush1.bf16.msra.mxu0 0
        %2491 = vmatprep.subr.bf16.mxu0 0
        %2492 = vmatpush1.bf16.msra.mxu0 0
        %2493 = vmatprep.subr.bf16.mxu0 0
        %2494 = vmatpush1.bf16.msra.mxu0 0
        %2495 = vmatprep.subr.bf16.mxu0 0
        %2496 = vmatpush1.bf16.msra.mxu0 0
        %2497 = vmatprep.subr.bf16.mxu0 0
        %2498 = vmatpush1.bf16.msra.mxu0 0
        %2499 = vmatprep.subr.bf16.mxu0 0
        %2500 = vmatpush1.bf16.msra.mxu0 0
        %2501 = vmatprep.subr.bf16.mxu0 0
        %2502 = vmatpush1.bf16.msra.mxu0 0
        %2503 = vmatprep.mubr.bf16.mxu0 0
        %2504 = vmatmul.mubr.bf16.gmra.mrb[0].mxu0 %v2469
        %v2505 = vpop.f32.mrb[0].mxu0
        %v2506 = vadd.f32 0.0, %v2505
        %v2507 = vpop.f32.mrb[0].mxu0
        %v2508 = vpop.f32.mrb[0].mxu0
        %v2509 = vpop.f32.mrb[0].mxu0
        %2510 = vdwg.mxu0
        %v2511 = vmul.f32 %v1417, %v2506
        %v2512 = vadd.f32 %v2404, %v2511
        %s2513 = scalar_lea.vmem [#allocation6], 272
        %v2514 = vld [vmem:[%s2513] sm:$0xf]
        %v2515 = vld [vmem:[%s2513 + $0x4] sm:$0xf]
        %v2516 = vld [vmem:[%s2513 + $0x8] sm:$0xf]
        %v2517 = vld [vmem:[%s2513 + $0xc] sm:$0xf]
        %v2522 = vunpack.c.l.b16 %v2514
        %v2523 = vunpack.c.l.b16 %v2515
        %v2524 = vunpack.c.l.b16 %v2516
        %v2525 = vunpack.c.l.b16 %v2517
        %v2526 = vpack.c.b16 %v2523, %v2522
        %v2527 = vpack.c.b16 %v2525, %v2524
        %2530 = vmatprep.subr.bf16.mxu0 0
        %2531 = vmatpush1.bf16.msra.mxu0 %v2526
        %2532 = vmatprep.subr.bf16.mxu0 0
        %2533 = vmatpush1.bf16.msra.mxu0 %v2527
        %2534 = vmatprep.subr.bf16.mxu0 0
        %2535 = vmatpush1.bf16.msra.mxu0 0
        %2536 = vmatprep.subr.bf16.mxu0 0
        %2537 = vmatpush1.bf16.msra.mxu0 0
        %2538 = vmatprep.subr.bf16.mxu0 0
        %2539 = vmatpush1.bf16.msra.mxu0 0
        %2540 = vmatprep.subr.bf16.mxu0 0
        %2541 = vmatpush1.bf16.msra.mxu0 0
        %2542 = vmatprep.subr.bf16.mxu0 0
        %2543 = vmatpush1.bf16.msra.mxu0 0
        %2544 = vmatprep.subr.bf16.mxu0 0
        %2545 = vmatpush1.bf16.msra.mxu0 0
        %2546 = vmatprep.subr.bf16.mxu0 0
        %2547 = vmatpush1.bf16.msra.mxu0 0
        %2548 = vmatprep.subr.bf16.mxu0 0
        %2549 = vmatpush1.bf16.msra.mxu0 0
        %2550 = vmatprep.subr.bf16.mxu0 0
        %2551 = vmatpush1.bf16.msra.mxu0 0
        %2552 = vmatprep.subr.bf16.mxu0 0
        %2553 = vmatpush1.bf16.msra.mxu0 0
        %2554 = vmatprep.subr.bf16.mxu0 0
        %2555 = vmatpush1.bf16.msra.mxu0 0
        %2556 = vmatprep.subr.bf16.mxu0 0
        %2557 = vmatpush1.bf16.msra.mxu0 0
        %2558 = vmatprep.subr.bf16.mxu0 0
        %2559 = vmatpush1.bf16.msra.mxu0 0
        %2560 = vmatprep.subr.bf16.mxu0 0
        %2561 = vmatpush1.bf16.msra.mxu0 0
        %2562 = vmatprep.mubr.bf16.mxu0 0
        %2563 = vmatmul.mubr.bf16.gmra.mrb[0].mxu0 %v2469
        %v2564 = vpop.f32.mrb[0].mxu0
        %v2565 = vadd.f32 0.0, %v2564
        %v2566 = vpop.f32.mrb[0].mxu0
        %v2567 = vpop.f32.mrb[0].mxu0
        %v2568 = vpop.f32.mrb[0].mxu0
        %2569 = vdwg.mxu0
        %v2570 = vmul.f32 %v1483, %v2565
        %v2571 = vadd.f32 %v2512, %v2570
        %s2572 = scalar_lea.vmem [#allocation6], 288
        %v2573 = vld [vmem:[%s2572] sm:$0xf]
        %v2574 = vld [vmem:[%s2572 + $0x4] sm:$0xf]
        %v2575 = vld [vmem:[%s2572 + $0x8] sm:$0xf]
        %v2576 = vld [vmem:[%s2572 + $0xc] sm:$0xf]
        %v2581 = vunpack.c.l.b16 %v2573
        %v2582 = vunpack.c.l.b16 %v2574
        %v2583 = vunpack.c.l.b16 %v2575
        %v2584 = vunpack.c.l.b16 %v2576
        %v2585 = vpack.c.b16 %v2582, %v2581
        %v2586 = vpack.c.b16 %v2584, %v2583
        %2589 = vmatprep.subr.bf16.mxu0 0
        %2590 = vmatpush1.bf16.msra.mxu0 %v2585
        %2591 = vmatprep.subr.bf16.mxu0 0
        %2592 = vmatpush1.bf16.msra.mxu0 %v2586
        %2593 = vmatprep.subr.bf16.mxu0 0
        %2594 = vmatpush1.bf16.msra.mxu0 0
        %2595 = vmatprep.subr.bf16.mxu0 0
        %2596 = vmatpush1.bf16.msra.mxu0 0
        %2597 = vmatprep.subr.bf16.mxu0 0
        %2598 = vmatpush1.bf16.msra.mxu0 0
        %2599 = vmatprep.subr.bf16.mxu0 0
        %2600 = vmatpush1.bf16.msra.mxu0 0
        %2601 = vmatprep.subr.bf16.mxu0 0
        %2602 = vmatpush1.bf16.msra.mxu0 0
        %2603 = vmatprep.subr.bf16.mxu0 0
        %2604 = vmatpush1.bf16.msra.mxu0 0
        %2605 = vmatprep.subr.bf16.mxu0 0
        %2606 = vmatpush1.bf16.msra.mxu0 0
        %2607 = vmatprep.subr.bf16.mxu0 0
        %2608 = vmatpush1.bf16.msra.mxu0 0
        %2609 = vmatprep.subr.bf16.mxu0 0
        %2610 = vmatpush1.bf16.msra.mxu0 0
        %2611 = vmatprep.subr.bf16.mxu0 0
        %2612 = vmatpush1.bf16.msra.mxu0 0
        %2613 = vmatprep.subr.bf16.mxu0 0
        %2614 = vmatpush1.bf16.msra.mxu0 0
        %2615 = vmatprep.subr.bf16.mxu0 0
        %2616 = vmatpush1.bf16.msra.mxu0 0
        %2617 = vmatprep.subr.bf16.mxu0 0
        %2618 = vmatpush1.bf16.msra.mxu0 0
        %2619 = vmatprep.subr.bf16.mxu0 0
        %2620 = vmatpush1.bf16.msra.mxu0 0
        %2621 = vmatprep.mubr.bf16.mxu0 0
        %2622 = vmatmul.mubr.bf16.gmra.mrb[0].mxu0 %v2469
        %v2623 = vpop.f32.mrb[0].mxu0
        %v2624 = vadd.f32 0.0, %v2623
        %v2625 = vpop.f32.mrb[0].mxu0
        %v2626 = vpop.f32.mrb[0].mxu0
        %v2627 = vpop.f32.mrb[0].mxu0
        %2628 = vdwg.mxu0
        %v2629 = vmul.f32 %v1549, %v2624
        %v2630 = vadd.f32 %v2571, %v2629
        %s2631 = scalar_lea.vmem [#allocation6], 304
        %v2632 = vld [vmem:[%s2631] sm:$0xf]
        %v2633 = vld [vmem:[%s2631 + $0x4] sm:$0xf]
        %v2634 = vld [vmem:[%s2631 + $0x8] sm:$0xf]
        %v2635 = vld [vmem:[%s2631 + $0xc] sm:$0xf]
        %v2640 = vunpack.c.l.b16 %v2632
        %v2641 = vunpack.c.l.b16 %v2633
        %v2642 = vunpack.c.l.b16 %v2634
        %v2643 = vunpack.c.l.b16 %v2635
        %v2644 = vpack.c.b16 %v2641, %v2640
        %v2645 = vpack.c.b16 %v2643, %v2642
        %2648 = vmatprep.subr.bf16.mxu0 0
        %2649 = vmatpush1.bf16.msra.mxu0 %v2644
        %2650 = vmatprep.subr.bf16.mxu0 0
        %2651 = vmatpush1.bf16.msra.mxu0 %v2645
        %2652 = vmatprep.subr.bf16.mxu0 0
        %2653 = vmatpush1.bf16.msra.mxu0 0
        %2654 = vmatprep.subr.bf16.mxu0 0
        %2655 = vmatpush1.bf16.msra.mxu0 0
        %2656 = vmatprep.subr.bf16.mxu0 0
        %2657 = vmatpush1.bf16.msra.mxu0 0
        %2658 = vmatprep.subr.bf16.mxu0 0
        %2659 = vmatpush1.bf16.msra.mxu0 0
        %2660 = vmatprep.subr.bf16.mxu0 0
        %2661 = vmatpush1.bf16.msra.mxu0 0
        %2662 = vmatprep.subr.bf16.mxu0 0
        %2663 = vmatpush1.bf16.msra.mxu0 0
        %2664 = vmatprep.subr.bf16.mxu0 0
        %2665 = vmatpush1.bf16.msra.mxu0 0
        %2666 = vmatprep.subr.bf16.mxu0 0
        %2667 = vmatpush1.bf16.msra.mxu0 0
        %2668 = vmatprep.subr.bf16.mxu0 0
        %2669 = vmatpush1.bf16.msra.mxu0 0
        %2670 = vmatprep.subr.bf16.mxu0 0
        %2671 = vmatpush1.bf16.msra.mxu0 0
        %2672 = vmatprep.subr.bf16.mxu0 0
        %2673 = vmatpush1.bf16.msra.mxu0 0
        %2674 = vmatprep.subr.bf16.mxu0 0
        %2675 = vmatpush1.bf16.msra.mxu0 0
        %2676 = vmatprep.subr.bf16.mxu0 0
        %2677 = vmatpush1.bf16.msra.mxu0 0
        %2678 = vmatprep.subr.bf16.mxu0 0
        %2679 = vmatpush1.bf16.msra.mxu0 0
        %2680 = vmatprep.mubr.bf16.mxu0 0
        %2681 = vmatmul.mubr.bf16.gmra.mrb[0].mxu0 %v2469
        %v2682 = vpop.f32.mrb[0].mxu0
        %v2683 = vadd.f32 0.0, %v2682
        %v2684 = vpop.f32.mrb[0].mxu0
        %v2685 = vpop.f32.mrb[0].mxu0
        %v2686 = vpop.f32.mrb[0].mxu0
        %2687 = vdwg.mxu0
        %v2688 = vmul.f32 %v1615, %v2683
        %v2689 = vadd.f32 %v2630, %v2688
        %s2690 = scalar_lea.vmem [#allocation6], 320
        %v2691 = vld [vmem:[%s2690] sm:$0xf]
        %v2692 = vld [vmem:[%s2690 + $0x4] sm:$0xf]
        %v2693 = vld [vmem:[%s2690 + $0x8] sm:$0xf]
        %v2694 = vld [vmem:[%s2690 + $0xc] sm:$0xf]
        %v2699 = vunpack.c.l.b16 %v2691
        %v2700 = vunpack.c.l.b16 %v2692
        %v2701 = vunpack.c.l.b16 %v2693
        %v2702 = vunpack.c.l.b16 %v2694
        %v2703 = vpack.c.b16 %v2700, %v2699
        %v2704 = vpack.c.b16 %v2702, %v2701
        %2707 = vmatprep.subr.bf16.mxu0 0
        %2708 = vmatpush1.bf16.msra.mxu0 %v2703
        %2709 = vmatprep.subr.bf16.mxu0 0
        %2710 = vmatpush1.bf16.msra.mxu0 %v2704
        %2711 = vmatprep.subr.bf16.mxu0 0
        %2712 = vmatpush1.bf16.msra.mxu0 0
        %2713 = vmatprep.subr.bf16.mxu0 0
        %2714 = vmatpush1.bf16.msra.mxu0 0
        %2715 = vmatprep.subr.bf16.mxu0 0
        %2716 = vmatpush1.bf16.msra.mxu0 0
        %2717 = vmatprep.subr.bf16.mxu0 0
        %2718 = vmatpush1.bf16.msra.mxu0 0
        %2719 = vmatprep.subr.bf16.mxu0 0
        %2720 = vmatpush1.bf16.msra.mxu0 0
        %2721 = vmatprep.subr.bf16.mxu0 0
        %2722 = vmatpush1.bf16.msra.mxu0 0
        %2723 = vmatprep.subr.bf16.mxu0 0
        %2724 = vmatpush1.bf16.msra.mxu0 0
        %2725 = vmatprep.subr.bf16.mxu0 0
        %2726 = vmatpush1.bf16.msra.mxu0 0
        %2727 = vmatprep.subr.bf16.mxu0 0
        %2728 = vmatpush1.bf16.msra.mxu0 0
        %2729 = vmatprep.subr.bf16.mxu0 0
        %2730 = vmatpush1.bf16.msra.mxu0 0
        %2731 = vmatprep.subr.bf16.mxu0 0
        %2732 = vmatpush1.bf16.msra.mxu0 0
        %2733 = vmatprep.subr.bf16.mxu0 0
        %2734 = vmatpush1.bf16.msra.mxu0 0
        %2735 = vmatprep.subr.bf16.mxu0 0
        %2736 = vmatpush1.bf16.msra.mxu0 0
        %2737 = vmatprep.subr.bf16.mxu0 0
        %2738 = vmatpush1.bf16.msra.mxu0 0
        %2739 = vmatprep.mubr.bf16.mxu0 0
        %2740 = vmatmul.mubr.bf16.gmra.mrb[0].mxu0 %v2469
        %v2741 = vpop.f32.mrb[0].mxu0
        %v2742 = vadd.f32 0.0, %v2741
        %v2743 = vpop.f32.mrb[0].mxu0
        %v2744 = vpop.f32.mrb[0].mxu0
        %v2745 = vpop.f32.mrb[0].mxu0
        %2746 = vdwg.mxu0
        %v2747 = vmul.f32 %v1681, %v2742
        %v2748 = vadd.f32 %v2689, %v2747
        %s2749 = scalar_lea.vmem [#allocation6], 336
        %v2750 = vld [vmem:[%s2749] sm:$0xf]
        %v2751 = vld [vmem:[%s2749 + $0x4] sm:$0xf]
        %v2752 = vld [vmem:[%s2749 + $0x8] sm:$0xf]
        %v2753 = vld [vmem:[%s2749 + $0xc] sm:$0xf]
        %v2758 = vunpack.c.l.b16 %v2750
        %v2759 = vunpack.c.l.b16 %v2751
        %v2760 = vunpack.c.l.b16 %v2752
        %v2761 = vunpack.c.l.b16 %v2753
        %v2762 = vpack.c.b16 %v2759, %v2758
        %v2763 = vpack.c.b16 %v2761, %v2760
        %2766 = vmatprep.subr.bf16.mxu0 0
        %2767 = vmatpush1.bf16.msra.mxu0 %v2762
        %2768 = vmatprep.subr.bf16.mxu0 0
        %2769 = vmatpush1.bf16.msra.mxu0 %v2763
        %2770 = vmatprep.subr.bf16.mxu0 0
        %2771 = vmatpush1.bf16.msra.mxu0 0
        %2772 = vmatprep.subr.bf16.mxu0 0
        %2773 = vmatpush1.bf16.msra.mxu0 0
        %2774 = vmatprep.subr.bf16.mxu0 0
        %2775 = vmatpush1.bf16.msra.mxu0 0
        %2776 = vmatprep.subr.bf16.mxu0 0
        %2777 = vmatpush1.bf16.msra.mxu0 0
        %2778 = vmatprep.subr.bf16.mxu0 0
        %2779 = vmatpush1.bf16.msra.mxu0 0
        %2780 = vmatprep.subr.bf16.mxu0 0
        %2781 = vmatpush1.bf16.msra.mxu0 0
        %2782 = vmatprep.subr.bf16.mxu0 0
        %2783 = vmatpush1.bf16.msra.mxu0 0
        %2784 = vmatprep.subr.bf16.mxu0 0
        %2785 = vmatpush1.bf16.msra.mxu0 0
        %2786 = vmatprep.subr.bf16.mxu0 0
        %2787 = vmatpush1.bf16.msra.mxu0 0
        %2788 = vmatprep.subr.bf16.mxu0 0
        %2789 = vmatpush1.bf16.msra.mxu0 0
        %2790 = vmatprep.subr.bf16.mxu0 0
        %2791 = vmatpush1.bf16.msra.mxu0 0
        %2792 = vmatprep.subr.bf16.mxu0 0
        %2793 = vmatpush1.bf16.msra.mxu0 0
        %2794 = vmatprep.subr.bf16.mxu0 0
        %2795 = vmatpush1.bf16.msra.mxu0 0
        %2796 = vmatprep.subr.bf16.mxu0 0
        %2797 = vmatpush1.bf16.msra.mxu0 0
        %2798 = vmatprep.mubr.bf16.mxu0 0
        %2799 = vmatmul.mubr.bf16.gmra.mrb[0].mxu0 %v2469
        %v2800 = vpop.f32.mrb[0].mxu0
        %v2801 = vadd.f32 0.0, %v2800
        %v2802 = vpop.f32.mrb[0].mxu0
        %v2803 = vpop.f32.mrb[0].mxu0
        %v2804 = vpop.f32.mrb[0].mxu0
        %2805 = vdwg.mxu0
        %v2806 = vmul.f32 %v1747, %v2801
        %v2807 = vadd.f32 %v2748, %v2806
        %s2808 = scalar_lea.vmem [#allocation6], 352
        %v2809 = vld [vmem:[%s2808] sm:$0xf]
        %v2810 = vld [vmem:[%s2808 + $0x4] sm:$0xf]
        %v2811 = vld [vmem:[%s2808 + $0x8] sm:$0xf]
        %v2812 = vld [vmem:[%s2808 + $0xc] sm:$0xf]
        %v2817 = vunpack.c.l.b16 %v2809
        %v2818 = vunpack.c.l.b16 %v2810
        %v2819 = vunpack.c.l.b16 %v2811
        %v2820 = vunpack.c.l.b16 %v2812
        %v2821 = vpack.c.b16 %v2818, %v2817
        %v2822 = vpack.c.b16 %v2820, %v2819
        %2825 = vmatprep.subr.bf16.mxu0 0
        %2826 = vmatpush1.bf16.msra.mxu0 %v2821
        %2827 = vmatprep.subr.bf16.mxu0 0
        %2828 = vmatpush1.bf16.msra.mxu0 %v2822
        %2829 = vmatprep.subr.bf16.mxu0 0
        %2830 = vmatpush1.bf16.msra.mxu0 0
        %2831 = vmatprep.subr.bf16.mxu0 0
        %2832 = vmatpush1.bf16.msra.mxu0 0
        %2833 = vmatprep.subr.bf16.mxu0 0
        %2834 = vmatpush1.bf16.msra.mxu0 0
        %2835 = vmatprep.subr.bf16.mxu0 0
        %2836 = vmatpush1.bf16.msra.mxu0 0
        %2837 = vmatprep.subr.bf16.mxu0 0
        %2838 = vmatpush1.bf16.msra.mxu0 0
        %2839 = vmatprep.subr.bf16.mxu0 0
        %2840 = vmatpush1.bf16.msra.mxu0 0
        %2841 = vmatprep.subr.bf16.mxu0 0
        %2842 = vmatpush1.bf16.msra.mxu0 0
        %2843 = vmatprep.subr.bf16.mxu0 0
        %2844 = vmatpush1.bf16.msra.mxu0 0
        %2845 = vmatprep.subr.bf16.mxu0 0
        %2846 = vmatpush1.bf16.msra.mxu0 0
        %2847 = vmatprep.subr.bf16.mxu0 0
        %2848 = vmatpush1.bf16.msra.mxu0 0
        %2849 = vmatprep.subr.bf16.mxu0 0
        %2850 = vmatpush1.bf16.msra.mxu0 0
        %2851 = vmatprep.subr.bf16.mxu0 0
        %2852 = vmatpush1.bf16.msra.mxu0 0
        %2853 = vmatprep.subr.bf16.mxu0 0
        %2854 = vmatpush1.bf16.msra.mxu0 0
        %2855 = vmatprep.subr.bf16.mxu0 0
        %2856 = vmatpush1.bf16.msra.mxu0 0
        %2857 = vmatprep.mubr.bf16.mxu0 0
        %2858 = vmatmul.mubr.bf16.gmra.mrb[0].mxu0 %v2469
        %v2859 = vpop.f32.mrb[0].mxu0
        %v2860 = vadd.f32 0.0, %v2859
        %v2861 = vpop.f32.mrb[0].mxu0
        %v2862 = vpop.f32.mrb[0].mxu0
        %v2863 = vpop.f32.mrb[0].mxu0
        %2864 = vdwg.mxu0
        %v2865 = vmul.f32 %v1813, %v2860
        %v2866 = vadd.f32 %v2807, %v2865
        %s2867 = scalar_lea.vmem [#allocation6], 368
        %v2868 = vld [vmem:[%s2867] sm:$0xf]
        %v2869 = vld [vmem:[%s2867 + $0x4] sm:$0xf]
        %v2870 = vld [vmem:[%s2867 + $0x8] sm:$0xf]
        %v2871 = vld [vmem:[%s2867 + $0xc] sm:$0xf]
        %v2876 = vunpack.c.l.b16 %v2868
        %v2877 = vunpack.c.l.b16 %v2869
        %v2878 = vunpack.c.l.b16 %v2870
        %v2879 = vunpack.c.l.b16 %v2871
        %v2880 = vpack.c.b16 %v2877, %v2876
        %v2881 = vpack.c.b16 %v2879, %v2878
        %2884 = vmatprep.subr.bf16.mxu0 0
        %2885 = vmatpush1.bf16.msra.mxu0 %v2880
        %2886 = vmatprep.subr.bf16.mxu0 0
        %2887 = vmatpush1.bf16.msra.mxu0 %v2881
        %2888 = vmatprep.subr.bf16.mxu0 0
        %2889 = vmatpush1.bf16.msra.mxu0 0
        %2890 = vmatprep.subr.bf16.mxu0 0
        %2891 = vmatpush1.bf16.msra.mxu0 0
        %2892 = vmatprep.subr.bf16.mxu0 0
        %2893 = vmatpush1.bf16.msra.mxu0 0
        %2894 = vmatprep.subr.bf16.mxu0 0
        %2895 = vmatpush1.bf16.msra.mxu0 0
        %2896 = vmatprep.subr.bf16.mxu0 0
        %2897 = vmatpush1.bf16.msra.mxu0 0
        %2898 = vmatprep.subr.bf16.mxu0 0
        %2899 = vmatpush1.bf16.msra.mxu0 0
        %2900 = vmatprep.subr.bf16.mxu0 0
        %2901 = vmatpush1.bf16.msra.mxu0 0
        %2902 = vmatprep.subr.bf16.mxu0 0
        %2903 = vmatpush1.bf16.msra.mxu0 0
        %2904 = vmatprep.subr.bf16.mxu0 0
        %2905 = vmatpush1.bf16.msra.mxu0 0
        %2906 = vmatprep.subr.bf16.mxu0 0
        %2907 = vmatpush1.bf16.msra.mxu0 0
        %2908 = vmatprep.subr.bf16.mxu0 0
        %2909 = vmatpush1.bf16.msra.mxu0 0
        %2910 = vmatprep.subr.bf16.mxu0 0
        %2911 = vmatpush1.bf16.msra.mxu0 0
        %2912 = vmatprep.subr.bf16.mxu0 0
        %2913 = vmatpush1.bf16.msra.mxu0 0
        %2914 = vmatprep.subr.bf16.mxu0 0
        %2915 = vmatpush1.bf16.msra.mxu0 0
        %2916 = vmatprep.mubr.bf16.mxu0 0
        %2917 = vmatmul.mubr.bf16.gmra.mrb[0].mxu0 %v2469
        %v2918 = vpop.f32.mrb[0].mxu0
        %v2919 = vadd.f32 0.0, %v2918
        %v2920 = vpop.f32.mrb[0].mxu0
        %v2921 = vpop.f32.mrb[0].mxu0
        %v2922 = vpop.f32.mrb[0].mxu0
        %2923 = vdwg.mxu0
        %v2924 = vmul.f32 %v1879, %v2919
        %v2925 = vadd.f32 %v2866, %v2924
        %v2926 = vadd.f32 %v2925, %v1350
        %v2927 = vpack.c.bf16 %v2926, %v2926
        %v2928 = vld [vmem:[%s8] sm:$0xf]
        %v2929 = vld [vmem:[%s8 + $0x4] sm:$0xf]
        %v2930 = vld [vmem:[%s8 + $0x8] sm:$0xf]
        %v2931 = vld [vmem:[%s8 + $0xc] sm:$0xf]
        %v2936 = vunpack.c.l.b16 %v2928
        %v2937 = vunpack.c.l.b16 %v2929
        %v2938 = vunpack.c.l.b16 %v2930
        %v2939 = vunpack.c.l.b16 %v2931
        %v2940 = vpack.c.b16 %v2937, %v2936
        %v2941 = vpack.c.b16 %v2939, %v2938
        %v2945 = vsel %vm1369, %v2927, 0
        %2947 = vmatprep.subr.bf16.mxu0 0
        %2948 = vmatpush1.bf16.msra.mxu0 %v2940
        %2949 = vmatprep.subr.bf16.mxu0 0
        %2950 = vmatpush1.bf16.msra.mxu0 %v2941
        %2951 = vmatprep.subr.bf16.mxu0 0
        %2952 = vmatpush1.bf16.msra.mxu0 0
        %2953 = vmatprep.subr.bf16.mxu0 0
        %2954 = vmatpush1.bf16.msra.mxu0 0
        %2955 = vmatprep.subr.bf16.mxu0 0
        %2956 = vmatpush1.bf16.msra.mxu0 0
        %2957 = vmatprep.subr.bf16.mxu0 0
        %2958 = vmatpush1.bf16.msra.mxu0 0
        %2959 = vmatprep.subr.bf16.mxu0 0
        %2960 = vmatpush1.bf16.msra.mxu0 0
        %2961 = vmatprep.subr.bf16.mxu0 0
        %2962 = vmatpush1.bf16.msra.mxu0 0
        %2963 = vmatprep.subr.bf16.mxu0 0
        %2964 = vmatpush1.bf16.msra.mxu0 0
        %2965 = vmatprep.subr.bf16.mxu0 0
        %2966 = vmatpush1.bf16.msra.mxu0 0
        %2967 = vmatprep.subr.bf16.mxu0 0
        %2968 = vmatpush1.bf16.msra.mxu0 0
        %2969 = vmatprep.subr.bf16.mxu0 0
        %2970 = vmatpush1.bf16.msra.mxu0 0
        %2971 = vmatprep.subr.bf16.mxu0 0
        %2972 = vmatpush1.bf16.msra.mxu0 0
        %2973 = vmatprep.subr.bf16.mxu0 0
        %2974 = vmatpush1.bf16.msra.mxu0 0
        %2975 = vmatprep.subr.bf16.mxu0 0
        %2976 = vmatpush1.bf16.msra.mxu0 0
        %2977 = vmatprep.subr.bf16.mxu0 0
        %2978 = vmatpush1.bf16.msra.mxu0 0
        %2979 = vmatprep.mubr.bf16.mxu0 0
        %2980 = vmatmul.mubr.bf16.gmra.mrb[0].mxu0 %v2945
        %v2981 = vpop.f32.mrb[0].mxu0
        %v2982 = vadd.f32 %v2926, %v2981
        %v2983 = vpop.f32.mrb[0].mxu0
        %v2984 = vpop.f32.mrb[0].mxu0
        %v2985 = vpop.f32.mrb[0].mxu0
        %2986 = vdwg.mxu0
        %2987 = vst.msk [vmem:[%s353] sm:$0xff] %vm1369, %v2982
        %s2988 = sand.u32 %s227, 1
        %s2989 = scalar_lea.sflag [#allocation5], %s2988
        %s2990 = sand.u32 %s227, 1
        %s2991 = smul.addr %s2990, 8
        %s2992 = scalar_lea.vmem [#allocation8], %s2991
        // Predicated region
        $region65: #{tpu_custom_call.1} parent=55 // pred_check
          %p2993 = pneg %p237
        $region66: #{tpu_custom_call.1} parent=55 // pred_check_branch
          %2995 = sbr.rel (%p2993) target = $region68
        $region67: #{tpu_custom_call.1} parent=55 // pred_region
          %s2997 = ssub.s32 128, 128
          %2998 = vsyncadd %s2989, %s2997
          %s2999 = smul.addr %s25, 128
          %s3000 = scalar_lea.hbm %s9, %s2999
          %s3002 = sshll.u32 %s2992, 4
          %s3003 = int_to_ptr.vmem [resolvable:$true] %s3002
          %3005 = dma.vmem_to_hbm [thread:$0]  %s3003, 128, %s3000, %s2989
        $region68: #{tpu_custom_call.1} parent=55 // pred_fallthru
          _
      $region56: #{tpu_custom_call.1} parent=5 // pred_fallthru
        _
      %p3006 = scmp.le.s32.totalorder 2, %s20
      // Predicated region
      $region69: #{tpu_custom_call.1} parent=5 // pred_check
        %p3007 = pneg %p3006
      $region70: #{tpu_custom_call.1} parent=5 // pred_check_branch
        %3009 = sbr.rel (%p3007) target = $region72
      $region71: #{tpu_custom_call.1} parent=5 // pred_region
        %s3010 = ssub.s32 %s20, 2
        // Predicated region
        $region73: #{tpu_custom_call.1} parent=71 // pred_check
          %p3011 = pneg %p243
        $region74: #{tpu_custom_call.1} parent=71 // pred_check_branch
          %3013 = sbr.rel (%p3011) target = $region76
        $region75: #{tpu_custom_call.1} parent=71 // pred_region
          %s3014 = sand.u32 %s228, 1
          %s3015 = scalar_lea.sflag [#allocation5], %s3014
          %s3016 = sand.u32 %s228, 1
          %s3017 = smul.addr %s3016, 8
          %s3018 = scalar_lea.vmem [#allocation8], %s3017
          %3019 = dma.done %s3015, 128
        $region76: #{tpu_custom_call.1} parent=71 // pred_fallthru
          _
      $region72: #{tpu_custom_call.1} parent=5 // pred_fallthru
        _
    $region6: #{tpu_custom_call.1} parent=1 // loop_footer
      %s24 = sadd.s32 1, %s20
    $region7: #{tpu_custom_call.1} parent=1 // loop_footer_branch
      %19 = sbr.rel target = $region3
    $region8: #{tpu_custom_call.1} parent=1 // loop_exit
      _
    %3020 = vsyncpa [#allocation4], 1
    %s3021 = scalar_lea.sflag [#allocation4], 1
    %3022 = vsyncpa %s3021, 1
    %3023 = vsyncpa [#allocation7], 1
    %3024 = vsyncpa [#allocation5], 1
    %s3025 = scalar_lea.sflag [#allocation5], 1
    %3026 = vsyncpa %s3025, 1

</llo_original>
